<compile_context>
chip_gen: v7x
topology: tpu7x:2x2x1
jax: 0.10.0
libtpu: 0.0.40
codegen_flags: <defaults>
</compile_context>

<pallas_src>
import functools

import jax
import jax.numpy as jnp
from jax.experimental import pallas as pl
from jax.experimental.pallas import tpu as pltpu

_LANE = 128


def _round_up(a, b):
    return -(-a // b) * b


def _sublane_multiple(dtype):
    # f32 tile (8,128); bf16 packs 2/sublane -> (16,128); int8/fp8 -> (32,128).
    return max(8, 32 // jnp.dtype(dtype).itemsize)


# ---------------------------------------------------------------------------
# Kernels
# ---------------------------------------------------------------------------

def _maxpool_kernel_nonoverlap(x_ref, o_ref, *, k, Ho_blk, Wo):
    """stride == size (non-overlapping) max pool over one block.

    x_ref: (R, block_h, W)  with block_h >= Ho_blk*k, W >= Wo*k (crop in-kernel)
    o_ref: (R, Ho_blk*Wo)   lane-dense pooled output block
    """
    R = x_ref.shape[0]
    # Static crop of the ref view to the used footprint (no-op when exact).
    x = x_ref[:, : Ho_blk * k, : Wo * k]                 # (R, Ho_blk*k, Wo*k)

    # Vertical (H) reduction: split the sublane axis H -> (Ho_blk, k) and fold
    # the k window rows with unrolled elementwise maxima (static slices only).
    x4 = x.reshape(R, Ho_blk, k, Wo * k)
    y = x4[:, :, 0, :]
    for dy in range(1, k):
        y = jnp.maximum(y, x4[:, :, dy, :])              # (R, Ho_blk, Wo*k)

    # Horizontal (W) reduction: split the lane axis W -> (Wo, k), minor reduce.
    # NOTE (perf review): this touches the lane axis; kept because this
    # formulation is proven to lower cleanly and the lane-dense (R, Ho*Wo)
    # store is the measured win — revisit with a bundle dump if XLU-bound.
    z = jnp.max(y.reshape(R, Ho_blk, Wo, k), axis=-1)    # (R, Ho_blk, Wo)
    o_ref[...] = z.reshape(R, Ho_blk * Wo)


def _maxpool_kernel_general(x_ref, o_ref, y_ref, *, k, s, Ho, Wo):
    """General (stride != size) max pool: separable two-pass reduction.

    x_ref: (R, H, W);  y_ref: VMEM scratch (R, Ho, W);  o_ref: (R, Ho*Wo)
    """
    # TODO(synk): this stride != size path is not exercised by the checks in
    # __main__; it relies on strided ref reads (pl.ds with stride) on both the
    # sublane and lane axes.
    R = x_ref.shape[0]
    # Pass 1 — vertical: k sublane-strided taps.
    y = x_ref[:, pl.ds(0, Ho, stride=s), :]
    for dy in range(1, k):
        y = jnp.maximum(y, x_ref[:, pl.ds(dy, Ho, stride=s), :])
    y_ref[...] = y                                       # (R, Ho, W)
    # Pass 2 — horizontal: k lane-strided taps from the scratch.
    z = y_ref[:, :, pl.ds(0, Wo, stride=s)]
    for dx in range(1, k):
        z = jnp.maximum(z, y_ref[:, :, pl.ds(dx, Wo, stride=s)])
    o_ref[...] = z.reshape(R, Ho * Wo)


# ---------------------------------------------------------------------------
# Tiling heuristic (padded-VMEM aware, dtype aware)
# ---------------------------------------------------------------------------

def _choose_tiling(rows, H, W, Ho, Wo, k, s, dtype,
                   max_block_bytes=4 << 20, min_steps=4):
    """Pick (grid_r, R, grid_h, HoT, in_bytes, out_bytes, steps).

    Targets per-input-block *padded* footprints <= max_block_bytes and at least
    `min_steps` total grid steps when achievable (so double buffering actually
    pipelines and both v7x TensorCores get work).  Constraints:
      * R (sublane axis of the 2-D output block) must be a multiple of the
        dtype sublane tile, or equal to `rows` (full extent).
      * Ho banding (grid_h > 1, only valid when stride == size) requires
        (HoT*k) % sublane == 0 (input block) and (HoT*Wo) % 128 == 0 (output).
    """
    itemsize = jnp.dtype(dtype).itemsize
    sub = _sublane_multiple(dtype)
    w_pad = _round_up(W, _LANE)

    r_cands = []
    for g in range(1, rows + 1):
        if rows % g:
            continue
        R = rows // g
        if g == 1 or R % sub == 0:
            r_cands.append((g, R))

    h_cands = [(1, Ho)]
    if s == k:
        for gh in range(2, Ho + 1):
            if Ho % gh:
                continue
            HoT = Ho // gh
            if (HoT * k) % sub or (HoT * Wo) % _LANE:
                continue
            h_cands.append((gh, HoT))

    cands = []
    for g_r, R in r_cands:
        for gh, HoT in h_cands:
            block_h = HoT * k if gh > 1 else H
            in_b = R * _round_up(block_h, sub) * w_pad * itemsize
            out_b = _round_up(R, sub) * _round_up(HoT * Wo, _LANE) * itemsize
            steps = g_r * gh
            cands.append((g_r, R, gh, HoT, in_b, out_b, steps))

    fitting = [c for c in cands if c[4] <= max_block_bytes]
    if fitting:
        enough = [c for c in fitting if c[6] >= min_steps]
        if enough:
            # Biggest block that still gives enough steps (amortize per-step cost).
            best = max(enough, key=lambda c: c[4])
        else:
            # Otherwise: as many steps as possible, then biggest block.
            best = max(fitting, key=lambda c: (c[6], c[4]))
    else:
        # Nothing fits the target: best effort, smallest block.
        best = min(cands, key=lambda c: c[4])
    return best


# ---------------------------------------------------------------------------
# Wrapper
# ---------------------------------------------------------------------------

def maxpool_block_forward(x_nchw, size, stride=None):
    """nn.MaxPool2d((size, size), stride=stride) forward.

    x_nchw: (N, C, H, W); padding=0, dilation=1, ceil_mode=False (PyTorch
    defaults).  Returns (N, C, Ho, Wo), Ho=(H-size)//stride+1, Wo analogous.
    """
    if stride is None:
        stride = size
    k, s = int(size), int(stride)
    N, C, H, W = x_nchw.shape
    Ho = (H - k) // s + 1
    Wo = (W - k) // s + 1
    assert Ho > 0 and Wo > 0, "pool window larger than input"

    dtype = x_nchw.dtype
    itemsize = jnp.dtype(dtype).itemsize
    rows = N * C

    # Pure metadata reshape (row-major merge of N and C): no HBM copy, no crop.
    x3 = x_nchw.reshape(rows, H, W)

    g_r, R, g_h, HoT, in_b, out_b, steps = _choose_tiling(
        rows, H, W, Ho, Wo, k, s, dtype)
    block_h = HoT * k if g_h > 1 else H

    # Scoped-VMEM budget from padded tile bytes: 2x input + 2x output blocks
    # plus ~2 input blocks of in-kernel temporaries (and the scratch for the
    # general path).
    need = 4 * in_b + 2 * out_b
    if s != k:
        need += R * _round_up(Ho, _sublane_multiple(dtype)) * _round_up(W, _LANE) * itemsize
    vmem_limit = int(min(max(32 << 20, 2 * need), 48 << 20))

    in_kwargs = {}
    if in_b < (1 << 20) and steps >= 3:
        # Tiny blocks: deepen the input pipeline to hide DMA issue latency.
        in_kwargs["pipeline_mode"] = pl.Buffered(3)
    in_spec = pl.BlockSpec((R, block_h, W), lambda i, j: (i, j, 0), **in_kwargs)
    out_spec = pl.BlockSpec((R, HoT * Wo), lambda i, j: (i, j))

    if s == k:
        kern = functools.partial(_maxpool_kernel_nonoverlap, k=k, Ho_blk=HoT, Wo=Wo)
        scratch = []
    else:
        kern = functools.partial(_maxpool_kernel_general, k=k, s=s, Ho=Ho, Wo=Wo)
        scratch = [pltpu.VMEM((R, Ho, W), dtype)]

    out2 = pl.pallas_call(
        kern,
        out_shape=jax.ShapeDtypeStruct((rows, Ho * Wo), dtype),
        grid_spec=pltpu.PrefetchScalarGridSpec(
            num_scalar_prefetch=0,
            grid=(g_r, g_h),
            in_specs=[in_spec],
            out_specs=out_spec,
            scratch_shapes=scratch,
        ),
        compiler_params=pltpu.CompilerParams(
            dimension_semantics=("parallel", "parallel"),
            vmem_limit_bytes=vmem_limit,
        ),
        cost_estimate=pl.CostEstimate(
            flops=rows * Ho * Wo * (k * k - 1),
            transcendentals=0,
            bytes_accessed=(rows * H * W + rows * Ho * Wo) * itemsize,
        ),
    )(x3)

    # Free row-major reshape back to the PyTorch NCHW output layout.
    return out2.reshape(N, C, Ho, Wo)


if __name__ == "__main__":
    key = jax.random.PRNGKey(0)

    def _ref_pool(x, size, stride):
        return jax.lax.reduce_window(
            x, jnp.array(-jnp.inf, dtype=x.dtype), jax.lax.max,
            window_dimensions=(1, 1, size, size),
            window_strides=(1, 1, stride, stride),
            padding="VALID")

    cases = [
        ((2, 4, 16, 16), 2, 2),   # base case
        ((2, 4, 32, 32), 2, 2),   # exercises the Ho-band grid axis
        ((2, 4, 17, 17), 2, 2),   # exercises the in-kernel crop (non-divisible H/W)
    ]
    for idx, (shape, size, stride) in enumerate(cases):
        key, sub = jax.random.split(key)
        x = jax.random.normal(sub, shape, jnp.float32)
        out = jax.block_until_ready(maxpool_block_forward(x, size, stride))
        ref = _ref_pool(x, size, stride)
        assert out.shape == ref.shape, (idx, out.shape, ref.shape)
        assert jnp.allclose(out, ref), f"mismatch in case {idx}"

    print("KERNEL_OK")
</pallas_src>

<mosaic_0001>
module attributes {stable_mosaic.version = 11 : i64} {
  func.func @_maxpool_kernel_nonoverlap(%arg0: i32, %arg1: i32, %arg2: memref<8x16x16xf32, #tpu.memory_space<vmem>>, %arg3: memref<8x64xf32, #tpu.memory_space<vmem>>) attributes {dimension_semantics = [#tpu.dimension_semantics<parallel>, #tpu.dimension_semantics<parallel>], iteration_bounds = array<i64: 1, 1>, scalar_prefetch = 0 : i64, scratch_operands = 0 : i64, tpu.core_type = #tpu.core_type<tc>, window_params = [{transform_indices = @transform_0, window_bounds = array<i64: 8, 16, 16>}, {transform_indices = @transform_1, window_bounds = array<i64: 8, 64>}]} {
    %c0 = arith.constant 0 : index
    %c0_0 = arith.constant 0 : index
    %c0_1 = arith.constant 0 : index
    %0 = vector.load %arg2[%c0, %c0_0, %c0_1] : memref<8x16x16xf32, #tpu.memory_space<vmem>>, vector<8x16x16xf32>
    %1 = vector.shape_cast %0 : vector<8x16x16xf32> to vector<8x8x2x16xf32>
    %2 = vector.extract_strided_slice %1 {offsets = [0, 0, 0, 0], sizes = [8, 8, 1, 16], strides = [1, 1, 1, 1]} : vector<8x8x2x16xf32> to vector<8x8x1x16xf32>
    %3 = vector.shape_cast %2 : vector<8x8x1x16xf32> to vector<8x8x16xf32>
    %4 = vector.extract_strided_slice %1 {offsets = [0, 0, 1, 0], sizes = [8, 8, 1, 16], strides = [1, 1, 1, 1]} : vector<8x8x2x16xf32> to vector<8x8x1x16xf32>
    %5 = vector.shape_cast %4 : vector<8x8x1x16xf32> to vector<8x8x16xf32>
    %6 = arith.maximumf %3, %5 : vector<8x8x16xf32>
    %7 = vector.shape_cast %6 : vector<8x8x16xf32> to vector<8x8x8x2xf32>
    %cst = arith.constant dense<0xFF800000> : vector<8x8x8xf32>
    %8 = vector.multi_reduction <maximumf>, %7, %cst [3] : vector<8x8x8x2xf32> to vector<8x8x8xf32>
    %9 = vector.shape_cast %8 : vector<8x8x8xf32> to vector<8x64xf32>
    %c0_2 = arith.constant 0 : index
    %c0_3 = arith.constant 0 : index
    %10 = vector.load %arg3[%c0_2, %c0_3] : memref<8x64xf32, #tpu.memory_space<vmem>>, vector<8x64xf32>
    tpu.vector_store %arg3[%c0_2, %c0_3], %9 {strides = array<i32>} : memref<8x64xf32, #tpu.memory_space<vmem>>, vector<8x64xf32>,
    return
  }
  func.func @transform_0(%arg0: i32, %arg1: i32) -> (i32, i32, i32) {
    %c0_i32 = arith.constant 0 : i32
    %c0_i32_0 = arith.constant 0 : i32
    return %arg0, %arg1, %c0_i32 : i32, i32, i32
  }
  func.func @transform_1(%arg0: i32, %arg1: i32) -> (i32, i32) {
    %c0_i32 = arith.constant 0 : i32
    return %arg0, %arg1 : i32, i32
  }
}

</mosaic_0001>

<llo_original>
// kernel: tpu_custom_call.1
$region0: #{tpu_custom_call.1}
  #allocation0 [shape = 'u32[]', space=smem, size = 0x4, offset = 0x4, fixed_abs, tag = 'smem constant byte address 0x4 - core index']
  #allocation1 [shape = 'u32[144,128]{1,0:T(1,128)}', space=vmem, size = 0x12000, scoped, tag = 'internal scratch']
  %s0 = inlined_call_operand.hbm [shape: f32[8,16,16], index: 0, kind: input, shape index: {}]
  %s1 = inlined_call_operand.hbm [shape: f32[8,64], index: 1, kind: output, shape index: {}]
  %s2 = sld [smem:[#allocation0]]
  $region18: #{tpu_custom_call.1} parent=0
    _
  %s4 = ssub.s32 1, %s2
  %s5 = scalar_select 0, %s4, %s2
  $region1: #{tpu_custom_call.1} parent=0
    #allocation2 [shape = 'u8[65536]{0}', space=vmem, size = 0x10000, scoped, tag = 'input window, operand 0, single buffered']
    #allocation3 [shape = 's32[1]{0}', space=sflag, size = 0x4, scoped, tag = 'scoped memory for tpu_custom_call.1']
    #allocation4 [shape = 's32[1]{0}', space=sflag, size = 0x4, scoped, tag = 'scoped memory for tpu_custom_call.1']
    #allocation5 [shape = 'u8[4096]{0}', space=vmem, size = 0x1000, scoped, tag = 'output window, operand 0, single buffered']
    %6 = vsyncpa [#allocation3], 0
    %7 = vsyncpa [#allocation4], 0
    // Predicated region
    $region2: #{tpu_custom_call.1} parent=1 // pred_check
      _
    $region3: #{tpu_custom_call.1} parent=1 // pred_check_branch
      %9 = sbr.rel (0) target = $region5
    $region4: #{tpu_custom_call.1} parent=1 // pred_region
      %s11 = ssub.s32 2048, 2048
      %12 = vsyncadd [#allocation3], %s11
      %s13 = sshll.u32 [#allocation2], 4
      %s14 = int_to_ptr.vmem [resolvable:$true] %s13
      %19 = dma.hbm_to_vmem [thread:$0]  %s0, 2048, %s14, [#allocation3], 128, 128, 8
    $region5: #{tpu_custom_call.1} parent=1 // pred_fallthru
      _
    // Predicated region
    $region6: #{tpu_custom_call.1} parent=1 // pred_check
      _
    $region7: #{tpu_custom_call.1} parent=1 // pred_check_branch
      %21 = sbr.rel (0) target = $region9
    $region8: #{tpu_custom_call.1} parent=1 // pred_region
      %22 = dma.done [#allocation3], 2048
    $region9: #{tpu_custom_call.1} parent=1 // pred_fallthru
      _
    %v23 = vld [vmem:[#allocation2] sm:$0xff]
    %v24 = vld [vmem:[#allocation2 + $0x8] sm:$0xff]
    %v25 = vld [vmem:[#allocation2 + $0x10] sm:$0xff]
    %v26 = vld [vmem:[#allocation2 + $0x18] sm:$0xff]
    %v27 = vld [vmem:[#allocation2 + $0x20] sm:$0xff]
    %v28 = vld [vmem:[#allocation2 + $0x28] sm:$0xff]
    %v29 = vld [vmem:[#allocation2 + $0x30] sm:$0xff]
    %v30 = vld [vmem:[#allocation2 + $0x38] sm:$0xff]
    %v31 = vld [vmem:[#allocation2 + $0x40] sm:$0xff]
    %v32 = vld [vmem:[#allocation2 + $0x48] sm:$0xff]
    %v33 = vld [vmem:[#allocation2 + $0x50] sm:$0xff]
    %v34 = vld [vmem:[#allocation2 + $0x58] sm:$0xff]
    %v35 = vld [vmem:[#allocation2 + $0x60] sm:$0xff]
    %v36 = vld [vmem:[#allocation2 + $0x68] sm:$0xff]
    %v37 = vld [vmem:[#allocation2 + $0x70] sm:$0xff]
    %v38 = vld [vmem:[#allocation2 + $0x78] sm:$0xff]
    %v55 = vcombine.high %v23, %v23
    %v57 = vunpack.c.l.s4 1983009808
    %v58 = vunpack.c.0.s8 %v57
    %v59 = vlaneseq
    %v60 = vshrl.u32 %v59, 7
    %v61 = vsub.s32 %v58, %v60
    %v62 = vrot.slane %v23, %v61
    %v64 = vunpack.c.l.s4 1983009808
    %v65 = vunpack.c.0.s8 %v64
    %v66 = vlaneseq
    %v67 = vshrl.u32 %v66, 7
    %v68 = vsub.s32 %v65, %v67
    %v69 = vrot.slane %v55, %v68
    %v70 = vcombine.high %v62, %v62
    %v71 = vcombine.high %v69, %v69
    %v72 = vcombine.high %v24, %v24
    %v74 = vunpack.c.l.s4 1983009808
    %v75 = vunpack.c.0.s8 %v74
    %v76 = vlaneseq
    %v77 = vshrl.u32 %v76, 7
    %v78 = vsub.s32 %v75, %v77
    %v79 = vrot.slane %v24, %v78
    %v81 = vunpack.c.l.s4 1983009808
    %v82 = vunpack.c.0.s8 %v81
    %v83 = vlaneseq
    %v84 = vshrl.u32 %v83, 7
    %v85 = vsub.s32 %v82, %v84
    %v86 = vrot.slane %v72, %v85
    %v87 = vcombine.high %v79, %v79
    %v88 = vcombine.high %v86, %v86
    %v89 = vcombine.high %v25, %v25
    %v91 = vunpack.c.l.s4 1983009808
    %v92 = vunpack.c.0.s8 %v91
    %v93 = vlaneseq
    %v94 = vshrl.u32 %v93, 7
    %v95 = vsub.s32 %v92, %v94
    %v96 = vrot.slane %v25, %v95
    %v98 = vunpack.c.l.s4 1983009808
    %v99 = vunpack.c.0.s8 %v98
    %v100 = vlaneseq
    %v101 = vshrl.u32 %v100, 7
    %v102 = vsub.s32 %v99, %v101
    %v103 = vrot.slane %v89, %v102
    %v104 = vcombine.high %v96, %v96
    %v105 = vcombine.high %v103, %v103
    %v106 = vcombine.high %v26, %v26
    %v108 = vunpack.c.l.s4 1983009808
    %v109 = vunpack.c.0.s8 %v108
    %v110 = vlaneseq
    %v111 = vshrl.u32 %v110, 7
    %v112 = vsub.s32 %v109, %v111
    %v113 = vrot.slane %v26, %v112
    %v115 = vunpack.c.l.s4 1983009808
    %v116 = vunpack.c.0.s8 %v115
    %v117 = vlaneseq
    %v118 = vshrl.u32 %v117, 7
    %v119 = vsub.s32 %v116, %v118
    %v120 = vrot.slane %v106, %v119
    %v121 = vcombine.high %v113, %v113
    %v122 = vcombine.high %v120, %v120
    %v123 = vcombine.high %v27, %v27
    %v125 = vunpack.c.l.s4 1983009808
    %v126 = vunpack.c.0.s8 %v125
    %v127 = vlaneseq
    %v128 = vshrl.u32 %v127, 7
    %v129 = vsub.s32 %v126, %v128
    %v130 = vrot.slane %v27, %v129
    %v132 = vunpack.c.l.s4 1983009808
    %v133 = vunpack.c.0.s8 %v132
    %v134 = vlaneseq
    %v135 = vshrl.u32 %v134, 7
    %v136 = vsub.s32 %v133, %v135
    %v137 = vrot.slane %v123, %v136
    %v138 = vcombine.high %v130, %v130
    %v139 = vcombine.high %v137, %v137
    %v140 = vcombine.high %v28, %v28
    %v142 = vunpack.c.l.s4 1983009808
    %v143 = vunpack.c.0.s8 %v142
    %v144 = vlaneseq
    %v145 = vshrl.u32 %v144, 7
    %v146 = vsub.s32 %v143, %v145
    %v147 = vrot.slane %v28, %v146
    %v149 = vunpack.c.l.s4 1983009808
    %v150 = vunpack.c.0.s8 %v149
    %v151 = vlaneseq
    %v152 = vshrl.u32 %v151, 7
    %v153 = vsub.s32 %v150, %v152
    %v154 = vrot.slane %v140, %v153
    %v155 = vcombine.high %v147, %v147
    %v156 = vcombine.high %v154, %v154
    %v157 = vcombine.high %v29, %v29
    %v159 = vunpack.c.l.s4 1983009808
    %v160 = vunpack.c.0.s8 %v159
    %v161 = vlaneseq
    %v162 = vshrl.u32 %v161, 7
    %v163 = vsub.s32 %v160, %v162
    %v164 = vrot.slane %v29, %v163
    %v166 = vunpack.c.l.s4 1983009808
    %v167 = vunpack.c.0.s8 %v166
    %v168 = vlaneseq
    %v169 = vshrl.u32 %v168, 7
    %v170 = vsub.s32 %v167, %v169
    %v171 = vrot.slane %v157, %v170
    %v172 = vcombine.high %v164, %v164
    %v173 = vcombine.high %v171, %v171
    %v174 = vcombine.high %v30, %v30
    %v176 = vunpack.c.l.s4 1983009808
    %v177 = vunpack.c.0.s8 %v176
    %v178 = vlaneseq
    %v179 = vshrl.u32 %v178, 7
    %v180 = vsub.s32 %v177, %v179
    %v181 = vrot.slane %v30, %v180
    %v183 = vunpack.c.l.s4 1983009808
    %v184 = vunpack.c.0.s8 %v183
    %v185 = vlaneseq
    %v186 = vshrl.u32 %v185, 7
    %v187 = vsub.s32 %v184, %v186
    %v188 = vrot.slane %v174, %v187
    %v189 = vcombine.high %v181, %v181
    %v190 = vcombine.high %v188, %v188
    %v191 = vcombine.high %v31, %v31
    %v193 = vunpack.c.l.s4 1983009808
    %v194 = vunpack.c.0.s8 %v193
    %v195 = vlaneseq
    %v196 = vshrl.u32 %v195, 7
    %v197 = vsub.s32 %v194, %v196
    %v198 = vrot.slane %v31, %v197
    %v200 = vunpack.c.l.s4 1983009808
    %v201 = vunpack.c.0.s8 %v200
    %v202 = vlaneseq
    %v203 = vshrl.u32 %v202, 7
    %v204 = vsub.s32 %v201, %v203
    %v205 = vrot.slane %v191, %v204
    %v206 = vcombine.high %v198, %v198
    %v207 = vcombine.high %v205, %v205
    %v208 = vcombine.high %v32, %v32
    %v210 = vunpack.c.l.s4 1983009808
    %v211 = vunpack.c.0.s8 %v210
    %v212 = vlaneseq
    %v213 = vshrl.u32 %v212, 7
    %v214 = vsub.s32 %v211, %v213
    %v215 = vrot.slane %v32, %v214
    %v217 = vunpack.c.l.s4 1983009808
    %v218 = vunpack.c.0.s8 %v217
    %v219 = vlaneseq
    %v220 = vshrl.u32 %v219, 7
    %v221 = vsub.s32 %v218, %v220
    %v222 = vrot.slane %v208, %v221
    %v223 = vcombine.high %v215, %v215
    %v224 = vcombine.high %v222, %v222
    %v225 = vcombine.high %v33, %v33
    %v227 = vunpack.c.l.s4 1983009808
    %v228 = vunpack.c.0.s8 %v227
    %v229 = vlaneseq
    %v230 = vshrl.u32 %v229, 7
    %v231 = vsub.s32 %v228, %v230
    %v232 = vrot.slane %v33, %v231
    %v234 = vunpack.c.l.s4 1983009808
    %v235 = vunpack.c.0.s8 %v234
    %v236 = vlaneseq
    %v237 = vshrl.u32 %v236, 7
    %v238 = vsub.s32 %v235, %v237
    %v239 = vrot.slane %v225, %v238
    %v240 = vcombine.high %v232, %v232
    %v241 = vcombine.high %v239, %v239
    %v242 = vcombine.high %v34, %v34
    %v244 = vunpack.c.l.s4 1983009808
    %v245 = vunpack.c.0.s8 %v244
    %v246 = vlaneseq
    %v247 = vshrl.u32 %v246, 7
    %v248 = vsub.s32 %v245, %v247
    %v249 = vrot.slane %v34, %v248
    %v251 = vunpack.c.l.s4 1983009808
    %v252 = vunpack.c.0.s8 %v251
    %v253 = vlaneseq
    %v254 = vshrl.u32 %v253, 7
    %v255 = vsub.s32 %v252, %v254
    %v256 = vrot.slane %v242, %v255
    %v257 = vcombine.high %v249, %v249
    %v258 = vcombine.high %v256, %v256
    %v259 = vcombine.high %v35, %v35
    %v261 = vunpack.c.l.s4 1983009808
    %v262 = vunpack.c.0.s8 %v261
    %v263 = vlaneseq
    %v264 = vshrl.u32 %v263, 7
    %v265 = vsub.s32 %v262, %v264
    %v266 = vrot.slane %v35, %v265
    %v268 = vunpack.c.l.s4 1983009808
    %v269 = vunpack.c.0.s8 %v268
    %v270 = vlaneseq
    %v271 = vshrl.u32 %v270, 7
    %v272 = vsub.s32 %v269, %v271
    %v273 = vrot.slane %v259, %v272
    %v274 = vcombine.high %v266, %v266
    %v275 = vcombine.high %v273, %v273
    %v276 = vcombine.high %v36, %v36
    %v278 = vunpack.c.l.s4 1983009808
    %v279 = vunpack.c.0.s8 %v278
    %v280 = vlaneseq
    %v281 = vshrl.u32 %v280, 7
    %v282 = vsub.s32 %v279, %v281
    %v283 = vrot.slane %v36, %v282
    %v285 = vunpack.c.l.s4 1983009808
    %v286 = vunpack.c.0.s8 %v285
    %v287 = vlaneseq
    %v288 = vshrl.u32 %v287, 7
    %v289 = vsub.s32 %v286, %v288
    %v290 = vrot.slane %v276, %v289
    %v291 = vcombine.high %v283, %v283
    %v292 = vcombine.high %v290, %v290
    %v293 = vcombine.high %v37, %v37
    %v295 = vunpack.c.l.s4 1983009808
    %v296 = vunpack.c.0.s8 %v295
    %v297 = vlaneseq
    %v298 = vshrl.u32 %v297, 7
    %v299 = vsub.s32 %v296, %v298
    %v300 = vrot.slane %v37, %v299
    %v302 = vunpack.c.l.s4 1983009808
    %v303 = vunpack.c.0.s8 %v302
    %v304 = vlaneseq
    %v305 = vshrl.u32 %v304, 7
    %v306 = vsub.s32 %v303, %v305
    %v307 = vrot.slane %v293, %v306
    %v308 = vcombine.high %v300, %v300
    %v309 = vcombine.high %v307, %v307
    %v310 = vcombine.high %v38, %v38
    %v312 = vunpack.c.l.s4 1983009808
    %v313 = vunpack.c.0.s8 %v312
    %v314 = vlaneseq
    %v315 = vshrl.u32 %v314, 7
    %v316 = vsub.s32 %v313, %v315
    %v317 = vrot.slane %v38, %v316
    %v319 = vunpack.c.l.s4 1983009808
    %v320 = vunpack.c.0.s8 %v319
    %v321 = vlaneseq
    %v322 = vshrl.u32 %v321, 7
    %v323 = vsub.s32 %v320, %v322
    %v324 = vrot.slane %v310, %v323
    %v325 = vcombine.high %v317, %v317
    %v326 = vcombine.high %v324, %v324
    %v391 = vrot.slane %v62, 7
    %v392 = vrot.slane %v391, 2
    %v393 = vrot.slane %v70, 7
    %v394 = vrot.slane %v393, 2
    %v395 = vrot.slane %v69, 7
    %v396 = vrot.slane %v395, 2
    %v397 = vrot.slane %v71, 7
    %v398 = vrot.slane %v397, 2
    %v399 = vrot.slane %v79, 7
    %v400 = vrot.slane %v399, 2
    %v401 = vrot.slane %v87, 7
    %v402 = vrot.slane %v401, 2
    %v403 = vrot.slane %v86, 7
    %v404 = vrot.slane %v403, 2
    %v405 = vrot.slane %v88, 7
    %v406 = vrot.slane %v405, 2
    %v407 = vrot.slane %v96, 7
    %v408 = vrot.slane %v407, 2
    %v409 = vrot.slane %v104, 7
    %v410 = vrot.slane %v409, 2
    %v411 = vrot.slane %v103, 7
    %v412 = vrot.slane %v411, 2
    %v413 = vrot.slane %v105, 7
    %v414 = vrot.slane %v413, 2
    %v415 = vrot.slane %v113, 7
    %v416 = vrot.slane %v415, 2
    %v417 = vrot.slane %v121, 7
    %v418 = vrot.slane %v417, 2
    %v419 = vrot.slane %v120, 7
    %v420 = vrot.slane %v419, 2
    %v421 = vrot.slane %v122, 7
    %v422 = vrot.slane %v421, 2
    %v423 = vrot.slane %v130, 7
    %v424 = vrot.slane %v423, 2
    %v425 = vrot.slane %v138, 7
    %v426 = vrot.slane %v425, 2
    %v427 = vrot.slane %v137, 7
    %v428 = vrot.slane %v427, 2
    %v429 = vrot.slane %v139, 7
    %v430 = vrot.slane %v429, 2
    %v431 = vrot.slane %v147, 7
    %v432 = vrot.slane %v431, 2
    %v433 = vrot.slane %v155, 7
    %v434 = vrot.slane %v433, 2
    %v435 = vrot.slane %v154, 7
    %v436 = vrot.slane %v435, 2
    %v437 = vrot.slane %v156, 7
    %v438 = vrot.slane %v437, 2
    %v439 = vrot.slane %v164, 7
    %v440 = vrot.slane %v439, 2
    %v441 = vrot.slane %v172, 7
    %v442 = vrot.slane %v441, 2
    %v443 = vrot.slane %v171, 7
    %v444 = vrot.slane %v443, 2
    %v445 = vrot.slane %v173, 7
    %v446 = vrot.slane %v445, 2
    %v447 = vrot.slane %v181, 7
    %v448 = vrot.slane %v447, 2
    %v449 = vrot.slane %v189, 7
    %v450 = vrot.slane %v449, 2
    %v451 = vrot.slane %v188, 7
    %v452 = vrot.slane %v451, 2
    %v453 = vrot.slane %v190, 7
    %v454 = vrot.slane %v453, 2
    %v455 = vrot.slane %v198, 7
    %v456 = vrot.slane %v455, 2
    %v457 = vrot.slane %v206, 7
    %v458 = vrot.slane %v457, 2
    %v459 = vrot.slane %v205, 7
    %v460 = vrot.slane %v459, 2
    %v461 = vrot.slane %v207, 7
    %v462 = vrot.slane %v461, 2
    %v463 = vrot.slane %v215, 7
    %v464 = vrot.slane %v463, 2
    %v465 = vrot.slane %v223, 7
    %v466 = vrot.slane %v465, 2
    %v467 = vrot.slane %v222, 7
    %v468 = vrot.slane %v467, 2
    %v469 = vrot.slane %v224, 7
    %v470 = vrot.slane %v469, 2
    %v471 = vrot.slane %v232, 7
    %v472 = vrot.slane %v471, 2
    %v473 = vrot.slane %v240, 7
    %v474 = vrot.slane %v473, 2
    %v475 = vrot.slane %v239, 7
    %v476 = vrot.slane %v475, 2
    %v477 = vrot.slane %v241, 7
    %v478 = vrot.slane %v477, 2
    %v479 = vrot.slane %v249, 7
    %v480 = vrot.slane %v479, 2
    %v481 = vrot.slane %v257, 7
    %v482 = vrot.slane %v481, 2
    %v483 = vrot.slane %v256, 7
    %v484 = vrot.slane %v483, 2
    %v485 = vrot.slane %v258, 7
    %v486 = vrot.slane %v485, 2
    %v487 = vrot.slane %v266, 7
    %v488 = vrot.slane %v487, 2
    %v489 = vrot.slane %v274, 7
    %v490 = vrot.slane %v489, 2
    %v491 = vrot.slane %v273, 7
    %v492 = vrot.slane %v491, 2
    %v493 = vrot.slane %v275, 7
    %v494 = vrot.slane %v493, 2
    %v495 = vrot.slane %v283, 7
    %v496 = vrot.slane %v495, 2
    %v497 = vrot.slane %v291, 7
    %v498 = vrot.slane %v497, 2
    %v499 = vrot.slane %v290, 7
    %v500 = vrot.slane %v499, 2
    %v501 = vrot.slane %v292, 7
    %v502 = vrot.slane %v501, 2
    %v503 = vrot.slane %v300, 7
    %v504 = vrot.slane %v503, 2
    %v505 = vrot.slane %v308, 7
    %v506 = vrot.slane %v505, 2
    %v507 = vrot.slane %v307, 7
    %v508 = vrot.slane %v507, 2
    %v509 = vrot.slane %v309, 7
    %v510 = vrot.slane %v509, 2
    %v511 = vrot.slane %v317, 7
    %v512 = vrot.slane %v511, 2
    %v513 = vrot.slane %v325, 7
    %v514 = vrot.slane %v513, 2
    %v515 = vrot.slane %v324, 7
    %v516 = vrot.slane %v515, 2
    %v517 = vrot.slane %v326, 7
    %v518 = vrot.slane %v517, 2
    %v583 = vmax.f32 %v62, %v392
    %v584 = vmax.f32 %v70, %v394
    %v585 = vmax.f32 %v69, %v396
    %v586 = vmax.f32 %v71, %v398
    %v587 = vmax.f32 %v79, %v400
    %v588 = vmax.f32 %v87, %v402
    %v589 = vmax.f32 %v86, %v404
    %v590 = vmax.f32 %v88, %v406
    %v591 = vmax.f32 %v96, %v408
    %v592 = vmax.f32 %v104, %v410
    %v593 = vmax.f32 %v103, %v412
    %v594 = vmax.f32 %v105, %v414
    %v595 = vmax.f32 %v113, %v416
    %v596 = vmax.f32 %v121, %v418
    %v597 = vmax.f32 %v120, %v420
    %v598 = vmax.f32 %v122, %v422
    %v599 = vmax.f32 %v130, %v424
    %v600 = vmax.f32 %v138, %v426
    %v601 = vmax.f32 %v137, %v428
    %v602 = vmax.f32 %v139, %v430
    %v603 = vmax.f32 %v147, %v432
    %v604 = vmax.f32 %v155, %v434
    %v605 = vmax.f32 %v154, %v436
    %v606 = vmax.f32 %v156, %v438
    %v607 = vmax.f32 %v164, %v440
    %v608 = vmax.f32 %v172, %v442
    %v609 = vmax.f32 %v171, %v444
    %v610 = vmax.f32 %v173, %v446
    %v611 = vmax.f32 %v181, %v448
    %v612 = vmax.f32 %v189, %v450
    %v613 = vmax.f32 %v188, %v452
    %v614 = vmax.f32 %v190, %v454
    %v615 = vmax.f32 %v198, %v456
    %v616 = vmax.f32 %v206, %v458
    %v617 = vmax.f32 %v205, %v460
    %v618 = vmax.f32 %v207, %v462
    %v619 = vmax.f32 %v215, %v464
    %v620 = vmax.f32 %v223, %v466
    %v621 = vmax.f32 %v222, %v468
    %v622 = vmax.f32 %v224, %v470
    %v623 = vmax.f32 %v232, %v472
    %v624 = vmax.f32 %v240, %v474
    %v625 = vmax.f32 %v239, %v476
    %v626 = vmax.f32 %v241, %v478
    %v627 = vmax.f32 %v249, %v480
    %v628 = vmax.f32 %v257, %v482
    %v629 = vmax.f32 %v256, %v484
    %v630 = vmax.f32 %v258, %v486
    %v631 = vmax.f32 %v266, %v488
    %v632 = vmax.f32 %v274, %v490
    %v633 = vmax.f32 %v273, %v492
    %v634 = vmax.f32 %v275, %v494
    %v635 = vmax.f32 %v283, %v496
    %v636 = vmax.f32 %v291, %v498
    %v637 = vmax.f32 %v290, %v500
    %v638 = vmax.f32 %v292, %v502
    %v639 = vmax.f32 %v300, %v504
    %v640 = vmax.f32 %v308, %v506
    %v641 = vmax.f32 %v307, %v508
    %v642 = vmax.f32 %v309, %v510
    %v643 = vmax.f32 %v317, %v512
    %v644 = vmax.f32 %v325, %v514
    %v645 = vmax.f32 %v324, %v516
    %v646 = vmax.f32 %v326, %v518
    %711 = vrot.lane.b32.xlu0 %v583, 126
    %v712 = vpop.permute.xlu0 %711
    %713 = vrot.lane.b32.xlu0 %v584, 126
    %v714 = vpop.permute.xlu0 %713
    %715 = vrot.lane.b32.xlu0 %v585, 126
    %v716 = vpop.permute.xlu0 %715
    %717 = vrot.lane.b32.xlu0 %v586, 126
    %v718 = vpop.permute.xlu0 %717
    %719 = vrot.lane.b32.xlu0 %v587, 126
    %v720 = vpop.permute.xlu0 %719
    %721 = vrot.lane.b32.xlu0 %v588, 126
    %v722 = vpop.permute.xlu0 %721
    %723 = vrot.lane.b32.xlu0 %v589, 126
    %v724 = vpop.permute.xlu0 %723
    %725 = vrot.lane.b32.xlu0 %v590, 126
    %v726 = vpop.permute.xlu0 %725
    %727 = vrot.lane.b32.xlu0 %v591, 126
    %v728 = vpop.permute.xlu0 %727
    %729 = vrot.lane.b32.xlu0 %v592, 126
    %v730 = vpop.permute.xlu0 %729
    %731 = vrot.lane.b32.xlu0 %v593, 126
    %v732 = vpop.permute.xlu0 %731
    %733 = vrot.lane.b32.xlu0 %v594, 126
    %v734 = vpop.permute.xlu0 %733
    %735 = vrot.lane.b32.xlu0 %v595, 126
    %v736 = vpop.permute.xlu0 %735
    %737 = vrot.lane.b32.xlu0 %v596, 126
    %v738 = vpop.permute.xlu0 %737
    %739 = vrot.lane.b32.xlu0 %v597, 126
    %v740 = vpop.permute.xlu0 %739
    %741 = vrot.lane.b32.xlu0 %v598, 126
    %v742 = vpop.permute.xlu0 %741
    %743 = vrot.lane.b32.xlu0 %v599, 126
    %v744 = vpop.permute.xlu0 %743
    %745 = vrot.lane.b32.xlu0 %v600, 126
    %v746 = vpop.permute.xlu0 %745
    %747 = vrot.lane.b32.xlu0 %v601, 126
    %v748 = vpop.permute.xlu0 %747
    %749 = vrot.lane.b32.xlu0 %v602, 126
    %v750 = vpop.permute.xlu0 %749
    %751 = vrot.lane.b32.xlu0 %v603, 126
    %v752 = vpop.permute.xlu0 %751
    %753 = vrot.lane.b32.xlu0 %v604, 126
    %v754 = vpop.permute.xlu0 %753
    %755 = vrot.lane.b32.xlu0 %v605, 126
    %v756 = vpop.permute.xlu0 %755
    %757 = vrot.lane.b32.xlu0 %v606, 126
    %v758 = vpop.permute.xlu0 %757
    %759 = vrot.lane.b32.xlu0 %v607, 126
    %v760 = vpop.permute.xlu0 %759
    %761 = vrot.lane.b32.xlu0 %v608, 126
    %v762 = vpop.permute.xlu0 %761
    %763 = vrot.lane.b32.xlu0 %v609, 126
    %v764 = vpop.permute.xlu0 %763
    %765 = vrot.lane.b32.xlu0 %v610, 126
    %v766 = vpop.permute.xlu0 %765
    %767 = vrot.lane.b32.xlu0 %v611, 126
    %v768 = vpop.permute.xlu0 %767
    %769 = vrot.lane.b32.xlu0 %v612, 126
    %v770 = vpop.permute.xlu0 %769
    %771 = vrot.lane.b32.xlu0 %v613, 126
    %v772 = vpop.permute.xlu0 %771
    %773 = vrot.lane.b32.xlu0 %v614, 126
    %v774 = vpop.permute.xlu0 %773
    %775 = vrot.lane.b32.xlu0 %v615, 126
    %v776 = vpop.permute.xlu0 %775
    %777 = vrot.lane.b32.xlu0 %v616, 126
    %v778 = vpop.permute.xlu0 %777
    %779 = vrot.lane.b32.xlu0 %v617, 126
    %v780 = vpop.permute.xlu0 %779
    %781 = vrot.lane.b32.xlu0 %v618, 126
    %v782 = vpop.permute.xlu0 %781
    %783 = vrot.lane.b32.xlu0 %v619, 126
    %v784 = vpop.permute.xlu0 %783
    %785 = vrot.lane.b32.xlu0 %v620, 126
    %v786 = vpop.permute.xlu0 %785
    %787 = vrot.lane.b32.xlu0 %v621, 126
    %v788 = vpop.permute.xlu0 %787
    %789 = vrot.lane.b32.xlu0 %v622, 126
    %v790 = vpop.permute.xlu0 %789
    %791 = vrot.lane.b32.xlu0 %v623, 126
    %v792 = vpop.permute.xlu0 %791
    %793 = vrot.lane.b32.xlu0 %v624, 126
    %v794 = vpop.permute.xlu0 %793
    %795 = vrot.lane.b32.xlu0 %v625, 126
    %v796 = vpop.permute.xlu0 %795
    %797 = vrot.lane.b32.xlu0 %v626, 126
    %v798 = vpop.permute.xlu0 %797
    %799 = vrot.lane.b32.xlu0 %v627, 126
    %v800 = vpop.permute.xlu0 %799
    %801 = vrot.lane.b32.xlu0 %v628, 126
    %v802 = vpop.permute.xlu0 %801
    %803 = vrot.lane.b32.xlu0 %v629, 126
    %v804 = vpop.permute.xlu0 %803
    %805 = vrot.lane.b32.xlu0 %v630, 126
    %v806 = vpop.permute.xlu0 %805
    %807 = vrot.lane.b32.xlu0 %v631, 126
    %v808 = vpop.permute.xlu0 %807
    %809 = vrot.lane.b32.xlu0 %v632, 126
    %v810 = vpop.permute.xlu0 %809
    %811 = vrot.lane.b32.xlu0 %v633, 126
    %v812 = vpop.permute.xlu0 %811
    %813 = vrot.lane.b32.xlu0 %v634, 126
    %v814 = vpop.permute.xlu0 %813
    %815 = vrot.lane.b32.xlu0 %v635, 126
    %v816 = vpop.permute.xlu0 %815
    %817 = vrot.lane.b32.xlu0 %v636, 126
    %v818 = vpop.permute.xlu0 %817
    %819 = vrot.lane.b32.xlu0 %v637, 126
    %v820 = vpop.permute.xlu0 %819
    %821 = vrot.lane.b32.xlu0 %v638, 126
    %v822 = vpop.permute.xlu0 %821
    %823 = vrot.lane.b32.xlu0 %v639, 126
    %v824 = vpop.permute.xlu0 %823
    %825 = vrot.lane.b32.xlu0 %v640, 126
    %v826 = vpop.permute.xlu0 %825
    %827 = vrot.lane.b32.xlu0 %v641, 126
    %v828 = vpop.permute.xlu0 %827
    %829 = vrot.lane.b32.xlu0 %v642, 126
    %v830 = vpop.permute.xlu0 %829
    %831 = vrot.lane.b32.xlu0 %v643, 126
    %v832 = vpop.permute.xlu0 %831
    %833 = vrot.lane.b32.xlu0 %v644, 126
    %v834 = vpop.permute.xlu0 %833
    %835 = vrot.lane.b32.xlu0 %v645, 126
    %v836 = vpop.permute.xlu0 %835
    %837 = vrot.lane.b32.xlu0 %v646, 126
    %v838 = vpop.permute.xlu0 %837
    %839 = vrot.lane.b32.xlu0 %v583, 124
    %v840 = vpop.permute.xlu0 %839
    %841 = vrot.lane.b32.xlu0 %v584, 124
    %v842 = vpop.permute.xlu0 %841
    %843 = vrot.lane.b32.xlu0 %v585, 124
    %v844 = vpop.permute.xlu0 %843
    %845 = vrot.lane.b32.xlu0 %v586, 124
    %v846 = vpop.permute.xlu0 %845
    %847 = vrot.lane.b32.xlu0 %v587, 124
    %v848 = vpop.permute.xlu0 %847
    %849 = vrot.lane.b32.xlu0 %v588, 124
    %v850 = vpop.permute.xlu0 %849
    %851 = vrot.lane.b32.xlu0 %v589, 124
    %v852 = vpop.permute.xlu0 %851
    %853 = vrot.lane.b32.xlu0 %v590, 124
    %v854 = vpop.permute.xlu0 %853
    %855 = vrot.lane.b32.xlu0 %v591, 124
    %v856 = vpop.permute.xlu0 %855
    %857 = vrot.lane.b32.xlu0 %v592, 124
    %v858 = vpop.permute.xlu0 %857
    %859 = vrot.lane.b32.xlu0 %v593, 124
    %v860 = vpop.permute.xlu0 %859
    %861 = vrot.lane.b32.xlu0 %v594, 124
    %v862 = vpop.permute.xlu0 %861
    %863 = vrot.lane.b32.xlu0 %v595, 124
    %v864 = vpop.permute.xlu0 %863
    %865 = vrot.lane.b32.xlu0 %v596, 124
    %v866 = vpop.permute.xlu0 %865
    %867 = vrot.lane.b32.xlu0 %v597, 124
    %v868 = vpop.permute.xlu0 %867
    %869 = vrot.lane.b32.xlu0 %v598, 124
    %v870 = vpop.permute.xlu0 %869
    %871 = vrot.lane.b32.xlu0 %v599, 124
    %v872 = vpop.permute.xlu0 %871
    %873 = vrot.lane.b32.xlu0 %v600, 124
    %v874 = vpop.permute.xlu0 %873
    %875 = vrot.lane.b32.xlu0 %v601, 124
    %v876 = vpop.permute.xlu0 %875
    %877 = vrot.lane.b32.xlu0 %v602, 124
    %v878 = vpop.permute.xlu0 %877
    %879 = vrot.lane.b32.xlu0 %v603, 124
    %v880 = vpop.permute.xlu0 %879
    %881 = vrot.lane.b32.xlu0 %v604, 124
    %v882 = vpop.permute.xlu0 %881
    %883 = vrot.lane.b32.xlu0 %v605, 124
    %v884 = vpop.permute.xlu0 %883
    %885 = vrot.lane.b32.xlu0 %v606, 124
    %v886 = vpop.permute.xlu0 %885
    %887 = vrot.lane.b32.xlu0 %v607, 124
    %v888 = vpop.permute.xlu0 %887
    %889 = vrot.lane.b32.xlu0 %v608, 124
    %v890 = vpop.permute.xlu0 %889
    %891 = vrot.lane.b32.xlu0 %v609, 124
    %v892 = vpop.permute.xlu0 %891
    %893 = vrot.lane.b32.xlu0 %v610, 124
    %v894 = vpop.permute.xlu0 %893
    %895 = vrot.lane.b32.xlu0 %v611, 124
    %v896 = vpop.permute.xlu0 %895
    %897 = vrot.lane.b32.xlu0 %v612, 124
    %v898 = vpop.permute.xlu0 %897
    %899 = vrot.lane.b32.xlu0 %v613, 124
    %v900 = vpop.permute.xlu0 %899
    %901 = vrot.lane.b32.xlu0 %v614, 124
    %v902 = vpop.permute.xlu0 %901
    %903 = vrot.lane.b32.xlu0 %v615, 124
    %v904 = vpop.permute.xlu0 %903
    %905 = vrot.lane.b32.xlu0 %v616, 124
    %v906 = vpop.permute.xlu0 %905
    %907 = vrot.lane.b32.xlu0 %v617, 124
    %v908 = vpop.permute.xlu0 %907
    %909 = vrot.lane.b32.xlu0 %v618, 124
    %v910 = vpop.permute.xlu0 %909
    %911 = vrot.lane.b32.xlu0 %v619, 124
    %v912 = vpop.permute.xlu0 %911
    %913 = vrot.lane.b32.xlu0 %v620, 124
    %v914 = vpop.permute.xlu0 %913
    %915 = vrot.lane.b32.xlu0 %v621, 124
    %v916 = vpop.permute.xlu0 %915
    %917 = vrot.lane.b32.xlu0 %v622, 124
    %v918 = vpop.permute.xlu0 %917
    %919 = vrot.lane.b32.xlu0 %v623, 124
    %v920 = vpop.permute.xlu0 %919
    %921 = vrot.lane.b32.xlu0 %v624, 124
    %v922 = vpop.permute.xlu0 %921
    %923 = vrot.lane.b32.xlu0 %v625, 124
    %v924 = vpop.permute.xlu0 %923
    %925 = vrot.lane.b32.xlu0 %v626, 124
    %v926 = vpop.permute.xlu0 %925
    %927 = vrot.lane.b32.xlu0 %v627, 124
    %v928 = vpop.permute.xlu0 %927
    %929 = vrot.lane.b32.xlu0 %v628, 124
    %v930 = vpop.permute.xlu0 %929
    %931 = vrot.lane.b32.xlu0 %v629, 124
    %v932 = vpop.permute.xlu0 %931
    %933 = vrot.lane.b32.xlu0 %v630, 124
    %v934 = vpop.permute.xlu0 %933
    %935 = vrot.lane.b32.xlu0 %v631, 124
    %v936 = vpop.permute.xlu0 %935
    %937 = vrot.lane.b32.xlu0 %v632, 124
    %v938 = vpop.permute.xlu0 %937
    %939 = vrot.lane.b32.xlu0 %v633, 124
    %v940 = vpop.permute.xlu0 %939
    %941 = vrot.lane.b32.xlu0 %v634, 124
    %v942 = vpop.permute.xlu0 %941
    %943 = vrot.lane.b32.xlu0 %v635, 124
    %v944 = vpop.permute.xlu0 %943
    %945 = vrot.lane.b32.xlu0 %v636, 124
    %v946 = vpop.permute.xlu0 %945
    %947 = vrot.lane.b32.xlu0 %v637, 124
    %v948 = vpop.permute.xlu0 %947
    %949 = vrot.lane.b32.xlu0 %v638, 124
    %v950 = vpop.permute.xlu0 %949
    %951 = vrot.lane.b32.xlu0 %v639, 124
    %v952 = vpop.permute.xlu0 %951
    %953 = vrot.lane.b32.xlu0 %v640, 124
    %v954 = vpop.permute.xlu0 %953
    %955 = vrot.lane.b32.xlu0 %v641, 124
    %v956 = vpop.permute.xlu0 %955
    %957 = vrot.lane.b32.xlu0 %v642, 124
    %v958 = vpop.permute.xlu0 %957
    %959 = vrot.lane.b32.xlu0 %v643, 124
    %v960 = vpop.permute.xlu0 %959
    %961 = vrot.lane.b32.xlu0 %v644, 124
    %v962 = vpop.permute.xlu0 %961
    %963 = vrot.lane.b32.xlu0 %v645, 124
    %v964 = vpop.permute.xlu0 %963
    %965 = vrot.lane.b32.xlu0 %v646, 124
    %v966 = vpop.permute.xlu0 %965
    %967 = vrot.lane.b32.xlu0 %v583, 122
    %v968 = vpop.permute.xlu0 %967
    %969 = vrot.lane.b32.xlu0 %v584, 122
    %v970 = vpop.permute.xlu0 %969
    %971 = vrot.lane.b32.xlu0 %v585, 122
    %v972 = vpop.permute.xlu0 %971
    %973 = vrot.lane.b32.xlu0 %v586, 122
    %v974 = vpop.permute.xlu0 %973
    %975 = vrot.lane.b32.xlu0 %v587, 122
    %v976 = vpop.permute.xlu0 %975
    %977 = vrot.lane.b32.xlu0 %v588, 122
    %v978 = vpop.permute.xlu0 %977
    %979 = vrot.lane.b32.xlu0 %v589, 122
    %v980 = vpop.permute.xlu0 %979
    %981 = vrot.lane.b32.xlu0 %v590, 122
    %v982 = vpop.permute.xlu0 %981
    %983 = vrot.lane.b32.xlu0 %v591, 122
    %v984 = vpop.permute.xlu0 %983
    %985 = vrot.lane.b32.xlu0 %v592, 122
    %v986 = vpop.permute.xlu0 %985
    %987 = vrot.lane.b32.xlu0 %v593, 122
    %v988 = vpop.permute.xlu0 %987
    %989 = vrot.lane.b32.xlu0 %v594, 122
    %v990 = vpop.permute.xlu0 %989
    %991 = vrot.lane.b32.xlu0 %v595, 122
    %v992 = vpop.permute.xlu0 %991
    %993 = vrot.lane.b32.xlu0 %v596, 122
    %v994 = vpop.permute.xlu0 %993
    %995 = vrot.lane.b32.xlu0 %v597, 122
    %v996 = vpop.permute.xlu0 %995
    %997 = vrot.lane.b32.xlu0 %v598, 122
    %v998 = vpop.permute.xlu0 %997
    %999 = vrot.lane.b32.xlu0 %v599, 122
    %v1000 = vpop.permute.xlu0 %999
    %1001 = vrot.lane.b32.xlu0 %v600, 122
    %v1002 = vpop.permute.xlu0 %1001
    %1003 = vrot.lane.b32.xlu0 %v601, 122
    %v1004 = vpop.permute.xlu0 %1003
    %1005 = vrot.lane.b32.xlu0 %v602, 122
    %v1006 = vpop.permute.xlu0 %1005
    %1007 = vrot.lane.b32.xlu0 %v603, 122
    %v1008 = vpop.permute.xlu0 %1007
    %1009 = vrot.lane.b32.xlu0 %v604, 122
    %v1010 = vpop.permute.xlu0 %1009
    %1011 = vrot.lane.b32.xlu0 %v605, 122
    %v1012 = vpop.permute.xlu0 %1011
    %1013 = vrot.lane.b32.xlu0 %v606, 122
    %v1014 = vpop.permute.xlu0 %1013
    %1015 = vrot.lane.b32.xlu0 %v607, 122
    %v1016 = vpop.permute.xlu0 %1015
    %1017 = vrot.lane.b32.xlu0 %v608, 122
    %v1018 = vpop.permute.xlu0 %1017
    %1019 = vrot.lane.b32.xlu0 %v609, 122
    %v1020 = vpop.permute.xlu0 %1019
    %1021 = vrot.lane.b32.xlu0 %v610, 122
    %v1022 = vpop.permute.xlu0 %1021
    %1023 = vrot.lane.b32.xlu0 %v611, 122
    %v1024 = vpop.permute.xlu0 %1023
    %1025 = vrot.lane.b32.xlu0 %v612, 122
    %v1026 = vpop.permute.xlu0 %1025
    %1027 = vrot.lane.b32.xlu0 %v613, 122
    %v1028 = vpop.permute.xlu0 %1027
    %1029 = vrot.lane.b32.xlu0 %v614, 122
    %v1030 = vpop.permute.xlu0 %1029
    %1031 = vrot.lane.b32.xlu0 %v615, 122
    %v1032 = vpop.permute.xlu0 %1031
    %1033 = vrot.lane.b32.xlu0 %v616, 122
    %v1034 = vpop.permute.xlu0 %1033
    %1035 = vrot.lane.b32.xlu0 %v617, 122
    %v1036 = vpop.permute.xlu0 %1035
    %1037 = vrot.lane.b32.xlu0 %v618, 122
    %v1038 = vpop.permute.xlu0 %1037
    %1039 = vrot.lane.b32.xlu0 %v619, 122
    %v1040 = vpop.permute.xlu0 %1039
    %1041 = vrot.lane.b32.xlu0 %v620, 122
    %v1042 = vpop.permute.xlu0 %1041
    %1043 = vrot.lane.b32.xlu0 %v621, 122
    %v1044 = vpop.permute.xlu0 %1043
    %1045 = vrot.lane.b32.xlu0 %v622, 122
    %v1046 = vpop.permute.xlu0 %1045
    %1047 = vrot.lane.b32.xlu0 %v623, 122
    %v1048 = vpop.permute.xlu0 %1047
    %1049 = vrot.lane.b32.xlu0 %v624, 122
    %v1050 = vpop.permute.xlu0 %1049
    %1051 = vrot.lane.b32.xlu0 %v625, 122
    %v1052 = vpop.permute.xlu0 %1051
    %1053 = vrot.lane.b32.xlu0 %v626, 122
    %v1054 = vpop.permute.xlu0 %1053
    %1055 = vrot.lane.b32.xlu0 %v627, 122
    %v1056 = vpop.permute.xlu0 %1055
    %1057 = vrot.lane.b32.xlu0 %v628, 122
    %v1058 = vpop.permute.xlu0 %1057
    %1059 = vrot.lane.b32.xlu0 %v629, 122
    %v1060 = vpop.permute.xlu0 %1059
    %1061 = vrot.lane.b32.xlu0 %v630, 122
    %v1062 = vpop.permute.xlu0 %1061
    %1063 = vrot.lane.b32.xlu0 %v631, 122
    %v1064 = vpop.permute.xlu0 %1063
    %1065 = vrot.lane.b32.xlu0 %v632, 122
    %v1066 = vpop.permute.xlu0 %1065
    %1067 = vrot.lane.b32.xlu0 %v633, 122
    %v1068 = vpop.permute.xlu0 %1067
    %1069 = vrot.lane.b32.xlu0 %v634, 122
    %v1070 = vpop.permute.xlu0 %1069
    %1071 = vrot.lane.b32.xlu0 %v635, 122
    %v1072 = vpop.permute.xlu0 %1071
    %1073 = vrot.lane.b32.xlu0 %v636, 122
    %v1074 = vpop.permute.xlu0 %1073
    %1075 = vrot.lane.b32.xlu0 %v637, 122
    %v1076 = vpop.permute.xlu0 %1075
    %1077 = vrot.lane.b32.xlu0 %v638, 122
    %v1078 = vpop.permute.xlu0 %1077
    %1079 = vrot.lane.b32.xlu0 %v639, 122
    %v1080 = vpop.permute.xlu0 %1079
    %1081 = vrot.lane.b32.xlu0 %v640, 122
    %v1082 = vpop.permute.xlu0 %1081
    %1083 = vrot.lane.b32.xlu0 %v641, 122
    %v1084 = vpop.permute.xlu0 %1083
    %1085 = vrot.lane.b32.xlu0 %v642, 122
    %v1086 = vpop.permute.xlu0 %1085
    %1087 = vrot.lane.b32.xlu0 %v643, 122
    %v1088 = vpop.permute.xlu0 %1087
    %1089 = vrot.lane.b32.xlu0 %v644, 122
    %v1090 = vpop.permute.xlu0 %1089
    %1091 = vrot.lane.b32.xlu0 %v645, 122
    %v1092 = vpop.permute.xlu0 %1091
    %1093 = vrot.lane.b32.xlu0 %v646, 122
    %v1094 = vpop.permute.xlu0 %1093
    %1095 = vrot.lane.b32.xlu0 %v583, 120
    %v1096 = vpop.permute.xlu0 %1095
    %1097 = vrot.lane.b32.xlu0 %v584, 120
    %v1098 = vpop.permute.xlu0 %1097
    %1099 = vrot.lane.b32.xlu0 %v585, 120
    %v1100 = vpop.permute.xlu0 %1099
    %1101 = vrot.lane.b32.xlu0 %v586, 120
    %v1102 = vpop.permute.xlu0 %1101
    %1103 = vrot.lane.b32.xlu0 %v587, 120
    %v1104 = vpop.permute.xlu0 %1103
    %1105 = vrot.lane.b32.xlu0 %v588, 120
    %v1106 = vpop.permute.xlu0 %1105
    %1107 = vrot.lane.b32.xlu0 %v589, 120
    %v1108 = vpop.permute.xlu0 %1107
    %1109 = vrot.lane.b32.xlu0 %v590, 120
    %v1110 = vpop.permute.xlu0 %1109
    %1111 = vrot.lane.b32.xlu0 %v591, 120
    %v1112 = vpop.permute.xlu0 %1111
    %1113 = vrot.lane.b32.xlu0 %v592, 120
    %v1114 = vpop.permute.xlu0 %1113
    %1115 = vrot.lane.b32.xlu0 %v593, 120
    %v1116 = vpop.permute.xlu0 %1115
    %1117 = vrot.lane.b32.xlu0 %v594, 120
    %v1118 = vpop.permute.xlu0 %1117
    %1119 = vrot.lane.b32.xlu0 %v595, 120
    %v1120 = vpop.permute.xlu0 %1119
    %1121 = vrot.lane.b32.xlu0 %v596, 120
    %v1122 = vpop.permute.xlu0 %1121
    %1123 = vrot.lane.b32.xlu0 %v597, 120
    %v1124 = vpop.permute.xlu0 %1123
    %1125 = vrot.lane.b32.xlu0 %v598, 120
    %v1126 = vpop.permute.xlu0 %1125
    %1127 = vrot.lane.b32.xlu0 %v599, 120
    %v1128 = vpop.permute.xlu0 %1127
    %1129 = vrot.lane.b32.xlu0 %v600, 120
    %v1130 = vpop.permute.xlu0 %1129
    %1131 = vrot.lane.b32.xlu0 %v601, 120
    %v1132 = vpop.permute.xlu0 %1131
    %1133 = vrot.lane.b32.xlu0 %v602, 120
    %v1134 = vpop.permute.xlu0 %1133
    %1135 = vrot.lane.b32.xlu0 %v603, 120
    %v1136 = vpop.permute.xlu0 %1135
    %1137 = vrot.lane.b32.xlu0 %v604, 120
    %v1138 = vpop.permute.xlu0 %1137
    %1139 = vrot.lane.b32.xlu0 %v605, 120
    %v1140 = vpop.permute.xlu0 %1139
    %1141 = vrot.lane.b32.xlu0 %v606, 120
    %v1142 = vpop.permute.xlu0 %1141
    %1143 = vrot.lane.b32.xlu0 %v607, 120
    %v1144 = vpop.permute.xlu0 %1143
    %1145 = vrot.lane.b32.xlu0 %v608, 120
    %v1146 = vpop.permute.xlu0 %1145
    %1147 = vrot.lane.b32.xlu0 %v609, 120
    %v1148 = vpop.permute.xlu0 %1147
    %1149 = vrot.lane.b32.xlu0 %v610, 120
    %v1150 = vpop.permute.xlu0 %1149
    %1151 = vrot.lane.b32.xlu0 %v611, 120
    %v1152 = vpop.permute.xlu0 %1151
    %1153 = vrot.lane.b32.xlu0 %v612, 120
    %v1154 = vpop.permute.xlu0 %1153
    %1155 = vrot.lane.b32.xlu0 %v613, 120
    %v1156 = vpop.permute.xlu0 %1155
    %1157 = vrot.lane.b32.xlu0 %v614, 120
    %v1158 = vpop.permute.xlu0 %1157
    %1159 = vrot.lane.b32.xlu0 %v615, 120
    %v1160 = vpop.permute.xlu0 %1159
    %1161 = vrot.lane.b32.xlu0 %v616, 120
    %v1162 = vpop.permute.xlu0 %1161
    %1163 = vrot.lane.b32.xlu0 %v617, 120
    %v1164 = vpop.permute.xlu0 %1163
    %1165 = vrot.lane.b32.xlu0 %v618, 120
    %v1166 = vpop.permute.xlu0 %1165
    %1167 = vrot.lane.b32.xlu0 %v619, 120
    %v1168 = vpop.permute.xlu0 %1167
    %1169 = vrot.lane.b32.xlu0 %v620, 120
    %v1170 = vpop.permute.xlu0 %1169
    %1171 = vrot.lane.b32.xlu0 %v621, 120
    %v1172 = vpop.permute.xlu0 %1171
    %1173 = vrot.lane.b32.xlu0 %v622, 120
    %v1174 = vpop.permute.xlu0 %1173
    %1175 = vrot.lane.b32.xlu0 %v623, 120
    %v1176 = vpop.permute.xlu0 %1175
    %1177 = vrot.lane.b32.xlu0 %v624, 120
    %v1178 = vpop.permute.xlu0 %1177
    %1179 = vrot.lane.b32.xlu0 %v625, 120
    %v1180 = vpop.permute.xlu0 %1179
    %1181 = vrot.lane.b32.xlu0 %v626, 120
    %v1182 = vpop.permute.xlu0 %1181
    %1183 = vrot.lane.b32.xlu0 %v627, 120
    %v1184 = vpop.permute.xlu0 %1183
    %1185 = vrot.lane.b32.xlu0 %v628, 120
    %v1186 = vpop.permute.xlu0 %1185
    %1187 = vrot.lane.b32.xlu0 %v629, 120
    %v1188 = vpop.permute.xlu0 %1187
    %1189 = vrot.lane.b32.xlu0 %v630, 120
    %v1190 = vpop.permute.xlu0 %1189
    %1191 = vrot.lane.b32.xlu0 %v631, 120
    %v1192 = vpop.permute.xlu0 %1191
    %1193 = vrot.lane.b32.xlu0 %v632, 120
    %v1194 = vpop.permute.xlu0 %1193
    %1195 = vrot.lane.b32.xlu0 %v633, 120
    %v1196 = vpop.permute.xlu0 %1195
    %1197 = vrot.lane.b32.xlu0 %v634, 120
    %v1198 = vpop.permute.xlu0 %1197
    %1199 = vrot.lane.b32.xlu0 %v635, 120
    %v1200 = vpop.permute.xlu0 %1199
    %1201 = vrot.lane.b32.xlu0 %v636, 120
    %v1202 = vpop.permute.xlu0 %1201
    %1203 = vrot.lane.b32.xlu0 %v637, 120
    %v1204 = vpop.permute.xlu0 %1203
    %1205 = vrot.lane.b32.xlu0 %v638, 120
    %v1206 = vpop.permute.xlu0 %1205
    %1207 = vrot.lane.b32.xlu0 %v639, 120
    %v1208 = vpop.permute.xlu0 %1207
    %1209 = vrot.lane.b32.xlu0 %v640, 120
    %v1210 = vpop.permute.xlu0 %1209
    %1211 = vrot.lane.b32.xlu0 %v641, 120
    %v1212 = vpop.permute.xlu0 %1211
    %1213 = vrot.lane.b32.xlu0 %v642, 120
    %v1214 = vpop.permute.xlu0 %1213
    %1215 = vrot.lane.b32.xlu0 %v643, 120
    %v1216 = vpop.permute.xlu0 %1215
    %1217 = vrot.lane.b32.xlu0 %v644, 120
    %v1218 = vpop.permute.xlu0 %1217
    %1219 = vrot.lane.b32.xlu0 %v645, 120
    %v1220 = vpop.permute.xlu0 %1219
    %1221 = vrot.lane.b32.xlu0 %v646, 120
    %v1222 = vpop.permute.xlu0 %1221
    %1223 = vrot.lane.b32.xlu0 %v583, 118
    %v1224 = vpop.permute.xlu0 %1223
    %1225 = vrot.lane.b32.xlu0 %v584, 118
    %v1226 = vpop.permute.xlu0 %1225
    %1227 = vrot.lane.b32.xlu0 %v585, 118
    %v1228 = vpop.permute.xlu0 %1227
    %1229 = vrot.lane.b32.xlu0 %v586, 118
    %v1230 = vpop.permute.xlu0 %1229
    %1231 = vrot.lane.b32.xlu0 %v587, 118
    %v1232 = vpop.permute.xlu0 %1231
    %1233 = vrot.lane.b32.xlu0 %v588, 118
    %v1234 = vpop.permute.xlu0 %1233
    %1235 = vrot.lane.b32.xlu0 %v589, 118
    %v1236 = vpop.permute.xlu0 %1235
    %1237 = vrot.lane.b32.xlu0 %v590, 118
    %v1238 = vpop.permute.xlu0 %1237
    %1239 = vrot.lane.b32.xlu0 %v591, 118
    %v1240 = vpop.permute.xlu0 %1239
    %1241 = vrot.lane.b32.xlu0 %v592, 118
    %v1242 = vpop.permute.xlu0 %1241
    %1243 = vrot.lane.b32.xlu0 %v593, 118
    %v1244 = vpop.permute.xlu0 %1243
    %1245 = vrot.lane.b32.xlu0 %v594, 118
    %v1246 = vpop.permute.xlu0 %1245
    %1247 = vrot.lane.b32.xlu0 %v595, 118
    %v1248 = vpop.permute.xlu0 %1247
    %1249 = vrot.lane.b32.xlu0 %v596, 118
    %v1250 = vpop.permute.xlu0 %1249
    %1251 = vrot.lane.b32.xlu0 %v597, 118
    %v1252 = vpop.permute.xlu0 %1251
    %1253 = vrot.lane.b32.xlu0 %v598, 118
    %v1254 = vpop.permute.xlu0 %1253
    %1255 = vrot.lane.b32.xlu0 %v599, 118
    %v1256 = vpop.permute.xlu0 %1255
    %1257 = vrot.lane.b32.xlu0 %v600, 118
    %v1258 = vpop.permute.xlu0 %1257
    %1259 = vrot.lane.b32.xlu0 %v601, 118
    %v1260 = vpop.permute.xlu0 %1259
    %1261 = vrot.lane.b32.xlu0 %v602, 118
    %v1262 = vpop.permute.xlu0 %1261
    %1263 = vrot.lane.b32.xlu0 %v603, 118
    %v1264 = vpop.permute.xlu0 %1263
    %1265 = vrot.lane.b32.xlu0 %v604, 118
    %v1266 = vpop.permute.xlu0 %1265
    %1267 = vrot.lane.b32.xlu0 %v605, 118
    %v1268 = vpop.permute.xlu0 %1267
    %1269 = vrot.lane.b32.xlu0 %v606, 118
    %v1270 = vpop.permute.xlu0 %1269
    %1271 = vrot.lane.b32.xlu0 %v607, 118
    %v1272 = vpop.permute.xlu0 %1271
    %1273 = vrot.lane.b32.xlu0 %v608, 118
    %v1274 = vpop.permute.xlu0 %1273
    %1275 = vrot.lane.b32.xlu0 %v609, 118
    %v1276 = vpop.permute.xlu0 %1275
    %1277 = vrot.lane.b32.xlu0 %v610, 118
    %v1278 = vpop.permute.xlu0 %1277
    %1279 = vrot.lane.b32.xlu0 %v611, 118
    %v1280 = vpop.permute.xlu0 %1279
    %1281 = vrot.lane.b32.xlu0 %v612, 118
    %v1282 = vpop.permute.xlu0 %1281
    %1283 = vrot.lane.b32.xlu0 %v613, 118
    %v1284 = vpop.permute.xlu0 %1283
    %1285 = vrot.lane.b32.xlu0 %v614, 118
    %v1286 = vpop.permute.xlu0 %1285
    %1287 = vrot.lane.b32.xlu0 %v615, 118
    %v1288 = vpop.permute.xlu0 %1287
    %1289 = vrot.lane.b32.xlu0 %v616, 118
    %v1290 = vpop.permute.xlu0 %1289
    %1291 = vrot.lane.b32.xlu0 %v617, 118
    %v1292 = vpop.permute.xlu0 %1291
    %1293 = vrot.lane.b32.xlu0 %v618, 118
    %v1294 = vpop.permute.xlu0 %1293
    %1295 = vrot.lane.b32.xlu0 %v619, 118
    %v1296 = vpop.permute.xlu0 %1295
    %1297 = vrot.lane.b32.xlu0 %v620, 118
    %v1298 = vpop.permute.xlu0 %1297
    %1299 = vrot.lane.b32.xlu0 %v621, 118
    %v1300 = vpop.permute.xlu0 %1299
    %1301 = vrot.lane.b32.xlu0 %v622, 118
    %v1302 = vpop.permute.xlu0 %1301
    %1303 = vrot.lane.b32.xlu0 %v623, 118
    %v1304 = vpop.permute.xlu0 %1303
    %1305 = vrot.lane.b32.xlu0 %v624, 118
    %v1306 = vpop.permute.xlu0 %1305
    %1307 = vrot.lane.b32.xlu0 %v625, 118
    %v1308 = vpop.permute.xlu0 %1307
    %1309 = vrot.lane.b32.xlu0 %v626, 118
    %v1310 = vpop.permute.xlu0 %1309
    %1311 = vrot.lane.b32.xlu0 %v627, 118
    %v1312 = vpop.permute.xlu0 %1311
    %1313 = vrot.lane.b32.xlu0 %v628, 118
    %v1314 = vpop.permute.xlu0 %1313
    %1315 = vrot.lane.b32.xlu0 %v629, 118
    %v1316 = vpop.permute.xlu0 %1315
    %1317 = vrot.lane.b32.xlu0 %v630, 118
    %v1318 = vpop.permute.xlu0 %1317
    %1319 = vrot.lane.b32.xlu0 %v631, 118
    %v1320 = vpop.permute.xlu0 %1319
    %1321 = vrot.lane.b32.xlu0 %v632, 118
    %v1322 = vpop.permute.xlu0 %1321
    %1323 = vrot.lane.b32.xlu0 %v633, 118
    %v1324 = vpop.permute.xlu0 %1323
    %1325 = vrot.lane.b32.xlu0 %v634, 118
    %v1326 = vpop.permute.xlu0 %1325
    %1327 = vrot.lane.b32.xlu0 %v635, 118
    %v1328 = vpop.permute.xlu0 %1327
    %1329 = vrot.lane.b32.xlu0 %v636, 118
    %v1330 = vpop.permute.xlu0 %1329
    %1331 = vrot.lane.b32.xlu0 %v637, 118
    %v1332 = vpop.permute.xlu0 %1331
    %1333 = vrot.lane.b32.xlu0 %v638, 118
    %v1334 = vpop.permute.xlu0 %1333
    %1335 = vrot.lane.b32.xlu0 %v639, 118
    %v1336 = vpop.permute.xlu0 %1335
    %1337 = vrot.lane.b32.xlu0 %v640, 118
    %v1338 = vpop.permute.xlu0 %1337
    %1339 = vrot.lane.b32.xlu0 %v641, 118
    %v1340 = vpop.permute.xlu0 %1339
    %1341 = vrot.lane.b32.xlu0 %v642, 118
    %v1342 = vpop.permute.xlu0 %1341
    %1343 = vrot.lane.b32.xlu0 %v643, 118
    %v1344 = vpop.permute.xlu0 %1343
    %1345 = vrot.lane.b32.xlu0 %v644, 118
    %v1346 = vpop.permute.xlu0 %1345
    %1347 = vrot.lane.b32.xlu0 %v645, 118
    %v1348 = vpop.permute.xlu0 %1347
    %1349 = vrot.lane.b32.xlu0 %v646, 118
    %v1350 = vpop.permute.xlu0 %1349
    %1351 = vrot.lane.b32.xlu0 %v583, 116
    %v1352 = vpop.permute.xlu0 %1351
    %1353 = vrot.lane.b32.xlu0 %v584, 116
    %v1354 = vpop.permute.xlu0 %1353
    %1355 = vrot.lane.b32.xlu0 %v585, 116
    %v1356 = vpop.permute.xlu0 %1355
    %1357 = vrot.lane.b32.xlu0 %v586, 116
    %v1358 = vpop.permute.xlu0 %1357
    %1359 = vrot.lane.b32.xlu0 %v587, 116
    %v1360 = vpop.permute.xlu0 %1359
    %1361 = vrot.lane.b32.xlu0 %v588, 116
    %v1362 = vpop.permute.xlu0 %1361
    %1363 = vrot.lane.b32.xlu0 %v589, 116
    %v1364 = vpop.permute.xlu0 %1363
    %1365 = vrot.lane.b32.xlu0 %v590, 116
    %v1366 = vpop.permute.xlu0 %1365
    %1367 = vrot.lane.b32.xlu0 %v591, 116
    %v1368 = vpop.permute.xlu0 %1367
    %1369 = vrot.lane.b32.xlu0 %v592, 116
    %v1370 = vpop.permute.xlu0 %1369
    %1371 = vrot.lane.b32.xlu0 %v593, 116
    %v1372 = vpop.permute.xlu0 %1371
    %1373 = vrot.lane.b32.xlu0 %v594, 116
    %v1374 = vpop.permute.xlu0 %1373
    %1375 = vrot.lane.b32.xlu0 %v595, 116
    %v1376 = vpop.permute.xlu0 %1375
    %1377 = vrot.lane.b32.xlu0 %v596, 116
    %v1378 = vpop.permute.xlu0 %1377
    %1379 = vrot.lane.b32.xlu0 %v597, 116
    %v1380 = vpop.permute.xlu0 %1379
    %1381 = vrot.lane.b32.xlu0 %v598, 116
    %v1382 = vpop.permute.xlu0 %1381
    %1383 = vrot.lane.b32.xlu0 %v599, 116
    %v1384 = vpop.permute.xlu0 %1383
    %1385 = vrot.lane.b32.xlu0 %v600, 116
    %v1386 = vpop.permute.xlu0 %1385
    %1387 = vrot.lane.b32.xlu0 %v601, 116
    %v1388 = vpop.permute.xlu0 %1387
    %1389 = vrot.lane.b32.xlu0 %v602, 116
    %v1390 = vpop.permute.xlu0 %1389
    %1391 = vrot.lane.b32.xlu0 %v603, 116
    %v1392 = vpop.permute.xlu0 %1391
    %1393 = vrot.lane.b32.xlu0 %v604, 116
    %v1394 = vpop.permute.xlu0 %1393
    %1395 = vrot.lane.b32.xlu0 %v605, 116
    %v1396 = vpop.permute.xlu0 %1395
    %1397 = vrot.lane.b32.xlu0 %v606, 116
    %v1398 = vpop.permute.xlu0 %1397
    %1399 = vrot.lane.b32.xlu0 %v607, 116
    %v1400 = vpop.permute.xlu0 %1399
    %1401 = vrot.lane.b32.xlu0 %v608, 116
    %v1402 = vpop.permute.xlu0 %1401
    %1403 = vrot.lane.b32.xlu0 %v609, 116
    %v1404 = vpop.permute.xlu0 %1403
    %1405 = vrot.lane.b32.xlu0 %v610, 116
    %v1406 = vpop.permute.xlu0 %1405
    %1407 = vrot.lane.b32.xlu0 %v611, 116
    %v1408 = vpop.permute.xlu0 %1407
    %1409 = vrot.lane.b32.xlu0 %v612, 116
    %v1410 = vpop.permute.xlu0 %1409
    %1411 = vrot.lane.b32.xlu0 %v613, 116
    %v1412 = vpop.permute.xlu0 %1411
    %1413 = vrot.lane.b32.xlu0 %v614, 116
    %v1414 = vpop.permute.xlu0 %1413
    %1415 = vrot.lane.b32.xlu0 %v615, 116
    %v1416 = vpop.permute.xlu0 %1415
    %1417 = vrot.lane.b32.xlu0 %v616, 116
    %v1418 = vpop.permute.xlu0 %1417
    %1419 = vrot.lane.b32.xlu0 %v617, 116
    %v1420 = vpop.permute.xlu0 %1419
    %1421 = vrot.lane.b32.xlu0 %v618, 116
    %v1422 = vpop.permute.xlu0 %1421
    %1423 = vrot.lane.b32.xlu0 %v619, 116
    %v1424 = vpop.permute.xlu0 %1423
    %1425 = vrot.lane.b32.xlu0 %v620, 116
    %v1426 = vpop.permute.xlu0 %1425
    %1427 = vrot.lane.b32.xlu0 %v621, 116
    %v1428 = vpop.permute.xlu0 %1427
    %1429 = vrot.lane.b32.xlu0 %v622, 116
    %v1430 = vpop.permute.xlu0 %1429
    %1431 = vrot.lane.b32.xlu0 %v623, 116
    %v1432 = vpop.permute.xlu0 %1431
    %1433 = vrot.lane.b32.xlu0 %v624, 116
    %v1434 = vpop.permute.xlu0 %1433
    %1435 = vrot.lane.b32.xlu0 %v625, 116
    %v1436 = vpop.permute.xlu0 %1435
    %1437 = vrot.lane.b32.xlu0 %v626, 116
    %v1438 = vpop.permute.xlu0 %1437
    %1439 = vrot.lane.b32.xlu0 %v627, 116
    %v1440 = vpop.permute.xlu0 %1439
    %1441 = vrot.lane.b32.xlu0 %v628, 116
    %v1442 = vpop.permute.xlu0 %1441
    %1443 = vrot.lane.b32.xlu0 %v629, 116
    %v1444 = vpop.permute.xlu0 %1443
    %1445 = vrot.lane.b32.xlu0 %v630, 116
    %v1446 = vpop.permute.xlu0 %1445
    %1447 = vrot.lane.b32.xlu0 %v631, 116
    %v1448 = vpop.permute.xlu0 %1447
    %1449 = vrot.lane.b32.xlu0 %v632, 116
    %v1450 = vpop.permute.xlu0 %1449
    %1451 = vrot.lane.b32.xlu0 %v633, 116
    %v1452 = vpop.permute.xlu0 %1451
    %1453 = vrot.lane.b32.xlu0 %v634, 116
    %v1454 = vpop.permute.xlu0 %1453
    %1455 = vrot.lane.b32.xlu0 %v635, 116
    %v1456 = vpop.permute.xlu0 %1455
    %1457 = vrot.lane.b32.xlu0 %v636, 116
    %v1458 = vpop.permute.xlu0 %1457
    %1459 = vrot.lane.b32.xlu0 %v637, 116
    %v1460 = vpop.permute.xlu0 %1459
    %1461 = vrot.lane.b32.xlu0 %v638, 116
    %v1462 = vpop.permute.xlu0 %1461
    %1463 = vrot.lane.b32.xlu0 %v639, 116
    %v1464 = vpop.permute.xlu0 %1463
    %1465 = vrot.lane.b32.xlu0 %v640, 116
    %v1466 = vpop.permute.xlu0 %1465
    %1467 = vrot.lane.b32.xlu0 %v641, 116
    %v1468 = vpop.permute.xlu0 %1467
    %1469 = vrot.lane.b32.xlu0 %v642, 116
    %v1470 = vpop.permute.xlu0 %1469
    %1471 = vrot.lane.b32.xlu0 %v643, 116
    %v1472 = vpop.permute.xlu0 %1471
    %1473 = vrot.lane.b32.xlu0 %v644, 116
    %v1474 = vpop.permute.xlu0 %1473
    %1475 = vrot.lane.b32.xlu0 %v645, 116
    %v1476 = vpop.permute.xlu0 %1475
    %1477 = vrot.lane.b32.xlu0 %v646, 116
    %v1478 = vpop.permute.xlu0 %1477
    %1479 = vrot.lane.b32.xlu0 %v583, 114
    %v1480 = vpop.permute.xlu0 %1479
    %1481 = vrot.lane.b32.xlu0 %v584, 114
    %v1482 = vpop.permute.xlu0 %1481
    %1483 = vrot.lane.b32.xlu0 %v585, 114
    %v1484 = vpop.permute.xlu0 %1483
    %1485 = vrot.lane.b32.xlu0 %v586, 114
    %v1486 = vpop.permute.xlu0 %1485
    %1487 = vrot.lane.b32.xlu0 %v587, 114
    %v1488 = vpop.permute.xlu0 %1487
    %1489 = vrot.lane.b32.xlu0 %v588, 114
    %v1490 = vpop.permute.xlu0 %1489
    %1491 = vrot.lane.b32.xlu0 %v589, 114
    %v1492 = vpop.permute.xlu0 %1491
    %1493 = vrot.lane.b32.xlu0 %v590, 114
    %v1494 = vpop.permute.xlu0 %1493
    %1495 = vrot.lane.b32.xlu0 %v591, 114
    %v1496 = vpop.permute.xlu0 %1495
    %1497 = vrot.lane.b32.xlu0 %v592, 114
    %v1498 = vpop.permute.xlu0 %1497
    %1499 = vrot.lane.b32.xlu0 %v593, 114
    %v1500 = vpop.permute.xlu0 %1499
    %1501 = vrot.lane.b32.xlu0 %v594, 114
    %v1502 = vpop.permute.xlu0 %1501
    %1503 = vrot.lane.b32.xlu0 %v595, 114
    %v1504 = vpop.permute.xlu0 %1503
    %1505 = vrot.lane.b32.xlu0 %v596, 114
    %v1506 = vpop.permute.xlu0 %1505
    %1507 = vrot.lane.b32.xlu0 %v597, 114
    %v1508 = vpop.permute.xlu0 %1507
    %1509 = vrot.lane.b32.xlu0 %v598, 114
    %v1510 = vpop.permute.xlu0 %1509
    %1511 = vrot.lane.b32.xlu0 %v599, 114
    %v1512 = vpop.permute.xlu0 %1511
    %1513 = vrot.lane.b32.xlu0 %v600, 114
    %v1514 = vpop.permute.xlu0 %1513
    %1515 = vrot.lane.b32.xlu0 %v601, 114
    %v1516 = vpop.permute.xlu0 %1515
    %1517 = vrot.lane.b32.xlu0 %v602, 114
    %v1518 = vpop.permute.xlu0 %1517
    %1519 = vrot.lane.b32.xlu0 %v603, 114
    %v1520 = vpop.permute.xlu0 %1519
    %1521 = vrot.lane.b32.xlu0 %v604, 114
    %v1522 = vpop.permute.xlu0 %1521
    %1523 = vrot.lane.b32.xlu0 %v605, 114
    %v1524 = vpop.permute.xlu0 %1523
    %1525 = vrot.lane.b32.xlu0 %v606, 114
    %v1526 = vpop.permute.xlu0 %1525
    %1527 = vrot.lane.b32.xlu0 %v607, 114
    %v1528 = vpop.permute.xlu0 %1527
    %1529 = vrot.lane.b32.xlu0 %v608, 114
    %v1530 = vpop.permute.xlu0 %1529
    %1531 = vrot.lane.b32.xlu0 %v609, 114
    %v1532 = vpop.permute.xlu0 %1531
    %1533 = vrot.lane.b32.xlu0 %v610, 114
    %v1534 = vpop.permute.xlu0 %1533
    %1535 = vrot.lane.b32.xlu0 %v611, 114
    %v1536 = vpop.permute.xlu0 %1535
    %1537 = vrot.lane.b32.xlu0 %v612, 114
    %v1538 = vpop.permute.xlu0 %1537
    %1539 = vrot.lane.b32.xlu0 %v613, 114
    %v1540 = vpop.permute.xlu0 %1539
    %1541 = vrot.lane.b32.xlu0 %v614, 114
    %v1542 = vpop.permute.xlu0 %1541
    %1543 = vrot.lane.b32.xlu0 %v615, 114
    %v1544 = vpop.permute.xlu0 %1543
    %1545 = vrot.lane.b32.xlu0 %v616, 114
    %v1546 = vpop.permute.xlu0 %1545
    %1547 = vrot.lane.b32.xlu0 %v617, 114
    %v1548 = vpop.permute.xlu0 %1547
    %1549 = vrot.lane.b32.xlu0 %v618, 114
    %v1550 = vpop.permute.xlu0 %1549
    %1551 = vrot.lane.b32.xlu0 %v619, 114
    %v1552 = vpop.permute.xlu0 %1551
    %1553 = vrot.lane.b32.xlu0 %v620, 114
    %v1554 = vpop.permute.xlu0 %1553
    %1555 = vrot.lane.b32.xlu0 %v621, 114
    %v1556 = vpop.permute.xlu0 %1555
    %1557 = vrot.lane.b32.xlu0 %v622, 114
    %v1558 = vpop.permute.xlu0 %1557
    %1559 = vrot.lane.b32.xlu0 %v623, 114
    %v1560 = vpop.permute.xlu0 %1559
    %1561 = vrot.lane.b32.xlu0 %v624, 114
    %v1562 = vpop.permute.xlu0 %1561
    %1563 = vrot.lane.b32.xlu0 %v625, 114
    %v1564 = vpop.permute.xlu0 %1563
    %1565 = vrot.lane.b32.xlu0 %v626, 114
    %v1566 = vpop.permute.xlu0 %1565
    %1567 = vrot.lane.b32.xlu0 %v627, 114
    %v1568 = vpop.permute.xlu0 %1567
    %1569 = vrot.lane.b32.xlu0 %v628, 114
    %v1570 = vpop.permute.xlu0 %1569
    %1571 = vrot.lane.b32.xlu0 %v629, 114
    %v1572 = vpop.permute.xlu0 %1571
    %1573 = vrot.lane.b32.xlu0 %v630, 114
    %v1574 = vpop.permute.xlu0 %1573
    %1575 = vrot.lane.b32.xlu0 %v631, 114
    %v1576 = vpop.permute.xlu0 %1575
    %1577 = vrot.lane.b32.xlu0 %v632, 114
    %v1578 = vpop.permute.xlu0 %1577
    %1579 = vrot.lane.b32.xlu0 %v633, 114
    %v1580 = vpop.permute.xlu0 %1579
    %1581 = vrot.lane.b32.xlu0 %v634, 114
    %v1582 = vpop.permute.xlu0 %1581
    %1583 = vrot.lane.b32.xlu0 %v635, 114
    %v1584 = vpop.permute.xlu0 %1583
    %1585 = vrot.lane.b32.xlu0 %v636, 114
    %v1586 = vpop.permute.xlu0 %1585
    %1587 = vrot.lane.b32.xlu0 %v637, 114
    %v1588 = vpop.permute.xlu0 %1587
    %1589 = vrot.lane.b32.xlu0 %v638, 114
    %v1590 = vpop.permute.xlu0 %1589
    %1591 = vrot.lane.b32.xlu0 %v639, 114
    %v1592 = vpop.permute.xlu0 %1591
    %1593 = vrot.lane.b32.xlu0 %v640, 114
    %v1594 = vpop.permute.xlu0 %1593
    %1595 = vrot.lane.b32.xlu0 %v641, 114
    %v1596 = vpop.permute.xlu0 %1595
    %1597 = vrot.lane.b32.xlu0 %v642, 114
    %v1598 = vpop.permute.xlu0 %1597
    %1599 = vrot.lane.b32.xlu0 %v643, 114
    %v1600 = vpop.permute.xlu0 %1599
    %1601 = vrot.lane.b32.xlu0 %v644, 114
    %v1602 = vpop.permute.xlu0 %1601
    %1603 = vrot.lane.b32.xlu0 %v645, 114
    %v1604 = vpop.permute.xlu0 %1603
    %1605 = vrot.lane.b32.xlu0 %v646, 114
    %v1606 = vpop.permute.xlu0 %1605
    %vm1607 = vcmask 1042434
    %vm1608 = vcmask 1044484
    %v1609 = vsel %vm1608, %v583, %v583
    %vm1610 = vcmask 1046534
    %v1611 = vsel %vm1610, %v583, %v1609
    %v1612 = vrot.slane %v584, 7
    %vm1613 = vcmask 1041409
    %v1614 = vsel %vm1613, %v1612, %v1611
    %vm1615 = vcmask 1043459
    %v1616 = vsel %vm1615, %v1612, %v1614
    %vm1617 = vcmask 1045509
    %v1618 = vsel %vm1617, %v1612, %v1616
    %vm1619 = vcmask 1047559
    %v1620 = vsel %vm1619, %v1612, %v1618
    %v1621 = vsel %vm1608, %v585, %v585
    %v1622 = vsel %vm1610, %v585, %v1621
    %v1623 = vrot.slane %v586, 7
    %v1624 = vsel %vm1613, %v1623, %v1622
    %v1625 = vsel %vm1615, %v1623, %v1624
    %v1626 = vsel %vm1617, %v1623, %v1625
    %v1627 = vsel %vm1619, %v1623, %v1626
    %v1628 = vsel %vm1608, %v587, %v587
    %v1629 = vsel %vm1610, %v587, %v1628
    %v1630 = vrot.slane %v588, 7
    %v1631 = vsel %vm1613, %v1630, %v1629
    %v1632 = vsel %vm1615, %v1630, %v1631
    %v1633 = vsel %vm1617, %v1630, %v1632
    %v1634 = vsel %vm1619, %v1630, %v1633
    %v1635 = vsel %vm1608, %v589, %v589
    %v1636 = vsel %vm1610, %v589, %v1635
    %v1637 = vrot.slane %v590, 7
    %v1638 = vsel %vm1613, %v1637, %v1636
    %v1639 = vsel %vm1615, %v1637, %v1638
    %v1640 = vsel %vm1617, %v1637, %v1639
    %v1641 = vsel %vm1619, %v1637, %v1640
    %v1642 = vsel %vm1608, %v712, %v712
    %v1643 = vsel %vm1610, %v712, %v1642
    %v1644 = vrot.slane %v714, 7
    %v1645 = vsel %vm1613, %v1644, %v1643
    %v1646 = vsel %vm1615, %v1644, %v1645
    %v1647 = vsel %vm1617, %v1644, %v1646
    %v1648 = vsel %vm1619, %v1644, %v1647
    %v1649 = vsel %vm1608, %v716, %v716
    %v1650 = vsel %vm1610, %v716, %v1649
    %v1651 = vrot.slane %v718, 7
    %v1652 = vsel %vm1613, %v1651, %v1650
    %v1653 = vsel %vm1615, %v1651, %v1652
    %v1654 = vsel %vm1617, %v1651, %v1653
    %v1655 = vsel %vm1619, %v1651, %v1654
    %v1656 = vsel %vm1608, %v720, %v720
    %v1657 = vsel %vm1610, %v720, %v1656
    %v1658 = vrot.slane %v722, 7
    %v1659 = vsel %vm1613, %v1658, %v1657
    %v1660 = vsel %vm1615, %v1658, %v1659
    %v1661 = vsel %vm1617, %v1658, %v1660
    %v1662 = vsel %vm1619, %v1658, %v1661
    %v1663 = vsel %vm1608, %v724, %v724
    %v1664 = vsel %vm1610, %v724, %v1663
    %v1665 = vrot.slane %v726, 7
    %v1666 = vsel %vm1613, %v1665, %v1664
    %v1667 = vsel %vm1615, %v1665, %v1666
    %v1668 = vsel %vm1617, %v1665, %v1667
    %v1669 = vsel %vm1619, %v1665, %v1668
    %v1670 = vsel %vm1608, %v840, %v840
    %v1671 = vsel %vm1610, %v840, %v1670
    %v1672 = vrot.slane %v842, 7
    %v1673 = vsel %vm1613, %v1672, %v1671
    %v1674 = vsel %vm1615, %v1672, %v1673
    %v1675 = vsel %vm1617, %v1672, %v1674
    %v1676 = vsel %vm1619, %v1672, %v1675
    %v1677 = vsel %vm1608, %v844, %v844
    %v1678 = vsel %vm1610, %v844, %v1677
    %v1679 = vrot.slane %v846, 7
    %v1680 = vsel %vm1613, %v1679, %v1678
    %v1681 = vsel %vm1615, %v1679, %v1680
    %v1682 = vsel %vm1617, %v1679, %v1681
    %v1683 = vsel %vm1619, %v1679, %v1682
    %v1684 = vsel %vm1608, %v848, %v848
    %v1685 = vsel %vm1610, %v848, %v1684
    %v1686 = vrot.slane %v850, 7
    %v1687 = vsel %vm1613, %v1686, %v1685
    %v1688 = vsel %vm1615, %v1686, %v1687
    %v1689 = vsel %vm1617, %v1686, %v1688
    %v1690 = vsel %vm1619, %v1686, %v1689
    %v1691 = vsel %vm1608, %v852, %v852
    %v1692 = vsel %vm1610, %v852, %v1691
    %v1693 = vrot.slane %v854, 7
    %v1694 = vsel %vm1613, %v1693, %v1692
    %v1695 = vsel %vm1615, %v1693, %v1694
    %v1696 = vsel %vm1617, %v1693, %v1695
    %v1697 = vsel %vm1619, %v1693, %v1696
    %v1698 = vsel %vm1608, %v968, %v968
    %v1699 = vsel %vm1610, %v968, %v1698
    %v1700 = vrot.slane %v970, 7
    %v1701 = vsel %vm1613, %v1700, %v1699
    %v1702 = vsel %vm1615, %v1700, %v1701
    %v1703 = vsel %vm1617, %v1700, %v1702
    %v1704 = vsel %vm1619, %v1700, %v1703
    %v1705 = vsel %vm1608, %v972, %v972
    %v1706 = vsel %vm1610, %v972, %v1705
    %v1707 = vrot.slane %v974, 7
    %v1708 = vsel %vm1613, %v1707, %v1706
    %v1709 = vsel %vm1615, %v1707, %v1708
    %v1710 = vsel %vm1617, %v1707, %v1709
    %v1711 = vsel %vm1619, %v1707, %v1710
    %v1712 = vsel %vm1608, %v976, %v976
    %v1713 = vsel %vm1610, %v976, %v1712
    %v1714 = vrot.slane %v978, 7
    %v1715 = vsel %vm1613, %v1714, %v1713
    %v1716 = vsel %vm1615, %v1714, %v1715
    %v1717 = vsel %vm1617, %v1714, %v1716
    %v1718 = vsel %vm1619, %v1714, %v1717
    %v1719 = vsel %vm1608, %v980, %v980
    %v1720 = vsel %vm1610, %v980, %v1719
    %v1721 = vrot.slane %v982, 7
    %v1722 = vsel %vm1613, %v1721, %v1720
    %v1723 = vsel %vm1615, %v1721, %v1722
    %v1724 = vsel %vm1617, %v1721, %v1723
    %v1725 = vsel %vm1619, %v1721, %v1724
    %v1726 = vsel %vm1608, %v1096, %v1096
    %v1727 = vsel %vm1610, %v1096, %v1726
    %v1728 = vrot.slane %v1098, 7
    %v1729 = vsel %vm1613, %v1728, %v1727
    %v1730 = vsel %vm1615, %v1728, %v1729
    %v1731 = vsel %vm1617, %v1728, %v1730
    %v1732 = vsel %vm1619, %v1728, %v1731
    %v1733 = vsel %vm1608, %v1100, %v1100
    %v1734 = vsel %vm1610, %v1100, %v1733
    %v1735 = vrot.slane %v1102, 7
    %v1736 = vsel %vm1613, %v1735, %v1734
    %v1737 = vsel %vm1615, %v1735, %v1736
    %v1738 = vsel %vm1617, %v1735, %v1737
    %v1739 = vsel %vm1619, %v1735, %v1738
    %v1740 = vsel %vm1608, %v1104, %v1104
    %v1741 = vsel %vm1610, %v1104, %v1740
    %v1742 = vrot.slane %v1106, 7
    %v1743 = vsel %vm1613, %v1742, %v1741
    %v1744 = vsel %vm1615, %v1742, %v1743
    %v1745 = vsel %vm1617, %v1742, %v1744
    %v1746 = vsel %vm1619, %v1742, %v1745
    %v1747 = vsel %vm1608, %v1108, %v1108
    %v1748 = vsel %vm1610, %v1108, %v1747
    %v1749 = vrot.slane %v1110, 7
    %v1750 = vsel %vm1613, %v1749, %v1748
    %v1751 = vsel %vm1615, %v1749, %v1750
    %v1752 = vsel %vm1617, %v1749, %v1751
    %v1753 = vsel %vm1619, %v1749, %v1752
    %v1754 = vsel %vm1608, %v1224, %v1224
    %v1755 = vsel %vm1610, %v1224, %v1754
    %v1756 = vrot.slane %v1226, 7
    %v1757 = vsel %vm1613, %v1756, %v1755
    %v1758 = vsel %vm1615, %v1756, %v1757
    %v1759 = vsel %vm1617, %v1756, %v1758
    %v1760 = vsel %vm1619, %v1756, %v1759
    %v1761 = vsel %vm1608, %v1228, %v1228
    %v1762 = vsel %vm1610, %v1228, %v1761
    %v1763 = vrot.slane %v1230, 7
    %v1764 = vsel %vm1613, %v1763, %v1762
    %v1765 = vsel %vm1615, %v1763, %v1764
    %v1766 = vsel %vm1617, %v1763, %v1765
    %v1767 = vsel %vm1619, %v1763, %v1766
    %v1768 = vsel %vm1608, %v1232, %v1232
    %v1769 = vsel %vm1610, %v1232, %v1768
    %v1770 = vrot.slane %v1234, 7
    %v1771 = vsel %vm1613, %v1770, %v1769
    %v1772 = vsel %vm1615, %v1770, %v1771
    %v1773 = vsel %vm1617, %v1770, %v1772
    %v1774 = vsel %vm1619, %v1770, %v1773
    %v1775 = vsel %vm1608, %v1236, %v1236
    %v1776 = vsel %vm1610, %v1236, %v1775
    %v1777 = vrot.slane %v1238, 7
    %v1778 = vsel %vm1613, %v1777, %v1776
    %v1779 = vsel %vm1615, %v1777, %v1778
    %v1780 = vsel %vm1617, %v1777, %v1779
    %v1781 = vsel %vm1619, %v1777, %v1780
    %v1782 = vsel %vm1608, %v1352, %v1352
    %v1783 = vsel %vm1610, %v1352, %v1782
    %v1784 = vrot.slane %v1354, 7
    %v1785 = vsel %vm1613, %v1784, %v1783
    %v1786 = vsel %vm1615, %v1784, %v1785
    %v1787 = vsel %vm1617, %v1784, %v1786
    %v1788 = vsel %vm1619, %v1784, %v1787
    %v1789 = vsel %vm1608, %v1356, %v1356
    %v1790 = vsel %vm1610, %v1356, %v1789
    %v1791 = vrot.slane %v1358, 7
    %v1792 = vsel %vm1613, %v1791, %v1790
    %v1793 = vsel %vm1615, %v1791, %v1792
    %v1794 = vsel %vm1617, %v1791, %v1793
    %v1795 = vsel %vm1619, %v1791, %v1794
    %v1796 = vsel %vm1608, %v1360, %v1360
    %v1797 = vsel %vm1610, %v1360, %v1796
    %v1798 = vrot.slane %v1362, 7
    %v1799 = vsel %vm1613, %v1798, %v1797
    %v1800 = vsel %vm1615, %v1798, %v1799
    %v1801 = vsel %vm1617, %v1798, %v1800
    %v1802 = vsel %vm1619, %v1798, %v1801
    %v1803 = vsel %vm1608, %v1364, %v1364
    %v1804 = vsel %vm1610, %v1364, %v1803
    %v1805 = vrot.slane %v1366, 7
    %v1806 = vsel %vm1613, %v1805, %v1804
    %v1807 = vsel %vm1615, %v1805, %v1806
    %v1808 = vsel %vm1617, %v1805, %v1807
    %v1809 = vsel %vm1619, %v1805, %v1808
    %v1810 = vsel %vm1608, %v1480, %v1480
    %v1811 = vsel %vm1610, %v1480, %v1810
    %v1812 = vrot.slane %v1482, 7
    %v1813 = vsel %vm1613, %v1812, %v1811
    %v1814 = vsel %vm1615, %v1812, %v1813
    %v1815 = vsel %vm1617, %v1812, %v1814
    %v1816 = vsel %vm1619, %v1812, %v1815
    %v1817 = vsel %vm1608, %v1484, %v1484
    %v1818 = vsel %vm1610, %v1484, %v1817
    %v1819 = vrot.slane %v1486, 7
    %v1820 = vsel %vm1613, %v1819, %v1818
    %v1821 = vsel %vm1615, %v1819, %v1820
    %v1822 = vsel %vm1617, %v1819, %v1821
    %v1823 = vsel %vm1619, %v1819, %v1822
    %v1824 = vsel %vm1608, %v1488, %v1488
    %v1825 = vsel %vm1610, %v1488, %v1824
    %v1826 = vrot.slane %v1490, 7
    %v1827 = vsel %vm1613, %v1826, %v1825
    %v1828 = vsel %vm1615, %v1826, %v1827
    %v1829 = vsel %vm1617, %v1826, %v1828
    %v1830 = vsel %vm1619, %v1826, %v1829
    %v1831 = vsel %vm1608, %v1492, %v1492
    %v1832 = vsel %vm1610, %v1492, %v1831
    %v1833 = vrot.slane %v1494, 7
    %v1834 = vsel %vm1613, %v1833, %v1832
    %v1835 = vsel %vm1615, %v1833, %v1834
    %v1836 = vsel %vm1617, %v1833, %v1835
    %v1837 = vsel %vm1619, %v1833, %v1836
    %v1838 = vsel %vm1608, %v591, %v591
    %v1839 = vsel %vm1610, %v591, %v1838
    %v1840 = vrot.slane %v592, 7
    %v1841 = vsel %vm1613, %v1840, %v1839
    %v1842 = vsel %vm1615, %v1840, %v1841
    %v1843 = vsel %vm1617, %v1840, %v1842
    %v1844 = vsel %vm1619, %v1840, %v1843
    %v1845 = vsel %vm1608, %v593, %v593
    %v1846 = vsel %vm1610, %v593, %v1845
    %v1847 = vrot.slane %v594, 7
    %v1848 = vsel %vm1613, %v1847, %v1846
    %v1849 = vsel %vm1615, %v1847, %v1848
    %v1850 = vsel %vm1617, %v1847, %v1849
    %v1851 = vsel %vm1619, %v1847, %v1850
    %v1852 = vsel %vm1608, %v595, %v595
    %v1853 = vsel %vm1610, %v595, %v1852
    %v1854 = vrot.slane %v596, 7
    %v1855 = vsel %vm1613, %v1854, %v1853
    %v1856 = vsel %vm1615, %v1854, %v1855
    %v1857 = vsel %vm1617, %v1854, %v1856
    %v1858 = vsel %vm1619, %v1854, %v1857
    %v1859 = vsel %vm1608, %v597, %v597
    %v1860 = vsel %vm1610, %v597, %v1859
    %v1861 = vrot.slane %v598, 7
    %v1862 = vsel %vm1613, %v1861, %v1860
    %v1863 = vsel %vm1615, %v1861, %v1862
    %v1864 = vsel %vm1617, %v1861, %v1863
    %v1865 = vsel %vm1619, %v1861, %v1864
    %v1866 = vsel %vm1608, %v728, %v728
    %v1867 = vsel %vm1610, %v728, %v1866
    %v1868 = vrot.slane %v730, 7
    %v1869 = vsel %vm1613, %v1868, %v1867
    %v1870 = vsel %vm1615, %v1868, %v1869
    %v1871 = vsel %vm1617, %v1868, %v1870
    %v1872 = vsel %vm1619, %v1868, %v1871
    %v1873 = vsel %vm1608, %v732, %v732
    %v1874 = vsel %vm1610, %v732, %v1873
    %v1875 = vrot.slane %v734, 7
    %v1876 = vsel %vm1613, %v1875, %v1874
    %v1877 = vsel %vm1615, %v1875, %v1876
    %v1878 = vsel %vm1617, %v1875, %v1877
    %v1879 = vsel %vm1619, %v1875, %v1878
    %v1880 = vsel %vm1608, %v736, %v736
    %v1881 = vsel %vm1610, %v736, %v1880
    %v1882 = vrot.slane %v738, 7
    %v1883 = vsel %vm1613, %v1882, %v1881
    %v1884 = vsel %vm1615, %v1882, %v1883
    %v1885 = vsel %vm1617, %v1882, %v1884
    %v1886 = vsel %vm1619, %v1882, %v1885
    %v1887 = vsel %vm1608, %v740, %v740
    %v1888 = vsel %vm1610, %v740, %v1887
    %v1889 = vrot.slane %v742, 7
    %v1890 = vsel %vm1613, %v1889, %v1888
    %v1891 = vsel %vm1615, %v1889, %v1890
    %v1892 = vsel %vm1617, %v1889, %v1891
    %v1893 = vsel %vm1619, %v1889, %v1892
    %v1894 = vsel %vm1608, %v856, %v856
    %v1895 = vsel %vm1610, %v856, %v1894
    %v1896 = vrot.slane %v858, 7
    %v1897 = vsel %vm1613, %v1896, %v1895
    %v1898 = vsel %vm1615, %v1896, %v1897
    %v1899 = vsel %vm1617, %v1896, %v1898
    %v1900 = vsel %vm1619, %v1896, %v1899
    %v1901 = vsel %vm1608, %v860, %v860
    %v1902 = vsel %vm1610, %v860, %v1901
    %v1903 = vrot.slane %v862, 7
    %v1904 = vsel %vm1613, %v1903, %v1902
    %v1905 = vsel %vm1615, %v1903, %v1904
    %v1906 = vsel %vm1617, %v1903, %v1905
    %v1907 = vsel %vm1619, %v1903, %v1906
    %v1908 = vsel %vm1608, %v864, %v864
    %v1909 = vsel %vm1610, %v864, %v1908
    %v1910 = vrot.slane %v866, 7
    %v1911 = vsel %vm1613, %v1910, %v1909
    %v1912 = vsel %vm1615, %v1910, %v1911
    %v1913 = vsel %vm1617, %v1910, %v1912
    %v1914 = vsel %vm1619, %v1910, %v1913
    %v1915 = vsel %vm1608, %v868, %v868
    %v1916 = vsel %vm1610, %v868, %v1915
    %v1917 = vrot.slane %v870, 7
    %v1918 = vsel %vm1613, %v1917, %v1916
    %v1919 = vsel %vm1615, %v1917, %v1918
    %v1920 = vsel %vm1617, %v1917, %v1919
    %v1921 = vsel %vm1619, %v1917, %v1920
    %v1922 = vsel %vm1608, %v984, %v984
    %v1923 = vsel %vm1610, %v984, %v1922
    %v1924 = vrot.slane %v986, 7
    %v1925 = vsel %vm1613, %v1924, %v1923
    %v1926 = vsel %vm1615, %v1924, %v1925
    %v1927 = vsel %vm1617, %v1924, %v1926
    %v1928 = vsel %vm1619, %v1924, %v1927
    %v1929 = vsel %vm1608, %v988, %v988
    %v1930 = vsel %vm1610, %v988, %v1929
    %v1931 = vrot.slane %v990, 7
    %v1932 = vsel %vm1613, %v1931, %v1930
    %v1933 = vsel %vm1615, %v1931, %v1932
    %v1934 = vsel %vm1617, %v1931, %v1933
    %v1935 = vsel %vm1619, %v1931, %v1934
    %v1936 = vsel %vm1608, %v992, %v992
    %v1937 = vsel %vm1610, %v992, %v1936
    %v1938 = vrot.slane %v994, 7
    %v1939 = vsel %vm1613, %v1938, %v1937
    %v1940 = vsel %vm1615, %v1938, %v1939
    %v1941 = vsel %vm1617, %v1938, %v1940
    %v1942 = vsel %vm1619, %v1938, %v1941
    %v1943 = vsel %vm1608, %v996, %v996
    %v1944 = vsel %vm1610, %v996, %v1943
    %v1945 = vrot.slane %v998, 7
    %v1946 = vsel %vm1613, %v1945, %v1944
    %v1947 = vsel %vm1615, %v1945, %v1946
    %v1948 = vsel %vm1617, %v1945, %v1947
    %v1949 = vsel %vm1619, %v1945, %v1948
    %v1950 = vsel %vm1608, %v1112, %v1112
    %v1951 = vsel %vm1610, %v1112, %v1950
    %v1952 = vrot.slane %v1114, 7
    %v1953 = vsel %vm1613, %v1952, %v1951
    %v1954 = vsel %vm1615, %v1952, %v1953
    %v1955 = vsel %vm1617, %v1952, %v1954
    %v1956 = vsel %vm1619, %v1952, %v1955
    %v1957 = vsel %vm1608, %v1116, %v1116
    %v1958 = vsel %vm1610, %v1116, %v1957
    %v1959 = vrot.slane %v1118, 7
    %v1960 = vsel %vm1613, %v1959, %v1958
    %v1961 = vsel %vm1615, %v1959, %v1960
    %v1962 = vsel %vm1617, %v1959, %v1961
    %v1963 = vsel %vm1619, %v1959, %v1962
    %v1964 = vsel %vm1608, %v1120, %v1120
    %v1965 = vsel %vm1610, %v1120, %v1964
    %v1966 = vrot.slane %v1122, 7
    %v1967 = vsel %vm1613, %v1966, %v1965
    %v1968 = vsel %vm1615, %v1966, %v1967
    %v1969 = vsel %vm1617, %v1966, %v1968
    %v1970 = vsel %vm1619, %v1966, %v1969
    %v1971 = vsel %vm1608, %v1124, %v1124
    %v1972 = vsel %vm1610, %v1124, %v1971
    %v1973 = vrot.slane %v1126, 7
    %v1974 = vsel %vm1613, %v1973, %v1972
    %v1975 = vsel %vm1615, %v1973, %v1974
    %v1976 = vsel %vm1617, %v1973, %v1975
    %v1977 = vsel %vm1619, %v1973, %v1976
    %v1978 = vsel %vm1608, %v1240, %v1240
    %v1979 = vsel %vm1610, %v1240, %v1978
    %v1980 = vrot.slane %v1242, 7
    %v1981 = vsel %vm1613, %v1980, %v1979
    %v1982 = vsel %vm1615, %v1980, %v1981
    %v1983 = vsel %vm1617, %v1980, %v1982
    %v1984 = vsel %vm1619, %v1980, %v1983
    %v1985 = vsel %vm1608, %v1244, %v1244
    %v1986 = vsel %vm1610, %v1244, %v1985
    %v1987 = vrot.slane %v1246, 7
    %v1988 = vsel %vm1613, %v1987, %v1986
    %v1989 = vsel %vm1615, %v1987, %v1988
    %v1990 = vsel %vm1617, %v1987, %v1989
    %v1991 = vsel %vm1619, %v1987, %v1990
    %v1992 = vsel %vm1608, %v1248, %v1248
    %v1993 = vsel %vm1610, %v1248, %v1992
    %v1994 = vrot.slane %v1250, 7
    %v1995 = vsel %vm1613, %v1994, %v1993
    %v1996 = vsel %vm1615, %v1994, %v1995
    %v1997 = vsel %vm1617, %v1994, %v1996
    %v1998 = vsel %vm1619, %v1994, %v1997
    %v1999 = vsel %vm1608, %v1252, %v1252
    %v2000 = vsel %vm1610, %v1252, %v1999
    %v2001 = vrot.slane %v1254, 7
    %v2002 = vsel %vm1613, %v2001, %v2000
    %v2003 = vsel %vm1615, %v2001, %v2002
    %v2004 = vsel %vm1617, %v2001, %v2003
    %v2005 = vsel %vm1619, %v2001, %v2004
    %v2006 = vsel %vm1608, %v1368, %v1368
    %v2007 = vsel %vm1610, %v1368, %v2006
    %v2008 = vrot.slane %v1370, 7
    %v2009 = vsel %vm1613, %v2008, %v2007
    %v2010 = vsel %vm1615, %v2008, %v2009
    %v2011 = vsel %vm1617, %v2008, %v2010
    %v2012 = vsel %vm1619, %v2008, %v2011
    %v2013 = vsel %vm1608, %v1372, %v1372
    %v2014 = vsel %vm1610, %v1372, %v2013
    %v2015 = vrot.slane %v1374, 7
    %v2016 = vsel %vm1613, %v2015, %v2014
    %v2017 = vsel %vm1615, %v2015, %v2016
    %v2018 = vsel %vm1617, %v2015, %v2017
    %v2019 = vsel %vm1619, %v2015, %v2018
    %v2020 = vsel %vm1608, %v1376, %v1376
    %v2021 = vsel %vm1610, %v1376, %v2020
    %v2022 = vrot.slane %v1378, 7
    %v2023 = vsel %vm1613, %v2022, %v2021
    %v2024 = vsel %vm1615, %v2022, %v2023
    %v2025 = vsel %vm1617, %v2022, %v2024
    %v2026 = vsel %vm1619, %v2022, %v2025
    %v2027 = vsel %vm1608, %v1380, %v1380
    %v2028 = vsel %vm1610, %v1380, %v2027
    %v2029 = vrot.slane %v1382, 7
    %v2030 = vsel %vm1613, %v2029, %v2028
    %v2031 = vsel %vm1615, %v2029, %v2030
    %v2032 = vsel %vm1617, %v2029, %v2031
    %v2033 = vsel %vm1619, %v2029, %v2032
    %v2034 = vsel %vm1608, %v1496, %v1496
    %v2035 = vsel %vm1610, %v1496, %v2034
    %v2036 = vrot.slane %v1498, 7
    %v2037 = vsel %vm1613, %v2036, %v2035
    %v2038 = vsel %vm1615, %v2036, %v2037
    %v2039 = vsel %vm1617, %v2036, %v2038
    %v2040 = vsel %vm1619, %v2036, %v2039
    %v2041 = vsel %vm1608, %v1500, %v1500
    %v2042 = vsel %vm1610, %v1500, %v2041
    %v2043 = vrot.slane %v1502, 7
    %v2044 = vsel %vm1613, %v2043, %v2042
    %v2045 = vsel %vm1615, %v2043, %v2044
    %v2046 = vsel %vm1617, %v2043, %v2045
    %v2047 = vsel %vm1619, %v2043, %v2046
    %v2048 = vsel %vm1608, %v1504, %v1504
    %v2049 = vsel %vm1610, %v1504, %v2048
    %v2050 = vrot.slane %v1506, 7
    %v2051 = vsel %vm1613, %v2050, %v2049
    %v2052 = vsel %vm1615, %v2050, %v2051
    %v2053 = vsel %vm1617, %v2050, %v2052
    %v2054 = vsel %vm1619, %v2050, %v2053
    %v2055 = vsel %vm1608, %v1508, %v1508
    %v2056 = vsel %vm1610, %v1508, %v2055
    %v2057 = vrot.slane %v1510, 7
    %v2058 = vsel %vm1613, %v2057, %v2056
    %v2059 = vsel %vm1615, %v2057, %v2058
    %v2060 = vsel %vm1617, %v2057, %v2059
    %v2061 = vsel %vm1619, %v2057, %v2060
    %v2062 = vsel %vm1608, %v599, %v599
    %v2063 = vsel %vm1610, %v599, %v2062
    %v2064 = vrot.slane %v600, 7
    %v2065 = vsel %vm1613, %v2064, %v2063
    %v2066 = vsel %vm1615, %v2064, %v2065
    %v2067 = vsel %vm1617, %v2064, %v2066
    %v2068 = vsel %vm1619, %v2064, %v2067
    %v2069 = vsel %vm1608, %v601, %v601
    %v2070 = vsel %vm1610, %v601, %v2069
    %v2071 = vrot.slane %v602, 7
    %v2072 = vsel %vm1613, %v2071, %v2070
    %v2073 = vsel %vm1615, %v2071, %v2072
    %v2074 = vsel %vm1617, %v2071, %v2073
    %v2075 = vsel %vm1619, %v2071, %v2074
    %v2076 = vsel %vm1608, %v603, %v603
    %v2077 = vsel %vm1610, %v603, %v2076
    %v2078 = vrot.slane %v604, 7
    %v2079 = vsel %vm1613, %v2078, %v2077
    %v2080 = vsel %vm1615, %v2078, %v2079
    %v2081 = vsel %vm1617, %v2078, %v2080
    %v2082 = vsel %vm1619, %v2078, %v2081
    %v2083 = vsel %vm1608, %v605, %v605
    %v2084 = vsel %vm1610, %v605, %v2083
    %v2085 = vrot.slane %v606, 7
    %v2086 = vsel %vm1613, %v2085, %v2084
    %v2087 = vsel %vm1615, %v2085, %v2086
    %v2088 = vsel %vm1617, %v2085, %v2087
    %v2089 = vsel %vm1619, %v2085, %v2088
    %v2090 = vsel %vm1608, %v744, %v744
    %v2091 = vsel %vm1610, %v744, %v2090
    %v2092 = vrot.slane %v746, 7
    %v2093 = vsel %vm1613, %v2092, %v2091
    %v2094 = vsel %vm1615, %v2092, %v2093
    %v2095 = vsel %vm1617, %v2092, %v2094
    %v2096 = vsel %vm1619, %v2092, %v2095
    %v2097 = vsel %vm1608, %v748, %v748
    %v2098 = vsel %vm1610, %v748, %v2097
    %v2099 = vrot.slane %v750, 7
    %v2100 = vsel %vm1613, %v2099, %v2098
    %v2101 = vsel %vm1615, %v2099, %v2100
    %v2102 = vsel %vm1617, %v2099, %v2101
    %v2103 = vsel %vm1619, %v2099, %v2102
    %v2104 = vsel %vm1608, %v752, %v752
    %v2105 = vsel %vm1610, %v752, %v2104
    %v2106 = vrot.slane %v754, 7
    %v2107 = vsel %vm1613, %v2106, %v2105
    %v2108 = vsel %vm1615, %v2106, %v2107
    %v2109 = vsel %vm1617, %v2106, %v2108
    %v2110 = vsel %vm1619, %v2106, %v2109
    %v2111 = vsel %vm1608, %v756, %v756
    %v2112 = vsel %vm1610, %v756, %v2111
    %v2113 = vrot.slane %v758, 7
    %v2114 = vsel %vm1613, %v2113, %v2112
    %v2115 = vsel %vm1615, %v2113, %v2114
    %v2116 = vsel %vm1617, %v2113, %v2115
    %v2117 = vsel %vm1619, %v2113, %v2116
    %v2118 = vsel %vm1608, %v872, %v872
    %v2119 = vsel %vm1610, %v872, %v2118
    %v2120 = vrot.slane %v874, 7
    %v2121 = vsel %vm1613, %v2120, %v2119
    %v2122 = vsel %vm1615, %v2120, %v2121
    %v2123 = vsel %vm1617, %v2120, %v2122
    %v2124 = vsel %vm1619, %v2120, %v2123
    %v2125 = vsel %vm1608, %v876, %v876
    %v2126 = vsel %vm1610, %v876, %v2125
    %v2127 = vrot.slane %v878, 7
    %v2128 = vsel %vm1613, %v2127, %v2126
    %v2129 = vsel %vm1615, %v2127, %v2128
    %v2130 = vsel %vm1617, %v2127, %v2129
    %v2131 = vsel %vm1619, %v2127, %v2130
    %v2132 = vsel %vm1608, %v880, %v880
    %v2133 = vsel %vm1610, %v880, %v2132
    %v2134 = vrot.slane %v882, 7
    %v2135 = vsel %vm1613, %v2134, %v2133
    %v2136 = vsel %vm1615, %v2134, %v2135
    %v2137 = vsel %vm1617, %v2134, %v2136
    %v2138 = vsel %vm1619, %v2134, %v2137
    %v2139 = vsel %vm1608, %v884, %v884
    %v2140 = vsel %vm1610, %v884, %v2139
    %v2141 = vrot.slane %v886, 7
    %v2142 = vsel %vm1613, %v2141, %v2140
    %v2143 = vsel %vm1615, %v2141, %v2142
    %v2144 = vsel %vm1617, %v2141, %v2143
    %v2145 = vsel %vm1619, %v2141, %v2144
    %v2146 = vsel %vm1608, %v1000, %v1000
    %v2147 = vsel %vm1610, %v1000, %v2146
    %v2148 = vrot.slane %v1002, 7
    %v2149 = vsel %vm1613, %v2148, %v2147
    %v2150 = vsel %vm1615, %v2148, %v2149
    %v2151 = vsel %vm1617, %v2148, %v2150
    %v2152 = vsel %vm1619, %v2148, %v2151
    %v2153 = vsel %vm1608, %v1004, %v1004
    %v2154 = vsel %vm1610, %v1004, %v2153
    %v2155 = vrot.slane %v1006, 7
    %v2156 = vsel %vm1613, %v2155, %v2154
    %v2157 = vsel %vm1615, %v2155, %v2156
    %v2158 = vsel %vm1617, %v2155, %v2157
    %v2159 = vsel %vm1619, %v2155, %v2158
    %v2160 = vsel %vm1608, %v1008, %v1008
    %v2161 = vsel %vm1610, %v1008, %v2160
    %v2162 = vrot.slane %v1010, 7
    %v2163 = vsel %vm1613, %v2162, %v2161
    %v2164 = vsel %vm1615, %v2162, %v2163
    %v2165 = vsel %vm1617, %v2162, %v2164
    %v2166 = vsel %vm1619, %v2162, %v2165
    %v2167 = vsel %vm1608, %v1012, %v1012
    %v2168 = vsel %vm1610, %v1012, %v2167
    %v2169 = vrot.slane %v1014, 7
    %v2170 = vsel %vm1613, %v2169, %v2168
    %v2171 = vsel %vm1615, %v2169, %v2170
    %v2172 = vsel %vm1617, %v2169, %v2171
    %v2173 = vsel %vm1619, %v2169, %v2172
    %v2174 = vsel %vm1608, %v1128, %v1128
    %v2175 = vsel %vm1610, %v1128, %v2174
    %v2176 = vrot.slane %v1130, 7
    %v2177 = vsel %vm1613, %v2176, %v2175
    %v2178 = vsel %vm1615, %v2176, %v2177
    %v2179 = vsel %vm1617, %v2176, %v2178
    %v2180 = vsel %vm1619, %v2176, %v2179
    %v2181 = vsel %vm1608, %v1132, %v1132
    %v2182 = vsel %vm1610, %v1132, %v2181
    %v2183 = vrot.slane %v1134, 7
    %v2184 = vsel %vm1613, %v2183, %v2182
    %v2185 = vsel %vm1615, %v2183, %v2184
    %v2186 = vsel %vm1617, %v2183, %v2185
    %v2187 = vsel %vm1619, %v2183, %v2186
    %v2188 = vsel %vm1608, %v1136, %v1136
    %v2189 = vsel %vm1610, %v1136, %v2188
    %v2190 = vrot.slane %v1138, 7
    %v2191 = vsel %vm1613, %v2190, %v2189
    %v2192 = vsel %vm1615, %v2190, %v2191
    %v2193 = vsel %vm1617, %v2190, %v2192
    %v2194 = vsel %vm1619, %v2190, %v2193
    %v2195 = vsel %vm1608, %v1140, %v1140
    %v2196 = vsel %vm1610, %v1140, %v2195
    %v2197 = vrot.slane %v1142, 7
    %v2198 = vsel %vm1613, %v2197, %v2196
    %v2199 = vsel %vm1615, %v2197, %v2198
    %v2200 = vsel %vm1617, %v2197, %v2199
    %v2201 = vsel %vm1619, %v2197, %v2200
    %v2202 = vsel %vm1608, %v1256, %v1256
    %v2203 = vsel %vm1610, %v1256, %v2202
    %v2204 = vrot.slane %v1258, 7
    %v2205 = vsel %vm1613, %v2204, %v2203
    %v2206 = vsel %vm1615, %v2204, %v2205
    %v2207 = vsel %vm1617, %v2204, %v2206
    %v2208 = vsel %vm1619, %v2204, %v2207
    %v2209 = vsel %vm1608, %v1260, %v1260
    %v2210 = vsel %vm1610, %v1260, %v2209
    %v2211 = vrot.slane %v1262, 7
    %v2212 = vsel %vm1613, %v2211, %v2210
    %v2213 = vsel %vm1615, %v2211, %v2212
    %v2214 = vsel %vm1617, %v2211, %v2213
    %v2215 = vsel %vm1619, %v2211, %v2214
    %v2216 = vsel %vm1608, %v1264, %v1264
    %v2217 = vsel %vm1610, %v1264, %v2216
    %v2218 = vrot.slane %v1266, 7
    %v2219 = vsel %vm1613, %v2218, %v2217
    %v2220 = vsel %vm1615, %v2218, %v2219
    %v2221 = vsel %vm1617, %v2218, %v2220
    %v2222 = vsel %vm1619, %v2218, %v2221
    %v2223 = vsel %vm1608, %v1268, %v1268
    %v2224 = vsel %vm1610, %v1268, %v2223
    %v2225 = vrot.slane %v1270, 7
    %v2226 = vsel %vm1613, %v2225, %v2224
    %v2227 = vsel %vm1615, %v2225, %v2226
    %v2228 = vsel %vm1617, %v2225, %v2227
    %v2229 = vsel %vm1619, %v2225, %v2228
    %v2230 = vsel %vm1608, %v1384, %v1384
    %v2231 = vsel %vm1610, %v1384, %v2230
    %v2232 = vrot.slane %v1386, 7
    %v2233 = vsel %vm1613, %v2232, %v2231
    %v2234 = vsel %vm1615, %v2232, %v2233
    %v2235 = vsel %vm1617, %v2232, %v2234
    %v2236 = vsel %vm1619, %v2232, %v2235
    %v2237 = vsel %vm1608, %v1388, %v1388
    %v2238 = vsel %vm1610, %v1388, %v2237
    %v2239 = vrot.slane %v1390, 7
    %v2240 = vsel %vm1613, %v2239, %v2238
    %v2241 = vsel %vm1615, %v2239, %v2240
    %v2242 = vsel %vm1617, %v2239, %v2241
    %v2243 = vsel %vm1619, %v2239, %v2242
    %v2244 = vsel %vm1608, %v1392, %v1392
    %v2245 = vsel %vm1610, %v1392, %v2244
    %v2246 = vrot.slane %v1394, 7
    %v2247 = vsel %vm1613, %v2246, %v2245
    %v2248 = vsel %vm1615, %v2246, %v2247
    %v2249 = vsel %vm1617, %v2246, %v2248
    %v2250 = vsel %vm1619, %v2246, %v2249
    %v2251 = vsel %vm1608, %v1396, %v1396
    %v2252 = vsel %vm1610, %v1396, %v2251
    %v2253 = vrot.slane %v1398, 7
    %v2254 = vsel %vm1613, %v2253, %v2252
    %v2255 = vsel %vm1615, %v2253, %v2254
    %v2256 = vsel %vm1617, %v2253, %v2255
    %v2257 = vsel %vm1619, %v2253, %v2256
    %v2258 = vsel %vm1608, %v1512, %v1512
    %v2259 = vsel %vm1610, %v1512, %v2258
    %v2260 = vrot.slane %v1514, 7
    %v2261 = vsel %vm1613, %v2260, %v2259
    %v2262 = vsel %vm1615, %v2260, %v2261
    %v2263 = vsel %vm1617, %v2260, %v2262
    %v2264 = vsel %vm1619, %v2260, %v2263
    %v2265 = vsel %vm1608, %v1516, %v1516
    %v2266 = vsel %vm1610, %v1516, %v2265
    %v2267 = vrot.slane %v1518, 7
    %v2268 = vsel %vm1613, %v2267, %v2266
    %v2269 = vsel %vm1615, %v2267, %v2268
    %v2270 = vsel %vm1617, %v2267, %v2269
    %v2271 = vsel %vm1619, %v2267, %v2270
    %v2272 = vsel %vm1608, %v1520, %v1520
    %v2273 = vsel %vm1610, %v1520, %v2272
    %v2274 = vrot.slane %v1522, 7
    %v2275 = vsel %vm1613, %v2274, %v2273
    %v2276 = vsel %vm1615, %v2274, %v2275
    %v2277 = vsel %vm1617, %v2274, %v2276
    %v2278 = vsel %vm1619, %v2274, %v2277
    %v2279 = vsel %vm1608, %v1524, %v1524
    %v2280 = vsel %vm1610, %v1524, %v2279
    %v2281 = vrot.slane %v1526, 7
    %v2282 = vsel %vm1613, %v2281, %v2280
    %v2283 = vsel %vm1615, %v2281, %v2282
    %v2284 = vsel %vm1617, %v2281, %v2283
    %v2285 = vsel %vm1619, %v2281, %v2284
    %v2286 = vsel %vm1608, %v607, %v607
    %v2287 = vsel %vm1610, %v607, %v2286
    %v2288 = vrot.slane %v608, 7
    %v2289 = vsel %vm1613, %v2288, %v2287
    %v2290 = vsel %vm1615, %v2288, %v2289
    %v2291 = vsel %vm1617, %v2288, %v2290
    %v2292 = vsel %vm1619, %v2288, %v2291
    %v2293 = vsel %vm1608, %v609, %v609
    %v2294 = vsel %vm1610, %v609, %v2293
    %v2295 = vrot.slane %v610, 7
    %v2296 = vsel %vm1613, %v2295, %v2294
    %v2297 = vsel %vm1615, %v2295, %v2296
    %v2298 = vsel %vm1617, %v2295, %v2297
    %v2299 = vsel %vm1619, %v2295, %v2298
    %v2300 = vsel %vm1608, %v611, %v611
    %v2301 = vsel %vm1610, %v611, %v2300
    %v2302 = vrot.slane %v612, 7
    %v2303 = vsel %vm1613, %v2302, %v2301
    %v2304 = vsel %vm1615, %v2302, %v2303
    %v2305 = vsel %vm1617, %v2302, %v2304
    %v2306 = vsel %vm1619, %v2302, %v2305
    %v2307 = vsel %vm1608, %v613, %v613
    %v2308 = vsel %vm1610, %v613, %v2307
    %v2309 = vrot.slane %v614, 7
    %v2310 = vsel %vm1613, %v2309, %v2308
    %v2311 = vsel %vm1615, %v2309, %v2310
    %v2312 = vsel %vm1617, %v2309, %v2311
    %v2313 = vsel %vm1619, %v2309, %v2312
    %v2314 = vsel %vm1608, %v760, %v760
    %v2315 = vsel %vm1610, %v760, %v2314
    %v2316 = vrot.slane %v762, 7
    %v2317 = vsel %vm1613, %v2316, %v2315
    %v2318 = vsel %vm1615, %v2316, %v2317
    %v2319 = vsel %vm1617, %v2316, %v2318
    %v2320 = vsel %vm1619, %v2316, %v2319
    %v2321 = vsel %vm1608, %v764, %v764
    %v2322 = vsel %vm1610, %v764, %v2321
    %v2323 = vrot.slane %v766, 7
    %v2324 = vsel %vm1613, %v2323, %v2322
    %v2325 = vsel %vm1615, %v2323, %v2324
    %v2326 = vsel %vm1617, %v2323, %v2325
    %v2327 = vsel %vm1619, %v2323, %v2326
    %v2328 = vsel %vm1608, %v768, %v768
    %v2329 = vsel %vm1610, %v768, %v2328
    %v2330 = vrot.slane %v770, 7
    %v2331 = vsel %vm1613, %v2330, %v2329
    %v2332 = vsel %vm1615, %v2330, %v2331
    %v2333 = vsel %vm1617, %v2330, %v2332
    %v2334 = vsel %vm1619, %v2330, %v2333
    %v2335 = vsel %vm1608, %v772, %v772
    %v2336 = vsel %vm1610, %v772, %v2335
    %v2337 = vrot.slane %v774, 7
    %v2338 = vsel %vm1613, %v2337, %v2336
    %v2339 = vsel %vm1615, %v2337, %v2338
    %v2340 = vsel %vm1617, %v2337, %v2339
    %v2341 = vsel %vm1619, %v2337, %v2340
    %v2342 = vsel %vm1608, %v888, %v888
    %v2343 = vsel %vm1610, %v888, %v2342
    %v2344 = vrot.slane %v890, 7
    %v2345 = vsel %vm1613, %v2344, %v2343
    %v2346 = vsel %vm1615, %v2344, %v2345
    %v2347 = vsel %vm1617, %v2344, %v2346
    %v2348 = vsel %vm1619, %v2344, %v2347
    %v2349 = vsel %vm1608, %v892, %v892
    %v2350 = vsel %vm1610, %v892, %v2349
    %v2351 = vrot.slane %v894, 7
    %v2352 = vsel %vm1613, %v2351, %v2350
    %v2353 = vsel %vm1615, %v2351, %v2352
    %v2354 = vsel %vm1617, %v2351, %v2353
    %v2355 = vsel %vm1619, %v2351, %v2354
    %v2356 = vsel %vm1608, %v896, %v896
    %v2357 = vsel %vm1610, %v896, %v2356
    %v2358 = vrot.slane %v898, 7
    %v2359 = vsel %vm1613, %v2358, %v2357
    %v2360 = vsel %vm1615, %v2358, %v2359
    %v2361 = vsel %vm1617, %v2358, %v2360
    %v2362 = vsel %vm1619, %v2358, %v2361
    %v2363 = vsel %vm1608, %v900, %v900
    %v2364 = vsel %vm1610, %v900, %v2363
    %v2365 = vrot.slane %v902, 7
    %v2366 = vsel %vm1613, %v2365, %v2364
    %v2367 = vsel %vm1615, %v2365, %v2366
    %v2368 = vsel %vm1617, %v2365, %v2367
    %v2369 = vsel %vm1619, %v2365, %v2368
    %v2370 = vsel %vm1608, %v1016, %v1016
    %v2371 = vsel %vm1610, %v1016, %v2370
    %v2372 = vrot.slane %v1018, 7
    %v2373 = vsel %vm1613, %v2372, %v2371
    %v2374 = vsel %vm1615, %v2372, %v2373
    %v2375 = vsel %vm1617, %v2372, %v2374
    %v2376 = vsel %vm1619, %v2372, %v2375
    %v2377 = vsel %vm1608, %v1020, %v1020
    %v2378 = vsel %vm1610, %v1020, %v2377
    %v2379 = vrot.slane %v1022, 7
    %v2380 = vsel %vm1613, %v2379, %v2378
    %v2381 = vsel %vm1615, %v2379, %v2380
    %v2382 = vsel %vm1617, %v2379, %v2381
    %v2383 = vsel %vm1619, %v2379, %v2382
    %v2384 = vsel %vm1608, %v1024, %v1024
    %v2385 = vsel %vm1610, %v1024, %v2384
    %v2386 = vrot.slane %v1026, 7
    %v2387 = vsel %vm1613, %v2386, %v2385
    %v2388 = vsel %vm1615, %v2386, %v2387
    %v2389 = vsel %vm1617, %v2386, %v2388
    %v2390 = vsel %vm1619, %v2386, %v2389
    %v2391 = vsel %vm1608, %v1028, %v1028
    %v2392 = vsel %vm1610, %v1028, %v2391
    %v2393 = vrot.slane %v1030, 7
    %v2394 = vsel %vm1613, %v2393, %v2392
    %v2395 = vsel %vm1615, %v2393, %v2394
    %v2396 = vsel %vm1617, %v2393, %v2395
    %v2397 = vsel %vm1619, %v2393, %v2396
    %v2398 = vsel %vm1608, %v1144, %v1144
    %v2399 = vsel %vm1610, %v1144, %v2398
    %v2400 = vrot.slane %v1146, 7
    %v2401 = vsel %vm1613, %v2400, %v2399
    %v2402 = vsel %vm1615, %v2400, %v2401
    %v2403 = vsel %vm1617, %v2400, %v2402
    %v2404 = vsel %vm1619, %v2400, %v2403
    %v2405 = vsel %vm1608, %v1148, %v1148
    %v2406 = vsel %vm1610, %v1148, %v2405
    %v2407 = vrot.slane %v1150, 7
    %v2408 = vsel %vm1613, %v2407, %v2406
    %v2409 = vsel %vm1615, %v2407, %v2408
    %v2410 = vsel %vm1617, %v2407, %v2409
    %v2411 = vsel %vm1619, %v2407, %v2410
    %v2412 = vsel %vm1608, %v1152, %v1152
    %v2413 = vsel %vm1610, %v1152, %v2412
    %v2414 = vrot.slane %v1154, 7
    %v2415 = vsel %vm1613, %v2414, %v2413
    %v2416 = vsel %vm1615, %v2414, %v2415
    %v2417 = vsel %vm1617, %v2414, %v2416
    %v2418 = vsel %vm1619, %v2414, %v2417
    %v2419 = vsel %vm1608, %v1156, %v1156
    %v2420 = vsel %vm1610, %v1156, %v2419
    %v2421 = vrot.slane %v1158, 7
    %v2422 = vsel %vm1613, %v2421, %v2420
    %v2423 = vsel %vm1615, %v2421, %v2422
    %v2424 = vsel %vm1617, %v2421, %v2423
    %v2425 = vsel %vm1619, %v2421, %v2424
    %v2426 = vsel %vm1608, %v1272, %v1272
    %v2427 = vsel %vm1610, %v1272, %v2426
    %v2428 = vrot.slane %v1274, 7
    %v2429 = vsel %vm1613, %v2428, %v2427
    %v2430 = vsel %vm1615, %v2428, %v2429
    %v2431 = vsel %vm1617, %v2428, %v2430
    %v2432 = vsel %vm1619, %v2428, %v2431
    %v2433 = vsel %vm1608, %v1276, %v1276
    %v2434 = vsel %vm1610, %v1276, %v2433
    %v2435 = vrot.slane %v1278, 7
    %v2436 = vsel %vm1613, %v2435, %v2434
    %v2437 = vsel %vm1615, %v2435, %v2436
    %v2438 = vsel %vm1617, %v2435, %v2437
    %v2439 = vsel %vm1619, %v2435, %v2438
    %v2440 = vsel %vm1608, %v1280, %v1280
    %v2441 = vsel %vm1610, %v1280, %v2440
    %v2442 = vrot.slane %v1282, 7
    %v2443 = vsel %vm1613, %v2442, %v2441
    %v2444 = vsel %vm1615, %v2442, %v2443
    %v2445 = vsel %vm1617, %v2442, %v2444
    %v2446 = vsel %vm1619, %v2442, %v2445
    %v2447 = vsel %vm1608, %v1284, %v1284
    %v2448 = vsel %vm1610, %v1284, %v2447
    %v2449 = vrot.slane %v1286, 7
    %v2450 = vsel %vm1613, %v2449, %v2448
    %v2451 = vsel %vm1615, %v2449, %v2450
    %v2452 = vsel %vm1617, %v2449, %v2451
    %v2453 = vsel %vm1619, %v2449, %v2452
    %v2454 = vsel %vm1608, %v1400, %v1400
    %v2455 = vsel %vm1610, %v1400, %v2454
    %v2456 = vrot.slane %v1402, 7
    %v2457 = vsel %vm1613, %v2456, %v2455
    %v2458 = vsel %vm1615, %v2456, %v2457
    %v2459 = vsel %vm1617, %v2456, %v2458
    %v2460 = vsel %vm1619, %v2456, %v2459
    %v2461 = vsel %vm1608, %v1404, %v1404
    %v2462 = vsel %vm1610, %v1404, %v2461
    %v2463 = vrot.slane %v1406, 7
    %v2464 = vsel %vm1613, %v2463, %v2462
    %v2465 = vsel %vm1615, %v2463, %v2464
    %v2466 = vsel %vm1617, %v2463, %v2465
    %v2467 = vsel %vm1619, %v2463, %v2466
    %v2468 = vsel %vm1608, %v1408, %v1408
    %v2469 = vsel %vm1610, %v1408, %v2468
    %v2470 = vrot.slane %v1410, 7
    %v2471 = vsel %vm1613, %v2470, %v2469
    %v2472 = vsel %vm1615, %v2470, %v2471
    %v2473 = vsel %vm1617, %v2470, %v2472
    %v2474 = vsel %vm1619, %v2470, %v2473
    %v2475 = vsel %vm1608, %v1412, %v1412
    %v2476 = vsel %vm1610, %v1412, %v2475
    %v2477 = vrot.slane %v1414, 7
    %v2478 = vsel %vm1613, %v2477, %v2476
    %v2479 = vsel %vm1615, %v2477, %v2478
    %v2480 = vsel %vm1617, %v2477, %v2479
    %v2481 = vsel %vm1619, %v2477, %v2480
    %v2482 = vsel %vm1608, %v1528, %v1528
    %v2483 = vsel %vm1610, %v1528, %v2482
    %v2484 = vrot.slane %v1530, 7
    %v2485 = vsel %vm1613, %v2484, %v2483
    %v2486 = vsel %vm1615, %v2484, %v2485
    %v2487 = vsel %vm1617, %v2484, %v2486
    %v2488 = vsel %vm1619, %v2484, %v2487
    %v2489 = vsel %vm1608, %v1532, %v1532
    %v2490 = vsel %vm1610, %v1532, %v2489
    %v2491 = vrot.slane %v1534, 7
    %v2492 = vsel %vm1613, %v2491, %v2490
    %v2493 = vsel %vm1615, %v2491, %v2492
    %v2494 = vsel %vm1617, %v2491, %v2493
    %v2495 = vsel %vm1619, %v2491, %v2494
    %v2496 = vsel %vm1608, %v1536, %v1536
    %v2497 = vsel %vm1610, %v1536, %v2496
    %v2498 = vrot.slane %v1538, 7
    %v2499 = vsel %vm1613, %v2498, %v2497
    %v2500 = vsel %vm1615, %v2498, %v2499
    %v2501 = vsel %vm1617, %v2498, %v2500
    %v2502 = vsel %vm1619, %v2498, %v2501
    %v2503 = vsel %vm1608, %v1540, %v1540
    %v2504 = vsel %vm1610, %v1540, %v2503
    %v2505 = vrot.slane %v1542, 7
    %v2506 = vsel %vm1613, %v2505, %v2504
    %v2507 = vsel %vm1615, %v2505, %v2506
    %v2508 = vsel %vm1617, %v2505, %v2507
    %v2509 = vsel %vm1619, %v2505, %v2508
    %v2510 = vsel %vm1608, %v615, %v615
    %v2511 = vsel %vm1610, %v615, %v2510
    %v2512 = vrot.slane %v616, 7
    %v2513 = vsel %vm1613, %v2512, %v2511
    %v2514 = vsel %vm1615, %v2512, %v2513
    %v2515 = vsel %vm1617, %v2512, %v2514
    %v2516 = vsel %vm1619, %v2512, %v2515
    %v2517 = vsel %vm1608, %v617, %v617
    %v2518 = vsel %vm1610, %v617, %v2517
    %v2519 = vrot.slane %v618, 7
    %v2520 = vsel %vm1613, %v2519, %v2518
    %v2521 = vsel %vm1615, %v2519, %v2520
    %v2522 = vsel %vm1617, %v2519, %v2521
    %v2523 = vsel %vm1619, %v2519, %v2522
    %v2524 = vsel %vm1608, %v619, %v619
    %v2525 = vsel %vm1610, %v619, %v2524
    %v2526 = vrot.slane %v620, 7
    %v2527 = vsel %vm1613, %v2526, %v2525
    %v2528 = vsel %vm1615, %v2526, %v2527
    %v2529 = vsel %vm1617, %v2526, %v2528
    %v2530 = vsel %vm1619, %v2526, %v2529
    %v2531 = vsel %vm1608, %v621, %v621
    %v2532 = vsel %vm1610, %v621, %v2531
    %v2533 = vrot.slane %v622, 7
    %v2534 = vsel %vm1613, %v2533, %v2532
    %v2535 = vsel %vm1615, %v2533, %v2534
    %v2536 = vsel %vm1617, %v2533, %v2535
    %v2537 = vsel %vm1619, %v2533, %v2536
    %v2538 = vsel %vm1608, %v776, %v776
    %v2539 = vsel %vm1610, %v776, %v2538
    %v2540 = vrot.slane %v778, 7
    %v2541 = vsel %vm1613, %v2540, %v2539
    %v2542 = vsel %vm1615, %v2540, %v2541
    %v2543 = vsel %vm1617, %v2540, %v2542
    %v2544 = vsel %vm1619, %v2540, %v2543
    %v2545 = vsel %vm1608, %v780, %v780
    %v2546 = vsel %vm1610, %v780, %v2545
    %v2547 = vrot.slane %v782, 7
    %v2548 = vsel %vm1613, %v2547, %v2546
    %v2549 = vsel %vm1615, %v2547, %v2548
    %v2550 = vsel %vm1617, %v2547, %v2549
    %v2551 = vsel %vm1619, %v2547, %v2550
    %v2552 = vsel %vm1608, %v784, %v784
    %v2553 = vsel %vm1610, %v784, %v2552
    %v2554 = vrot.slane %v786, 7
    %v2555 = vsel %vm1613, %v2554, %v2553
    %v2556 = vsel %vm1615, %v2554, %v2555
    %v2557 = vsel %vm1617, %v2554, %v2556
    %v2558 = vsel %vm1619, %v2554, %v2557
    %v2559 = vsel %vm1608, %v788, %v788
    %v2560 = vsel %vm1610, %v788, %v2559
    %v2561 = vrot.slane %v790, 7
    %v2562 = vsel %vm1613, %v2561, %v2560
    %v2563 = vsel %vm1615, %v2561, %v2562
    %v2564 = vsel %vm1617, %v2561, %v2563
    %v2565 = vsel %vm1619, %v2561, %v2564
    %v2566 = vsel %vm1608, %v904, %v904
    %v2567 = vsel %vm1610, %v904, %v2566
    %v2568 = vrot.slane %v906, 7
    %v2569 = vsel %vm1613, %v2568, %v2567
    %v2570 = vsel %vm1615, %v2568, %v2569
    %v2571 = vsel %vm1617, %v2568, %v2570
    %v2572 = vsel %vm1619, %v2568, %v2571
    %v2573 = vsel %vm1608, %v908, %v908
    %v2574 = vsel %vm1610, %v908, %v2573
    %v2575 = vrot.slane %v910, 7
    %v2576 = vsel %vm1613, %v2575, %v2574
    %v2577 = vsel %vm1615, %v2575, %v2576
    %v2578 = vsel %vm1617, %v2575, %v2577
    %v2579 = vsel %vm1619, %v2575, %v2578
    %v2580 = vsel %vm1608, %v912, %v912
    %v2581 = vsel %vm1610, %v912, %v2580
    %v2582 = vrot.slane %v914, 7
    %v2583 = vsel %vm1613, %v2582, %v2581
    %v2584 = vsel %vm1615, %v2582, %v2583
    %v2585 = vsel %vm1617, %v2582, %v2584
    %v2586 = vsel %vm1619, %v2582, %v2585
    %v2587 = vsel %vm1608, %v916, %v916
    %v2588 = vsel %vm1610, %v916, %v2587
    %v2589 = vrot.slane %v918, 7
    %v2590 = vsel %vm1613, %v2589, %v2588
    %v2591 = vsel %vm1615, %v2589, %v2590
    %v2592 = vsel %vm1617, %v2589, %v2591
    %v2593 = vsel %vm1619, %v2589, %v2592
    %v2594 = vsel %vm1608, %v1032, %v1032
    %v2595 = vsel %vm1610, %v1032, %v2594
    %v2596 = vrot.slane %v1034, 7
    %v2597 = vsel %vm1613, %v2596, %v2595
    %v2598 = vsel %vm1615, %v2596, %v2597
    %v2599 = vsel %vm1617, %v2596, %v2598
    %v2600 = vsel %vm1619, %v2596, %v2599
    %v2601 = vsel %vm1608, %v1036, %v1036
    %v2602 = vsel %vm1610, %v1036, %v2601
    %v2603 = vrot.slane %v1038, 7
    %v2604 = vsel %vm1613, %v2603, %v2602
    %v2605 = vsel %vm1615, %v2603, %v2604
    %v2606 = vsel %vm1617, %v2603, %v2605
    %v2607 = vsel %vm1619, %v2603, %v2606
    %v2608 = vsel %vm1608, %v1040, %v1040
    %v2609 = vsel %vm1610, %v1040, %v2608
    %v2610 = vrot.slane %v1042, 7
    %v2611 = vsel %vm1613, %v2610, %v2609
    %v2612 = vsel %vm1615, %v2610, %v2611
    %v2613 = vsel %vm1617, %v2610, %v2612
    %v2614 = vsel %vm1619, %v2610, %v2613
    %v2615 = vsel %vm1608, %v1044, %v1044
    %v2616 = vsel %vm1610, %v1044, %v2615
    %v2617 = vrot.slane %v1046, 7
    %v2618 = vsel %vm1613, %v2617, %v2616
    %v2619 = vsel %vm1615, %v2617, %v2618
    %v2620 = vsel %vm1617, %v2617, %v2619
    %v2621 = vsel %vm1619, %v2617, %v2620
    %v2622 = vsel %vm1608, %v1160, %v1160
    %v2623 = vsel %vm1610, %v1160, %v2622
    %v2624 = vrot.slane %v1162, 7
    %v2625 = vsel %vm1613, %v2624, %v2623
    %v2626 = vsel %vm1615, %v2624, %v2625
    %v2627 = vsel %vm1617, %v2624, %v2626
    %v2628 = vsel %vm1619, %v2624, %v2627
    %v2629 = vsel %vm1608, %v1164, %v1164
    %v2630 = vsel %vm1610, %v1164, %v2629
    %v2631 = vrot.slane %v1166, 7
    %v2632 = vsel %vm1613, %v2631, %v2630
    %v2633 = vsel %vm1615, %v2631, %v2632
    %v2634 = vsel %vm1617, %v2631, %v2633
    %v2635 = vsel %vm1619, %v2631, %v2634
    %v2636 = vsel %vm1608, %v1168, %v1168
    %v2637 = vsel %vm1610, %v1168, %v2636
    %v2638 = vrot.slane %v1170, 7
    %v2639 = vsel %vm1613, %v2638, %v2637
    %v2640 = vsel %vm1615, %v2638, %v2639
    %v2641 = vsel %vm1617, %v2638, %v2640
    %v2642 = vsel %vm1619, %v2638, %v2641
    %v2643 = vsel %vm1608, %v1172, %v1172
    %v2644 = vsel %vm1610, %v1172, %v2643
    %v2645 = vrot.slane %v1174, 7
    %v2646 = vsel %vm1613, %v2645, %v2644
    %v2647 = vsel %vm1615, %v2645, %v2646
    %v2648 = vsel %vm1617, %v2645, %v2647
    %v2649 = vsel %vm1619, %v2645, %v2648
    %v2650 = vsel %vm1608, %v1288, %v1288
    %v2651 = vsel %vm1610, %v1288, %v2650
    %v2652 = vrot.slane %v1290, 7
    %v2653 = vsel %vm1613, %v2652, %v2651
    %v2654 = vsel %vm1615, %v2652, %v2653
    %v2655 = vsel %vm1617, %v2652, %v2654
    %v2656 = vsel %vm1619, %v2652, %v2655
    %v2657 = vsel %vm1608, %v1292, %v1292
    %v2658 = vsel %vm1610, %v1292, %v2657
    %v2659 = vrot.slane %v1294, 7
    %v2660 = vsel %vm1613, %v2659, %v2658
    %v2661 = vsel %vm1615, %v2659, %v2660
    %v2662 = vsel %vm1617, %v2659, %v2661
    %v2663 = vsel %vm1619, %v2659, %v2662
    %v2664 = vsel %vm1608, %v1296, %v1296
    %v2665 = vsel %vm1610, %v1296, %v2664
    %v2666 = vrot.slane %v1298, 7
    %v2667 = vsel %vm1613, %v2666, %v2665
    %v2668 = vsel %vm1615, %v2666, %v2667
    %v2669 = vsel %vm1617, %v2666, %v2668
    %v2670 = vsel %vm1619, %v2666, %v2669
    %v2671 = vsel %vm1608, %v1300, %v1300
    %v2672 = vsel %vm1610, %v1300, %v2671
    %v2673 = vrot.slane %v1302, 7
    %v2674 = vsel %vm1613, %v2673, %v2672
    %v2675 = vsel %vm1615, %v2673, %v2674
    %v2676 = vsel %vm1617, %v2673, %v2675
    %v2677 = vsel %vm1619, %v2673, %v2676
    %v2678 = vsel %vm1608, %v1416, %v1416
    %v2679 = vsel %vm1610, %v1416, %v2678
    %v2680 = vrot.slane %v1418, 7
    %v2681 = vsel %vm1613, %v2680, %v2679
    %v2682 = vsel %vm1615, %v2680, %v2681
    %v2683 = vsel %vm1617, %v2680, %v2682
    %v2684 = vsel %vm1619, %v2680, %v2683
    %v2685 = vsel %vm1608, %v1420, %v1420
    %v2686 = vsel %vm1610, %v1420, %v2685
    %v2687 = vrot.slane %v1422, 7
    %v2688 = vsel %vm1613, %v2687, %v2686
    %v2689 = vsel %vm1615, %v2687, %v2688
    %v2690 = vsel %vm1617, %v2687, %v2689
    %v2691 = vsel %vm1619, %v2687, %v2690
    %v2692 = vsel %vm1608, %v1424, %v1424
    %v2693 = vsel %vm1610, %v1424, %v2692
    %v2694 = vrot.slane %v1426, 7
    %v2695 = vsel %vm1613, %v2694, %v2693
    %v2696 = vsel %vm1615, %v2694, %v2695
    %v2697 = vsel %vm1617, %v2694, %v2696
    %v2698 = vsel %vm1619, %v2694, %v2697
    %v2699 = vsel %vm1608, %v1428, %v1428
    %v2700 = vsel %vm1610, %v1428, %v2699
    %v2701 = vrot.slane %v1430, 7
    %v2702 = vsel %vm1613, %v2701, %v2700
    %v2703 = vsel %vm1615, %v2701, %v2702
    %v2704 = vsel %vm1617, %v2701, %v2703
    %v2705 = vsel %vm1619, %v2701, %v2704
    %v2706 = vsel %vm1608, %v1544, %v1544
    %v2707 = vsel %vm1610, %v1544, %v2706
    %v2708 = vrot.slane %v1546, 7
    %v2709 = vsel %vm1613, %v2708, %v2707
    %v2710 = vsel %vm1615, %v2708, %v2709
    %v2711 = vsel %vm1617, %v2708, %v2710
    %v2712 = vsel %vm1619, %v2708, %v2711
    %v2713 = vsel %vm1608, %v1548, %v1548
    %v2714 = vsel %vm1610, %v1548, %v2713
    %v2715 = vrot.slane %v1550, 7
    %v2716 = vsel %vm1613, %v2715, %v2714
    %v2717 = vsel %vm1615, %v2715, %v2716
    %v2718 = vsel %vm1617, %v2715, %v2717
    %v2719 = vsel %vm1619, %v2715, %v2718
    %v2720 = vsel %vm1608, %v1552, %v1552
    %v2721 = vsel %vm1610, %v1552, %v2720
    %v2722 = vrot.slane %v1554, 7
    %v2723 = vsel %vm1613, %v2722, %v2721
    %v2724 = vsel %vm1615, %v2722, %v2723
    %v2725 = vsel %vm1617, %v2722, %v2724
    %v2726 = vsel %vm1619, %v2722, %v2725
    %v2727 = vsel %vm1608, %v1556, %v1556
    %v2728 = vsel %vm1610, %v1556, %v2727
    %v2729 = vrot.slane %v1558, 7
    %v2730 = vsel %vm1613, %v2729, %v2728
    %v2731 = vsel %vm1615, %v2729, %v2730
    %v2732 = vsel %vm1617, %v2729, %v2731
    %v2733 = vsel %vm1619, %v2729, %v2732
    %v2734 = vsel %vm1608, %v623, %v623
    %v2735 = vsel %vm1610, %v623, %v2734
    %v2736 = vrot.slane %v624, 7
    %v2737 = vsel %vm1613, %v2736, %v2735
    %v2738 = vsel %vm1615, %v2736, %v2737
    %v2739 = vsel %vm1617, %v2736, %v2738
    %v2740 = vsel %vm1619, %v2736, %v2739
    %v2741 = vsel %vm1608, %v625, %v625
    %v2742 = vsel %vm1610, %v625, %v2741
    %v2743 = vrot.slane %v626, 7
    %v2744 = vsel %vm1613, %v2743, %v2742
    %v2745 = vsel %vm1615, %v2743, %v2744
    %v2746 = vsel %vm1617, %v2743, %v2745
    %v2747 = vsel %vm1619, %v2743, %v2746
    %v2748 = vsel %vm1608, %v627, %v627
    %v2749 = vsel %vm1610, %v627, %v2748
    %v2750 = vrot.slane %v628, 7
    %v2751 = vsel %vm1613, %v2750, %v2749
    %v2752 = vsel %vm1615, %v2750, %v2751
    %v2753 = vsel %vm1617, %v2750, %v2752
    %v2754 = vsel %vm1619, %v2750, %v2753
    %v2755 = vsel %vm1608, %v629, %v629
    %v2756 = vsel %vm1610, %v629, %v2755
    %v2757 = vrot.slane %v630, 7
    %v2758 = vsel %vm1613, %v2757, %v2756
    %v2759 = vsel %vm1615, %v2757, %v2758
    %v2760 = vsel %vm1617, %v2757, %v2759
    %v2761 = vsel %vm1619, %v2757, %v2760
    %v2762 = vsel %vm1608, %v792, %v792
    %v2763 = vsel %vm1610, %v792, %v2762
    %v2764 = vrot.slane %v794, 7
    %v2765 = vsel %vm1613, %v2764, %v2763
    %v2766 = vsel %vm1615, %v2764, %v2765
    %v2767 = vsel %vm1617, %v2764, %v2766
    %v2768 = vsel %vm1619, %v2764, %v2767
    %v2769 = vsel %vm1608, %v796, %v796
    %v2770 = vsel %vm1610, %v796, %v2769
    %v2771 = vrot.slane %v798, 7
    %v2772 = vsel %vm1613, %v2771, %v2770
    %v2773 = vsel %vm1615, %v2771, %v2772
    %v2774 = vsel %vm1617, %v2771, %v2773
    %v2775 = vsel %vm1619, %v2771, %v2774
    %v2776 = vsel %vm1608, %v800, %v800
    %v2777 = vsel %vm1610, %v800, %v2776
    %v2778 = vrot.slane %v802, 7
    %v2779 = vsel %vm1613, %v2778, %v2777
    %v2780 = vsel %vm1615, %v2778, %v2779
    %v2781 = vsel %vm1617, %v2778, %v2780
    %v2782 = vsel %vm1619, %v2778, %v2781
    %v2783 = vsel %vm1608, %v804, %v804
    %v2784 = vsel %vm1610, %v804, %v2783
    %v2785 = vrot.slane %v806, 7
    %v2786 = vsel %vm1613, %v2785, %v2784
    %v2787 = vsel %vm1615, %v2785, %v2786
    %v2788 = vsel %vm1617, %v2785, %v2787
    %v2789 = vsel %vm1619, %v2785, %v2788
    %v2790 = vsel %vm1608, %v920, %v920
    %v2791 = vsel %vm1610, %v920, %v2790
    %v2792 = vrot.slane %v922, 7
    %v2793 = vsel %vm1613, %v2792, %v2791
    %v2794 = vsel %vm1615, %v2792, %v2793
    %v2795 = vsel %vm1617, %v2792, %v2794
    %v2796 = vsel %vm1619, %v2792, %v2795
    %v2797 = vsel %vm1608, %v924, %v924
    %v2798 = vsel %vm1610, %v924, %v2797
    %v2799 = vrot.slane %v926, 7
    %v2800 = vsel %vm1613, %v2799, %v2798
    %v2801 = vsel %vm1615, %v2799, %v2800
    %v2802 = vsel %vm1617, %v2799, %v2801
    %v2803 = vsel %vm1619, %v2799, %v2802
    %v2804 = vsel %vm1608, %v928, %v928
    %v2805 = vsel %vm1610, %v928, %v2804
    %v2806 = vrot.slane %v930, 7
    %v2807 = vsel %vm1613, %v2806, %v2805
    %v2808 = vsel %vm1615, %v2806, %v2807
    %v2809 = vsel %vm1617, %v2806, %v2808
    %v2810 = vsel %vm1619, %v2806, %v2809
    %v2811 = vsel %vm1608, %v932, %v932
    %v2812 = vsel %vm1610, %v932, %v2811
    %v2813 = vrot.slane %v934, 7
    %v2814 = vsel %vm1613, %v2813, %v2812
    %v2815 = vsel %vm1615, %v2813, %v2814
    %v2816 = vsel %vm1617, %v2813, %v2815
    %v2817 = vsel %vm1619, %v2813, %v2816
    %v2818 = vsel %vm1608, %v1048, %v1048
    %v2819 = vsel %vm1610, %v1048, %v2818
    %v2820 = vrot.slane %v1050, 7
    %v2821 = vsel %vm1613, %v2820, %v2819
    %v2822 = vsel %vm1615, %v2820, %v2821
    %v2823 = vsel %vm1617, %v2820, %v2822
    %v2824 = vsel %vm1619, %v2820, %v2823
    %v2825 = vsel %vm1608, %v1052, %v1052
    %v2826 = vsel %vm1610, %v1052, %v2825
    %v2827 = vrot.slane %v1054, 7
    %v2828 = vsel %vm1613, %v2827, %v2826
    %v2829 = vsel %vm1615, %v2827, %v2828
    %v2830 = vsel %vm1617, %v2827, %v2829
    %v2831 = vsel %vm1619, %v2827, %v2830
    %v2832 = vsel %vm1608, %v1056, %v1056
    %v2833 = vsel %vm1610, %v1056, %v2832
    %v2834 = vrot.slane %v1058, 7
    %v2835 = vsel %vm1613, %v2834, %v2833
    %v2836 = vsel %vm1615, %v2834, %v2835
    %v2837 = vsel %vm1617, %v2834, %v2836
    %v2838 = vsel %vm1619, %v2834, %v2837
    %v2839 = vsel %vm1608, %v1060, %v1060
    %v2840 = vsel %vm1610, %v1060, %v2839
    %v2841 = vrot.slane %v1062, 7
    %v2842 = vsel %vm1613, %v2841, %v2840
    %v2843 = vsel %vm1615, %v2841, %v2842
    %v2844 = vsel %vm1617, %v2841, %v2843
    %v2845 = vsel %vm1619, %v2841, %v2844
    %v2846 = vsel %vm1608, %v1176, %v1176
    %v2847 = vsel %vm1610, %v1176, %v2846
    %v2848 = vrot.slane %v1178, 7
    %v2849 = vsel %vm1613, %v2848, %v2847
    %v2850 = vsel %vm1615, %v2848, %v2849
    %v2851 = vsel %vm1617, %v2848, %v2850
    %v2852 = vsel %vm1619, %v2848, %v2851
    %v2853 = vsel %vm1608, %v1180, %v1180
    %v2854 = vsel %vm1610, %v1180, %v2853
    %v2855 = vrot.slane %v1182, 7
    %v2856 = vsel %vm1613, %v2855, %v2854
    %v2857 = vsel %vm1615, %v2855, %v2856
    %v2858 = vsel %vm1617, %v2855, %v2857
    %v2859 = vsel %vm1619, %v2855, %v2858
    %v2860 = vsel %vm1608, %v1184, %v1184
    %v2861 = vsel %vm1610, %v1184, %v2860
    %v2862 = vrot.slane %v1186, 7
    %v2863 = vsel %vm1613, %v2862, %v2861
    %v2864 = vsel %vm1615, %v2862, %v2863
    %v2865 = vsel %vm1617, %v2862, %v2864
    %v2866 = vsel %vm1619, %v2862, %v2865
    %v2867 = vsel %vm1608, %v1188, %v1188
    %v2868 = vsel %vm1610, %v1188, %v2867
    %v2869 = vrot.slane %v1190, 7
    %v2870 = vsel %vm1613, %v2869, %v2868
    %v2871 = vsel %vm1615, %v2869, %v2870
    %v2872 = vsel %vm1617, %v2869, %v2871
    %v2873 = vsel %vm1619, %v2869, %v2872
    %v2874 = vsel %vm1608, %v1304, %v1304
    %v2875 = vsel %vm1610, %v1304, %v2874
    %v2876 = vrot.slane %v1306, 7
    %v2877 = vsel %vm1613, %v2876, %v2875
    %v2878 = vsel %vm1615, %v2876, %v2877
    %v2879 = vsel %vm1617, %v2876, %v2878
    %v2880 = vsel %vm1619, %v2876, %v2879
    %v2881 = vsel %vm1608, %v1308, %v1308
    %v2882 = vsel %vm1610, %v1308, %v2881
    %v2883 = vrot.slane %v1310, 7
    %v2884 = vsel %vm1613, %v2883, %v2882
    %v2885 = vsel %vm1615, %v2883, %v2884
    %v2886 = vsel %vm1617, %v2883, %v2885
    %v2887 = vsel %vm1619, %v2883, %v2886
    %v2888 = vsel %vm1608, %v1312, %v1312
    %v2889 = vsel %vm1610, %v1312, %v2888
    %v2890 = vrot.slane %v1314, 7
    %v2891 = vsel %vm1613, %v2890, %v2889
    %v2892 = vsel %vm1615, %v2890, %v2891
    %v2893 = vsel %vm1617, %v2890, %v2892
    %v2894 = vsel %vm1619, %v2890, %v2893
    %v2895 = vsel %vm1608, %v1316, %v1316
    %v2896 = vsel %vm1610, %v1316, %v2895
    %v2897 = vrot.slane %v1318, 7
    %v2898 = vsel %vm1613, %v2897, %v2896
    %v2899 = vsel %vm1615, %v2897, %v2898
    %v2900 = vsel %vm1617, %v2897, %v2899
    %v2901 = vsel %vm1619, %v2897, %v2900
    %v2902 = vsel %vm1608, %v1432, %v1432
    %v2903 = vsel %vm1610, %v1432, %v2902
    %v2904 = vrot.slane %v1434, 7
    %v2905 = vsel %vm1613, %v2904, %v2903
    %v2906 = vsel %vm1615, %v2904, %v2905
    %v2907 = vsel %vm1617, %v2904, %v2906
    %v2908 = vsel %vm1619, %v2904, %v2907
    %v2909 = vsel %vm1608, %v1436, %v1436
    %v2910 = vsel %vm1610, %v1436, %v2909
    %v2911 = vrot.slane %v1438, 7
    %v2912 = vsel %vm1613, %v2911, %v2910
    %v2913 = vsel %vm1615, %v2911, %v2912
    %v2914 = vsel %vm1617, %v2911, %v2913
    %v2915 = vsel %vm1619, %v2911, %v2914
    %v2916 = vsel %vm1608, %v1440, %v1440
    %v2917 = vsel %vm1610, %v1440, %v2916
    %v2918 = vrot.slane %v1442, 7
    %v2919 = vsel %vm1613, %v2918, %v2917
    %v2920 = vsel %vm1615, %v2918, %v2919
    %v2921 = vsel %vm1617, %v2918, %v2920
    %v2922 = vsel %vm1619, %v2918, %v2921
    %v2923 = vsel %vm1608, %v1444, %v1444
    %v2924 = vsel %vm1610, %v1444, %v2923
    %v2925 = vrot.slane %v1446, 7
    %v2926 = vsel %vm1613, %v2925, %v2924
    %v2927 = vsel %vm1615, %v2925, %v2926
    %v2928 = vsel %vm1617, %v2925, %v2927
    %v2929 = vsel %vm1619, %v2925, %v2928
    %v2930 = vsel %vm1608, %v1560, %v1560
    %v2931 = vsel %vm1610, %v1560, %v2930
    %v2932 = vrot.slane %v1562, 7
    %v2933 = vsel %vm1613, %v2932, %v2931
    %v2934 = vsel %vm1615, %v2932, %v2933
    %v2935 = vsel %vm1617, %v2932, %v2934
    %v2936 = vsel %vm1619, %v2932, %v2935
    %v2937 = vsel %vm1608, %v1564, %v1564
    %v2938 = vsel %vm1610, %v1564, %v2937
    %v2939 = vrot.slane %v1566, 7
    %v2940 = vsel %vm1613, %v2939, %v2938
    %v2941 = vsel %vm1615, %v2939, %v2940
    %v2942 = vsel %vm1617, %v2939, %v2941
    %v2943 = vsel %vm1619, %v2939, %v2942
    %v2944 = vsel %vm1608, %v1568, %v1568
    %v2945 = vsel %vm1610, %v1568, %v2944
    %v2946 = vrot.slane %v1570, 7
    %v2947 = vsel %vm1613, %v2946, %v2945
    %v2948 = vsel %vm1615, %v2946, %v2947
    %v2949 = vsel %vm1617, %v2946, %v2948
    %v2950 = vsel %vm1619, %v2946, %v2949
    %v2951 = vsel %vm1608, %v1572, %v1572
    %v2952 = vsel %vm1610, %v1572, %v2951
    %v2953 = vrot.slane %v1574, 7
    %v2954 = vsel %vm1613, %v2953, %v2952
    %v2955 = vsel %vm1615, %v2953, %v2954
    %v2956 = vsel %vm1617, %v2953, %v2955
    %v2957 = vsel %vm1619, %v2953, %v2956
    %v2958 = vsel %vm1608, %v631, %v631
    %v2959 = vsel %vm1610, %v631, %v2958
    %v2960 = vrot.slane %v632, 7
    %v2961 = vsel %vm1613, %v2960, %v2959
    %v2962 = vsel %vm1615, %v2960, %v2961
    %v2963 = vsel %vm1617, %v2960, %v2962
    %v2964 = vsel %vm1619, %v2960, %v2963
    %v2965 = vsel %vm1608, %v633, %v633
    %v2966 = vsel %vm1610, %v633, %v2965
    %v2967 = vrot.slane %v634, 7
    %v2968 = vsel %vm1613, %v2967, %v2966
    %v2969 = vsel %vm1615, %v2967, %v2968
    %v2970 = vsel %vm1617, %v2967, %v2969
    %v2971 = vsel %vm1619, %v2967, %v2970
    %v2972 = vsel %vm1608, %v635, %v635
    %v2973 = vsel %vm1610, %v635, %v2972
    %v2974 = vrot.slane %v636, 7
    %v2975 = vsel %vm1613, %v2974, %v2973
    %v2976 = vsel %vm1615, %v2974, %v2975
    %v2977 = vsel %vm1617, %v2974, %v2976
    %v2978 = vsel %vm1619, %v2974, %v2977
    %v2979 = vsel %vm1608, %v637, %v637
    %v2980 = vsel %vm1610, %v637, %v2979
    %v2981 = vrot.slane %v638, 7
    %v2982 = vsel %vm1613, %v2981, %v2980
    %v2983 = vsel %vm1615, %v2981, %v2982
    %v2984 = vsel %vm1617, %v2981, %v2983
    %v2985 = vsel %vm1619, %v2981, %v2984
    %v2986 = vsel %vm1608, %v808, %v808
    %v2987 = vsel %vm1610, %v808, %v2986
    %v2988 = vrot.slane %v810, 7
    %v2989 = vsel %vm1613, %v2988, %v2987
    %v2990 = vsel %vm1615, %v2988, %v2989
    %v2991 = vsel %vm1617, %v2988, %v2990
    %v2992 = vsel %vm1619, %v2988, %v2991
    %v2993 = vsel %vm1608, %v812, %v812
    %v2994 = vsel %vm1610, %v812, %v2993
    %v2995 = vrot.slane %v814, 7
    %v2996 = vsel %vm1613, %v2995, %v2994
    %v2997 = vsel %vm1615, %v2995, %v2996
    %v2998 = vsel %vm1617, %v2995, %v2997
    %v2999 = vsel %vm1619, %v2995, %v2998
    %v3000 = vsel %vm1608, %v816, %v816
    %v3001 = vsel %vm1610, %v816, %v3000
    %v3002 = vrot.slane %v818, 7
    %v3003 = vsel %vm1613, %v3002, %v3001
    %v3004 = vsel %vm1615, %v3002, %v3003
    %v3005 = vsel %vm1617, %v3002, %v3004
    %v3006 = vsel %vm1619, %v3002, %v3005
    %v3007 = vsel %vm1608, %v820, %v820
    %v3008 = vsel %vm1610, %v820, %v3007
    %v3009 = vrot.slane %v822, 7
    %v3010 = vsel %vm1613, %v3009, %v3008
    %v3011 = vsel %vm1615, %v3009, %v3010
    %v3012 = vsel %vm1617, %v3009, %v3011
    %v3013 = vsel %vm1619, %v3009, %v3012
    %v3014 = vsel %vm1608, %v936, %v936
    %v3015 = vsel %vm1610, %v936, %v3014
    %v3016 = vrot.slane %v938, 7
    %v3017 = vsel %vm1613, %v3016, %v3015
    %v3018 = vsel %vm1615, %v3016, %v3017
    %v3019 = vsel %vm1617, %v3016, %v3018
    %v3020 = vsel %vm1619, %v3016, %v3019
    %v3021 = vsel %vm1608, %v940, %v940
    %v3022 = vsel %vm1610, %v940, %v3021
    %v3023 = vrot.slane %v942, 7
    %v3024 = vsel %vm1613, %v3023, %v3022
    %v3025 = vsel %vm1615, %v3023, %v3024
    %v3026 = vsel %vm1617, %v3023, %v3025
    %v3027 = vsel %vm1619, %v3023, %v3026
    %v3028 = vsel %vm1608, %v944, %v944
    %v3029 = vsel %vm1610, %v944, %v3028
    %v3030 = vrot.slane %v946, 7
    %v3031 = vsel %vm1613, %v3030, %v3029
    %v3032 = vsel %vm1615, %v3030, %v3031
    %v3033 = vsel %vm1617, %v3030, %v3032
    %v3034 = vsel %vm1619, %v3030, %v3033
    %v3035 = vsel %vm1608, %v948, %v948
    %v3036 = vsel %vm1610, %v948, %v3035
    %v3037 = vrot.slane %v950, 7
    %v3038 = vsel %vm1613, %v3037, %v3036
    %v3039 = vsel %vm1615, %v3037, %v3038
    %v3040 = vsel %vm1617, %v3037, %v3039
    %v3041 = vsel %vm1619, %v3037, %v3040
    %v3042 = vsel %vm1608, %v1064, %v1064
    %v3043 = vsel %vm1610, %v1064, %v3042
    %v3044 = vrot.slane %v1066, 7
    %v3045 = vsel %vm1613, %v3044, %v3043
    %v3046 = vsel %vm1615, %v3044, %v3045
    %v3047 = vsel %vm1617, %v3044, %v3046
    %v3048 = vsel %vm1619, %v3044, %v3047
    %v3049 = vsel %vm1608, %v1068, %v1068
    %v3050 = vsel %vm1610, %v1068, %v3049
    %v3051 = vrot.slane %v1070, 7
    %v3052 = vsel %vm1613, %v3051, %v3050
    %v3053 = vsel %vm1615, %v3051, %v3052
    %v3054 = vsel %vm1617, %v3051, %v3053
    %v3055 = vsel %vm1619, %v3051, %v3054
    %v3056 = vsel %vm1608, %v1072, %v1072
    %v3057 = vsel %vm1610, %v1072, %v3056
    %v3058 = vrot.slane %v1074, 7
    %v3059 = vsel %vm1613, %v3058, %v3057
    %v3060 = vsel %vm1615, %v3058, %v3059
    %v3061 = vsel %vm1617, %v3058, %v3060
    %v3062 = vsel %vm1619, %v3058, %v3061
    %v3063 = vsel %vm1608, %v1076, %v1076
    %v3064 = vsel %vm1610, %v1076, %v3063
    %v3065 = vrot.slane %v1078, 7
    %v3066 = vsel %vm1613, %v3065, %v3064
    %v3067 = vsel %vm1615, %v3065, %v3066
    %v3068 = vsel %vm1617, %v3065, %v3067
    %v3069 = vsel %vm1619, %v3065, %v3068
    %v3070 = vsel %vm1608, %v1192, %v1192
    %v3071 = vsel %vm1610, %v1192, %v3070
    %v3072 = vrot.slane %v1194, 7
    %v3073 = vsel %vm1613, %v3072, %v3071
    %v3074 = vsel %vm1615, %v3072, %v3073
    %v3075 = vsel %vm1617, %v3072, %v3074
    %v3076 = vsel %vm1619, %v3072, %v3075
    %v3077 = vsel %vm1608, %v1196, %v1196
    %v3078 = vsel %vm1610, %v1196, %v3077
    %v3079 = vrot.slane %v1198, 7
    %v3080 = vsel %vm1613, %v3079, %v3078
    %v3081 = vsel %vm1615, %v3079, %v3080
    %v3082 = vsel %vm1617, %v3079, %v3081
    %v3083 = vsel %vm1619, %v3079, %v3082
    %v3084 = vsel %vm1608, %v1200, %v1200
    %v3085 = vsel %vm1610, %v1200, %v3084
    %v3086 = vrot.slane %v1202, 7
    %v3087 = vsel %vm1613, %v3086, %v3085
    %v3088 = vsel %vm1615, %v3086, %v3087
    %v3089 = vsel %vm1617, %v3086, %v3088
    %v3090 = vsel %vm1619, %v3086, %v3089
    %v3091 = vsel %vm1608, %v1204, %v1204
    %v3092 = vsel %vm1610, %v1204, %v3091
    %v3093 = vrot.slane %v1206, 7
    %v3094 = vsel %vm1613, %v3093, %v3092
    %v3095 = vsel %vm1615, %v3093, %v3094
    %v3096 = vsel %vm1617, %v3093, %v3095
    %v3097 = vsel %vm1619, %v3093, %v3096
    %v3098 = vsel %vm1608, %v1320, %v1320
    %v3099 = vsel %vm1610, %v1320, %v3098
    %v3100 = vrot.slane %v1322, 7
    %v3101 = vsel %vm1613, %v3100, %v3099
    %v3102 = vsel %vm1615, %v3100, %v3101
    %v3103 = vsel %vm1617, %v3100, %v3102
    %v3104 = vsel %vm1619, %v3100, %v3103
    %v3105 = vsel %vm1608, %v1324, %v1324
    %v3106 = vsel %vm1610, %v1324, %v3105
    %v3107 = vrot.slane %v1326, 7
    %v3108 = vsel %vm1613, %v3107, %v3106
    %v3109 = vsel %vm1615, %v3107, %v3108
    %v3110 = vsel %vm1617, %v3107, %v3109
    %v3111 = vsel %vm1619, %v3107, %v3110
    %v3112 = vsel %vm1608, %v1328, %v1328
    %v3113 = vsel %vm1610, %v1328, %v3112
    %v3114 = vrot.slane %v1330, 7
    %v3115 = vsel %vm1613, %v3114, %v3113
    %v3116 = vsel %vm1615, %v3114, %v3115
    %v3117 = vsel %vm1617, %v3114, %v3116
    %v3118 = vsel %vm1619, %v3114, %v3117
    %v3119 = vsel %vm1608, %v1332, %v1332
    %v3120 = vsel %vm1610, %v1332, %v3119
    %v3121 = vrot.slane %v1334, 7
    %v3122 = vsel %vm1613, %v3121, %v3120
    %v3123 = vsel %vm1615, %v3121, %v3122
    %v3124 = vsel %vm1617, %v3121, %v3123
    %v3125 = vsel %vm1619, %v3121, %v3124
    %v3126 = vsel %vm1608, %v1448, %v1448
    %v3127 = vsel %vm1610, %v1448, %v3126
    %v3128 = vrot.slane %v1450, 7
    %v3129 = vsel %vm1613, %v3128, %v3127
    %v3130 = vsel %vm1615, %v3128, %v3129
    %v3131 = vsel %vm1617, %v3128, %v3130
    %v3132 = vsel %vm1619, %v3128, %v3131
    %v3133 = vsel %vm1608, %v1452, %v1452
    %v3134 = vsel %vm1610, %v1452, %v3133
    %v3135 = vrot.slane %v1454, 7
    %v3136 = vsel %vm1613, %v3135, %v3134
    %v3137 = vsel %vm1615, %v3135, %v3136
    %v3138 = vsel %vm1617, %v3135, %v3137
    %v3139 = vsel %vm1619, %v3135, %v3138
    %v3140 = vsel %vm1608, %v1456, %v1456
    %v3141 = vsel %vm1610, %v1456, %v3140
    %v3142 = vrot.slane %v1458, 7
    %v3143 = vsel %vm1613, %v3142, %v3141
    %v3144 = vsel %vm1615, %v3142, %v3143
    %v3145 = vsel %vm1617, %v3142, %v3144
    %v3146 = vsel %vm1619, %v3142, %v3145
    %v3147 = vsel %vm1608, %v1460, %v1460
    %v3148 = vsel %vm1610, %v1460, %v3147
    %v3149 = vrot.slane %v1462, 7
    %v3150 = vsel %vm1613, %v3149, %v3148
    %v3151 = vsel %vm1615, %v3149, %v3150
    %v3152 = vsel %vm1617, %v3149, %v3151
    %v3153 = vsel %vm1619, %v3149, %v3152
    %v3154 = vsel %vm1608, %v1576, %v1576
    %v3155 = vsel %vm1610, %v1576, %v3154
    %v3156 = vrot.slane %v1578, 7
    %v3157 = vsel %vm1613, %v3156, %v3155
    %v3158 = vsel %vm1615, %v3156, %v3157
    %v3159 = vsel %vm1617, %v3156, %v3158
    %v3160 = vsel %vm1619, %v3156, %v3159
    %v3161 = vsel %vm1608, %v1580, %v1580
    %v3162 = vsel %vm1610, %v1580, %v3161
    %v3163 = vrot.slane %v1582, 7
    %v3164 = vsel %vm1613, %v3163, %v3162
    %v3165 = vsel %vm1615, %v3163, %v3164
    %v3166 = vsel %vm1617, %v3163, %v3165
    %v3167 = vsel %vm1619, %v3163, %v3166
    %v3168 = vsel %vm1608, %v1584, %v1584
    %v3169 = vsel %vm1610, %v1584, %v3168
    %v3170 = vrot.slane %v1586, 7
    %v3171 = vsel %vm1613, %v3170, %v3169
    %v3172 = vsel %vm1615, %v3170, %v3171
    %v3173 = vsel %vm1617, %v3170, %v3172
    %v3174 = vsel %vm1619, %v3170, %v3173
    %v3175 = vsel %vm1608, %v1588, %v1588
    %v3176 = vsel %vm1610, %v1588, %v3175
    %v3177 = vrot.slane %v1590, 7
    %v3178 = vsel %vm1613, %v3177, %v3176
    %v3179 = vsel %vm1615, %v3177, %v3178
    %v3180 = vsel %vm1617, %v3177, %v3179
    %v3181 = vsel %vm1619, %v3177, %v3180
    %v3182 = vsel %vm1608, %v639, %v639
    %v3183 = vsel %vm1610, %v639, %v3182
    %v3184 = vrot.slane %v640, 7
    %v3185 = vsel %vm1613, %v3184, %v3183
    %v3186 = vsel %vm1615, %v3184, %v3185
    %v3187 = vsel %vm1617, %v3184, %v3186
    %v3188 = vsel %vm1619, %v3184, %v3187
    %v3189 = vsel %vm1608, %v641, %v641
    %v3190 = vsel %vm1610, %v641, %v3189
    %v3191 = vrot.slane %v642, 7
    %v3192 = vsel %vm1613, %v3191, %v3190
    %v3193 = vsel %vm1615, %v3191, %v3192
    %v3194 = vsel %vm1617, %v3191, %v3193
    %v3195 = vsel %vm1619, %v3191, %v3194
    %v3196 = vsel %vm1608, %v643, %v643
    %v3197 = vsel %vm1610, %v643, %v3196
    %v3198 = vrot.slane %v644, 7
    %v3199 = vsel %vm1613, %v3198, %v3197
    %v3200 = vsel %vm1615, %v3198, %v3199
    %v3201 = vsel %vm1617, %v3198, %v3200
    %v3202 = vsel %vm1619, %v3198, %v3201
    %v3203 = vsel %vm1608, %v645, %v645
    %v3204 = vsel %vm1610, %v645, %v3203
    %v3205 = vrot.slane %v646, 7
    %v3206 = vsel %vm1613, %v3205, %v3204
    %v3207 = vsel %vm1615, %v3205, %v3206
    %v3208 = vsel %vm1617, %v3205, %v3207
    %v3209 = vsel %vm1619, %v3205, %v3208
    %v3210 = vsel %vm1608, %v824, %v824
    %v3211 = vsel %vm1610, %v824, %v3210
    %v3212 = vrot.slane %v826, 7
    %v3213 = vsel %vm1613, %v3212, %v3211
    %v3214 = vsel %vm1615, %v3212, %v3213
    %v3215 = vsel %vm1617, %v3212, %v3214
    %v3216 = vsel %vm1619, %v3212, %v3215
    %v3217 = vsel %vm1608, %v828, %v828
    %v3218 = vsel %vm1610, %v828, %v3217
    %v3219 = vrot.slane %v830, 7
    %v3220 = vsel %vm1613, %v3219, %v3218
    %v3221 = vsel %vm1615, %v3219, %v3220
    %v3222 = vsel %vm1617, %v3219, %v3221
    %v3223 = vsel %vm1619, %v3219, %v3222
    %v3224 = vsel %vm1608, %v832, %v832
    %v3225 = vsel %vm1610, %v832, %v3224
    %v3226 = vrot.slane %v834, 7
    %v3227 = vsel %vm1613, %v3226, %v3225
    %v3228 = vsel %vm1615, %v3226, %v3227
    %v3229 = vsel %vm1617, %v3226, %v3228
    %v3230 = vsel %vm1619, %v3226, %v3229
    %v3231 = vsel %vm1608, %v836, %v836
    %v3232 = vsel %vm1610, %v836, %v3231
    %v3233 = vrot.slane %v838, 7
    %v3234 = vsel %vm1613, %v3233, %v3232
    %v3235 = vsel %vm1615, %v3233, %v3234
    %v3236 = vsel %vm1617, %v3233, %v3235
    %v3237 = vsel %vm1619, %v3233, %v3236
    %v3238 = vsel %vm1608, %v952, %v952
    %v3239 = vsel %vm1610, %v952, %v3238
    %v3240 = vrot.slane %v954, 7
    %v3241 = vsel %vm1613, %v3240, %v3239
    %v3242 = vsel %vm1615, %v3240, %v3241
    %v3243 = vsel %vm1617, %v3240, %v3242
    %v3244 = vsel %vm1619, %v3240, %v3243
    %v3245 = vsel %vm1608, %v956, %v956
    %v3246 = vsel %vm1610, %v956, %v3245
    %v3247 = vrot.slane %v958, 7
    %v3248 = vsel %vm1613, %v3247, %v3246
    %v3249 = vsel %vm1615, %v3247, %v3248
    %v3250 = vsel %vm1617, %v3247, %v3249
    %v3251 = vsel %vm1619, %v3247, %v3250
    %v3252 = vsel %vm1608, %v960, %v960
    %v3253 = vsel %vm1610, %v960, %v3252
    %v3254 = vrot.slane %v962, 7
    %v3255 = vsel %vm1613, %v3254, %v3253
    %v3256 = vsel %vm1615, %v3254, %v3255
    %v3257 = vsel %vm1617, %v3254, %v3256
    %v3258 = vsel %vm1619, %v3254, %v3257
    %v3259 = vsel %vm1608, %v964, %v964
    %v3260 = vsel %vm1610, %v964, %v3259
    %v3261 = vrot.slane %v966, 7
    %v3262 = vsel %vm1613, %v3261, %v3260
    %v3263 = vsel %vm1615, %v3261, %v3262
    %v3264 = vsel %vm1617, %v3261, %v3263
    %v3265 = vsel %vm1619, %v3261, %v3264
    %v3266 = vsel %vm1608, %v1080, %v1080
    %v3267 = vsel %vm1610, %v1080, %v3266
    %v3268 = vrot.slane %v1082, 7
    %v3269 = vsel %vm1613, %v3268, %v3267
    %v3270 = vsel %vm1615, %v3268, %v3269
    %v3271 = vsel %vm1617, %v3268, %v3270
    %v3272 = vsel %vm1619, %v3268, %v3271
    %v3273 = vsel %vm1608, %v1084, %v1084
    %v3274 = vsel %vm1610, %v1084, %v3273
    %v3275 = vrot.slane %v1086, 7
    %v3276 = vsel %vm1613, %v3275, %v3274
    %v3277 = vsel %vm1615, %v3275, %v3276
    %v3278 = vsel %vm1617, %v3275, %v3277
    %v3279 = vsel %vm1619, %v3275, %v3278
    %v3280 = vsel %vm1608, %v1088, %v1088
    %v3281 = vsel %vm1610, %v1088, %v3280
    %v3282 = vrot.slane %v1090, 7
    %v3283 = vsel %vm1613, %v3282, %v3281
    %v3284 = vsel %vm1615, %v3282, %v3283
    %v3285 = vsel %vm1617, %v3282, %v3284
    %v3286 = vsel %vm1619, %v3282, %v3285
    %v3287 = vsel %vm1608, %v1092, %v1092
    %v3288 = vsel %vm1610, %v1092, %v3287
    %v3289 = vrot.slane %v1094, 7
    %v3290 = vsel %vm1613, %v3289, %v3288
    %v3291 = vsel %vm1615, %v3289, %v3290
    %v3292 = vsel %vm1617, %v3289, %v3291
    %v3293 = vsel %vm1619, %v3289, %v3292
    %v3294 = vsel %vm1608, %v1208, %v1208
    %v3295 = vsel %vm1610, %v1208, %v3294
    %v3296 = vrot.slane %v1210, 7
    %v3297 = vsel %vm1613, %v3296, %v3295
    %v3298 = vsel %vm1615, %v3296, %v3297
    %v3299 = vsel %vm1617, %v3296, %v3298
    %v3300 = vsel %vm1619, %v3296, %v3299
    %v3301 = vsel %vm1608, %v1212, %v1212
    %v3302 = vsel %vm1610, %v1212, %v3301
    %v3303 = vrot.slane %v1214, 7
    %v3304 = vsel %vm1613, %v3303, %v3302
    %v3305 = vsel %vm1615, %v3303, %v3304
    %v3306 = vsel %vm1617, %v3303, %v3305
    %v3307 = vsel %vm1619, %v3303, %v3306
    %v3308 = vsel %vm1608, %v1216, %v1216
    %v3309 = vsel %vm1610, %v1216, %v3308
    %v3310 = vrot.slane %v1218, 7
    %v3311 = vsel %vm1613, %v3310, %v3309
    %v3312 = vsel %vm1615, %v3310, %v3311
    %v3313 = vsel %vm1617, %v3310, %v3312
    %v3314 = vsel %vm1619, %v3310, %v3313
    %v3315 = vsel %vm1608, %v1220, %v1220
    %v3316 = vsel %vm1610, %v1220, %v3315
    %v3317 = vrot.slane %v1222, 7
    %v3318 = vsel %vm1613, %v3317, %v3316
    %v3319 = vsel %vm1615, %v3317, %v3318
    %v3320 = vsel %vm1617, %v3317, %v3319
    %v3321 = vsel %vm1619, %v3317, %v3320
    %v3322 = vsel %vm1608, %v1336, %v1336
    %v3323 = vsel %vm1610, %v1336, %v3322
    %v3324 = vrot.slane %v1338, 7
    %v3325 = vsel %vm1613, %v3324, %v3323
    %v3326 = vsel %vm1615, %v3324, %v3325
    %v3327 = vsel %vm1617, %v3324, %v3326
    %v3328 = vsel %vm1619, %v3324, %v3327
    %v3329 = vsel %vm1608, %v1340, %v1340
    %v3330 = vsel %vm1610, %v1340, %v3329
    %v3331 = vrot.slane %v1342, 7
    %v3332 = vsel %vm1613, %v3331, %v3330
    %v3333 = vsel %vm1615, %v3331, %v3332
    %v3334 = vsel %vm1617, %v3331, %v3333
    %v3335 = vsel %vm1619, %v3331, %v3334
    %v3336 = vsel %vm1608, %v1344, %v1344
    %v3337 = vsel %vm1610, %v1344, %v3336
    %v3338 = vrot.slane %v1346, 7
    %v3339 = vsel %vm1613, %v3338, %v3337
    %v3340 = vsel %vm1615, %v3338, %v3339
    %v3341 = vsel %vm1617, %v3338, %v3340
    %v3342 = vsel %vm1619, %v3338, %v3341
    %v3343 = vsel %vm1608, %v1348, %v1348
    %v3344 = vsel %vm1610, %v1348, %v3343
    %v3345 = vrot.slane %v1350, 7
    %v3346 = vsel %vm1613, %v3345, %v3344
    %v3347 = vsel %vm1615, %v3345, %v3346
    %v3348 = vsel %vm1617, %v3345, %v3347
    %v3349 = vsel %vm1619, %v3345, %v3348
    %v3350 = vsel %vm1608, %v1464, %v1464
    %v3351 = vsel %vm1610, %v1464, %v3350
    %v3352 = vrot.slane %v1466, 7
    %v3353 = vsel %vm1613, %v3352, %v3351
    %v3354 = vsel %vm1615, %v3352, %v3353
    %v3355 = vsel %vm1617, %v3352, %v3354
    %v3356 = vsel %vm1619, %v3352, %v3355
    %v3357 = vsel %vm1608, %v1468, %v1468
    %v3358 = vsel %vm1610, %v1468, %v3357
    %v3359 = vrot.slane %v1470, 7
    %v3360 = vsel %vm1613, %v3359, %v3358
    %v3361 = vsel %vm1615, %v3359, %v3360
    %v3362 = vsel %vm1617, %v3359, %v3361
    %v3363 = vsel %vm1619, %v3359, %v3362
    %v3364 = vsel %vm1608, %v1472, %v1472
    %v3365 = vsel %vm1610, %v1472, %v3364
    %v3366 = vrot.slane %v1474, 7
    %v3367 = vsel %vm1613, %v3366, %v3365
    %v3368 = vsel %vm1615, %v3366, %v3367
    %v3369 = vsel %vm1617, %v3366, %v3368
    %v3370 = vsel %vm1619, %v3366, %v3369
    %v3371 = vsel %vm1608, %v1476, %v1476
    %v3372 = vsel %vm1610, %v1476, %v3371
    %v3373 = vrot.slane %v1478, 7
    %v3374 = vsel %vm1613, %v3373, %v3372
    %v3375 = vsel %vm1615, %v3373, %v3374
    %v3376 = vsel %vm1617, %v3373, %v3375
    %v3377 = vsel %vm1619, %v3373, %v3376
    %v3378 = vsel %vm1608, %v1592, %v1592
    %v3379 = vsel %vm1610, %v1592, %v3378
    %v3380 = vrot.slane %v1594, 7
    %v3381 = vsel %vm1613, %v3380, %v3379
    %v3382 = vsel %vm1615, %v3380, %v3381
    %v3383 = vsel %vm1617, %v3380, %v3382
    %v3384 = vsel %vm1619, %v3380, %v3383
    %v3385 = vsel %vm1608, %v1596, %v1596
    %v3386 = vsel %vm1610, %v1596, %v3385
    %v3387 = vrot.slane %v1598, 7
    %v3388 = vsel %vm1613, %v3387, %v3386
    %v3389 = vsel %vm1615, %v3387, %v3388
    %v3390 = vsel %vm1617, %v3387, %v3389
    %v3391 = vsel %vm1619, %v3387, %v3390
    %v3392 = vsel %vm1608, %v1600, %v1600
    %v3393 = vsel %vm1610, %v1600, %v3392
    %v3394 = vrot.slane %v1602, 7
    %v3395 = vsel %vm1613, %v3394, %v3393
    %v3396 = vsel %vm1615, %v3394, %v3395
    %v3397 = vsel %vm1617, %v3394, %v3396
    %v3398 = vsel %vm1619, %v3394, %v3397
    %v3399 = vsel %vm1608, %v1604, %v1604
    %v3400 = vsel %vm1610, %v1604, %v3399
    %v3401 = vrot.slane %v1606, 7
    %v3402 = vsel %vm1613, %v3401, %v3400
    %v3403 = vsel %vm1615, %v3401, %v3402
    %v3404 = vsel %vm1617, %v3401, %v3403
    %v3405 = vsel %vm1619, %v3401, %v3404
    %v3662 = vcombine.low %v1620, %v1648
    %v3664 = vunpack.c.l.s4 1934713408
    %v3665 = vunpack.c.0.s8 %v3664
    %v3666 = vlaneseq
    %v3667 = vshrl.u32 %v3666, 7
    %v3668 = vsub.s32 %v3665, %v3667
    %v3669 = vrot.slane %v3662, %v3668
    %v3670 = vcombine.high %v3669, 0.0
    %v3671 = vcombine.low %v1676, %v1704
    %v3673 = vunpack.c.l.s4 1934713408
    %v3674 = vunpack.c.0.s8 %v3673
    %v3675 = vlaneseq
    %v3676 = vshrl.u32 %v3675, 7
    %v3677 = vsub.s32 %v3674, %v3676
    %v3678 = vrot.slane %v3671, %v3677
    %v3679 = vcombine.high %v3678, 0.0
    %v3680 = vcombine.low %v1732, %v1760
    %v3682 = vunpack.c.l.s4 1934713408
    %v3683 = vunpack.c.0.s8 %v3682
    %v3684 = vlaneseq
    %v3685 = vshrl.u32 %v3684, 7
    %v3686 = vsub.s32 %v3683, %v3685
    %v3687 = vrot.slane %v3680, %v3686
    %v3688 = vcombine.high %v3687, 0.0
    %v3689 = vcombine.low %v1788, %v1816
    %v3691 = vunpack.c.l.s4 1934713408
    %v3692 = vunpack.c.0.s8 %v3691
    %v3693 = vlaneseq
    %v3694 = vshrl.u32 %v3693, 7
    %v3695 = vsub.s32 %v3692, %v3694
    %v3696 = vrot.slane %v3689, %v3695
    %v3697 = vcombine.high %v3696, 0.0
    %v3698 = vcombine.low %v1627, %v1655
    %v3700 = vunpack.c.l.s4 1934713408
    %v3701 = vunpack.c.0.s8 %v3700
    %v3702 = vlaneseq
    %v3703 = vshrl.u32 %v3702, 7
    %v3704 = vsub.s32 %v3701, %v3703
    %v3705 = vrot.slane %v3698, %v3704
    %v3706 = vcombine.high %v3705, 0.0
    %v3707 = vcombine.low %v1683, %v1711
    %v3709 = vunpack.c.l.s4 1934713408
    %v3710 = vunpack.c.0.s8 %v3709
    %v3711 = vlaneseq
    %v3712 = vshrl.u32 %v3711, 7
    %v3713 = vsub.s32 %v3710, %v3712
    %v3714 = vrot.slane %v3707, %v3713
    %v3715 = vcombine.high %v3714, 0.0
    %v3716 = vcombine.low %v1739, %v1767
    %v3718 = vunpack.c.l.s4 1934713408
    %v3719 = vunpack.c.0.s8 %v3718
    %v3720 = vlaneseq
    %v3721 = vshrl.u32 %v3720, 7
    %v3722 = vsub.s32 %v3719, %v3721
    %v3723 = vrot.slane %v3716, %v3722
    %v3724 = vcombine.high %v3723, 0.0
    %v3725 = vcombine.low %v1795, %v1823
    %v3727 = vunpack.c.l.s4 1934713408
    %v3728 = vunpack.c.0.s8 %v3727
    %v3729 = vlaneseq
    %v3730 = vshrl.u32 %v3729, 7
    %v3731 = vsub.s32 %v3728, %v3730
    %v3732 = vrot.slane %v3725, %v3731
    %v3733 = vcombine.high %v3732, 0.0
    %v3734 = vcombine.low %v1634, %v1662
    %v3736 = vunpack.c.l.s4 1934713408
    %v3737 = vunpack.c.0.s8 %v3736
    %v3738 = vlaneseq
    %v3739 = vshrl.u32 %v3738, 7
    %v3740 = vsub.s32 %v3737, %v3739
    %v3741 = vrot.slane %v3734, %v3740
    %v3742 = vcombine.high %v3741, 0.0
    %v3743 = vcombine.low %v1690, %v1718
    %v3745 = vunpack.c.l.s4 1934713408
    %v3746 = vunpack.c.0.s8 %v3745
    %v3747 = vlaneseq
    %v3748 = vshrl.u32 %v3747, 7
    %v3749 = vsub.s32 %v3746, %v3748
    %v3750 = vrot.slane %v3743, %v3749
    %v3751 = vcombine.high %v3750, 0.0
    %v3752 = vcombine.low %v1746, %v1774
    %v3754 = vunpack.c.l.s4 1934713408
    %v3755 = vunpack.c.0.s8 %v3754
    %v3756 = vlaneseq
    %v3757 = vshrl.u32 %v3756, 7
    %v3758 = vsub.s32 %v3755, %v3757
    %v3759 = vrot.slane %v3752, %v3758
    %v3760 = vcombine.high %v3759, 0.0
    %v3761 = vcombine.low %v1802, %v1830
    %v3763 = vunpack.c.l.s4 1934713408
    %v3764 = vunpack.c.0.s8 %v3763
    %v3765 = vlaneseq
    %v3766 = vshrl.u32 %v3765, 7
    %v3767 = vsub.s32 %v3764, %v3766
    %v3768 = vrot.slane %v3761, %v3767
    %v3769 = vcombine.high %v3768, 0.0
    %v3770 = vcombine.low %v1641, %v1669
    %v3772 = vunpack.c.l.s4 1934713408
    %v3773 = vunpack.c.0.s8 %v3772
    %v3774 = vlaneseq
    %v3775 = vshrl.u32 %v3774, 7
    %v3776 = vsub.s32 %v3773, %v3775
    %v3777 = vrot.slane %v3770, %v3776
    %v3778 = vcombine.high %v3777, 0.0
    %v3779 = vcombine.low %v1697, %v1725
    %v3781 = vunpack.c.l.s4 1934713408
    %v3782 = vunpack.c.0.s8 %v3781
    %v3783 = vlaneseq
    %v3784 = vshrl.u32 %v3783, 7
    %v3785 = vsub.s32 %v3782, %v3784
    %v3786 = vrot.slane %v3779, %v3785
    %v3787 = vcombine.high %v3786, 0.0
    %v3788 = vcombine.low %v1753, %v1781
    %v3790 = vunpack.c.l.s4 1934713408
    %v3791 = vunpack.c.0.s8 %v3790
    %v3792 = vlaneseq
    %v3793 = vshrl.u32 %v3792, 7
    %v3794 = vsub.s32 %v3791, %v3793
    %v3795 = vrot.slane %v3788, %v3794
    %v3796 = vcombine.high %v3795, 0.0
    %v3797 = vcombine.low %v1809, %v1837
    %v3799 = vunpack.c.l.s4 1934713408
    %v3800 = vunpack.c.0.s8 %v3799
    %v3801 = vlaneseq
    %v3802 = vshrl.u32 %v3801, 7
    %v3803 = vsub.s32 %v3800, %v3802
    %v3804 = vrot.slane %v3797, %v3803
    %v3805 = vcombine.high %v3804, 0.0
    %v3806 = vcombine.low %v1844, %v1872
    %v3808 = vunpack.c.l.s4 1934713408
    %v3809 = vunpack.c.0.s8 %v3808
    %v3810 = vlaneseq
    %v3811 = vshrl.u32 %v3810, 7
    %v3812 = vsub.s32 %v3809, %v3811
    %v3813 = vrot.slane %v3806, %v3812
    %v3814 = vcombine.high %v3813, 0.0
    %v3815 = vcombine.low %v1900, %v1928
    %v3817 = vunpack.c.l.s4 1934713408
    %v3818 = vunpack.c.0.s8 %v3817
    %v3819 = vlaneseq
    %v3820 = vshrl.u32 %v3819, 7
    %v3821 = vsub.s32 %v3818, %v3820
    %v3822 = vrot.slane %v3815, %v3821
    %v3823 = vcombine.high %v3822, 0.0
    %v3824 = vcombine.low %v1956, %v1984
    %v3826 = vunpack.c.l.s4 1934713408
    %v3827 = vunpack.c.0.s8 %v3826
    %v3828 = vlaneseq
    %v3829 = vshrl.u32 %v3828, 7
    %v3830 = vsub.s32 %v3827, %v3829
    %v3831 = vrot.slane %v3824, %v3830
    %v3832 = vcombine.high %v3831, 0.0
    %v3833 = vcombine.low %v2012, %v2040
    %v3835 = vunpack.c.l.s4 1934713408
    %v3836 = vunpack.c.0.s8 %v3835
    %v3837 = vlaneseq
    %v3838 = vshrl.u32 %v3837, 7
    %v3839 = vsub.s32 %v3836, %v3838
    %v3840 = vrot.slane %v3833, %v3839
    %v3841 = vcombine.high %v3840, 0.0
    %v3842 = vcombine.low %v1851, %v1879
    %v3844 = vunpack.c.l.s4 1934713408
    %v3845 = vunpack.c.0.s8 %v3844
    %v3846 = vlaneseq
    %v3847 = vshrl.u32 %v3846, 7
    %v3848 = vsub.s32 %v3845, %v3847
    %v3849 = vrot.slane %v3842, %v3848
    %v3850 = vcombine.high %v3849, 0.0
    %v3851 = vcombine.low %v1907, %v1935
    %v3853 = vunpack.c.l.s4 1934713408
    %v3854 = vunpack.c.0.s8 %v3853
    %v3855 = vlaneseq
    %v3856 = vshrl.u32 %v3855, 7
    %v3857 = vsub.s32 %v3854, %v3856
    %v3858 = vrot.slane %v3851, %v3857
    %v3859 = vcombine.high %v3858, 0.0
    %v3860 = vcombine.low %v1963, %v1991
    %v3862 = vunpack.c.l.s4 1934713408
    %v3863 = vunpack.c.0.s8 %v3862
    %v3864 = vlaneseq
    %v3865 = vshrl.u32 %v3864, 7
    %v3866 = vsub.s32 %v3863, %v3865
    %v3867 = vrot.slane %v3860, %v3866
    %v3868 = vcombine.high %v3867, 0.0
    %v3869 = vcombine.low %v2019, %v2047
    %v3871 = vunpack.c.l.s4 1934713408
    %v3872 = vunpack.c.0.s8 %v3871
    %v3873 = vlaneseq
    %v3874 = vshrl.u32 %v3873, 7
    %v3875 = vsub.s32 %v3872, %v3874
    %v3876 = vrot.slane %v3869, %v3875
    %v3877 = vcombine.high %v3876, 0.0
    %v3878 = vcombine.low %v1858, %v1886
    %v3880 = vunpack.c.l.s4 1934713408
    %v3881 = vunpack.c.0.s8 %v3880
    %v3882 = vlaneseq
    %v3883 = vshrl.u32 %v3882, 7
    %v3884 = vsub.s32 %v3881, %v3883
    %v3885 = vrot.slane %v3878, %v3884
    %v3886 = vcombine.high %v3885, 0.0
    %v3887 = vcombine.low %v1914, %v1942
    %v3889 = vunpack.c.l.s4 1934713408
    %v3890 = vunpack.c.0.s8 %v3889
    %v3891 = vlaneseq
    %v3892 = vshrl.u32 %v3891, 7
    %v3893 = vsub.s32 %v3890, %v3892
    %v3894 = vrot.slane %v3887, %v3893
    %v3895 = vcombine.high %v3894, 0.0
    %v3896 = vcombine.low %v1970, %v1998
    %v3898 = vunpack.c.l.s4 1934713408
    %v3899 = vunpack.c.0.s8 %v3898
    %v3900 = vlaneseq
    %v3901 = vshrl.u32 %v3900, 7
    %v3902 = vsub.s32 %v3899, %v3901
    %v3903 = vrot.slane %v3896, %v3902
    %v3904 = vcombine.high %v3903, 0.0
    %v3905 = vcombine.low %v2026, %v2054
    %v3907 = vunpack.c.l.s4 1934713408
    %v3908 = vunpack.c.0.s8 %v3907
    %v3909 = vlaneseq
    %v3910 = vshrl.u32 %v3909, 7
    %v3911 = vsub.s32 %v3908, %v3910
    %v3912 = vrot.slane %v3905, %v3911
    %v3913 = vcombine.high %v3912, 0.0
    %v3914 = vcombine.low %v1865, %v1893
    %v3916 = vunpack.c.l.s4 1934713408
    %v3917 = vunpack.c.0.s8 %v3916
    %v3918 = vlaneseq
    %v3919 = vshrl.u32 %v3918, 7
    %v3920 = vsub.s32 %v3917, %v3919
    %v3921 = vrot.slane %v3914, %v3920
    %v3922 = vcombine.high %v3921, 0.0
    %v3923 = vcombine.low %v1921, %v1949
    %v3925 = vunpack.c.l.s4 1934713408
    %v3926 = vunpack.c.0.s8 %v3925
    %v3927 = vlaneseq
    %v3928 = vshrl.u32 %v3927, 7
    %v3929 = vsub.s32 %v3926, %v3928
    %v3930 = vrot.slane %v3923, %v3929
    %v3931 = vcombine.high %v3930, 0.0
    %v3932 = vcombine.low %v1977, %v2005
    %v3934 = vunpack.c.l.s4 1934713408
    %v3935 = vunpack.c.0.s8 %v3934
    %v3936 = vlaneseq
    %v3937 = vshrl.u32 %v3936, 7
    %v3938 = vsub.s32 %v3935, %v3937
    %v3939 = vrot.slane %v3932, %v3938
    %v3940 = vcombine.high %v3939, 0.0
    %v3941 = vcombine.low %v2033, %v2061
    %v3943 = vunpack.c.l.s4 1934713408
    %v3944 = vunpack.c.0.s8 %v3943
    %v3945 = vlaneseq
    %v3946 = vshrl.u32 %v3945, 7
    %v3947 = vsub.s32 %v3944, %v3946
    %v3948 = vrot.slane %v3941, %v3947
    %v3949 = vcombine.high %v3948, 0.0
    %v3950 = vcombine.low %v2068, %v2096
    %v3952 = vunpack.c.l.s4 1934713408
    %v3953 = vunpack.c.0.s8 %v3952
    %v3954 = vlaneseq
    %v3955 = vshrl.u32 %v3954, 7
    %v3956 = vsub.s32 %v3953, %v3955
    %v3957 = vrot.slane %v3950, %v3956
    %v3958 = vcombine.high %v3957, 0.0
    %v3959 = vcombine.low %v2124, %v2152
    %v3961 = vunpack.c.l.s4 1934713408
    %v3962 = vunpack.c.0.s8 %v3961
    %v3963 = vlaneseq
    %v3964 = vshrl.u32 %v3963, 7
    %v3965 = vsub.s32 %v3962, %v3964
    %v3966 = vrot.slane %v3959, %v3965
    %v3967 = vcombine.high %v3966, 0.0
    %v3968 = vcombine.low %v2180, %v2208
    %v3970 = vunpack.c.l.s4 1934713408
    %v3971 = vunpack.c.0.s8 %v3970
    %v3972 = vlaneseq
    %v3973 = vshrl.u32 %v3972, 7
    %v3974 = vsub.s32 %v3971, %v3973
    %v3975 = vrot.slane %v3968, %v3974
    %v3976 = vcombine.high %v3975, 0.0
    %v3977 = vcombine.low %v2236, %v2264
    %v3979 = vunpack.c.l.s4 1934713408
    %v3980 = vunpack.c.0.s8 %v3979
    %v3981 = vlaneseq
    %v3982 = vshrl.u32 %v3981, 7
    %v3983 = vsub.s32 %v3980, %v3982
    %v3984 = vrot.slane %v3977, %v3983
    %v3985 = vcombine.high %v3984, 0.0
    %v3986 = vcombine.low %v2075, %v2103
    %v3988 = vunpack.c.l.s4 1934713408
    %v3989 = vunpack.c.0.s8 %v3988
    %v3990 = vlaneseq
    %v3991 = vshrl.u32 %v3990, 7
    %v3992 = vsub.s32 %v3989, %v3991
    %v3993 = vrot.slane %v3986, %v3992
    %v3994 = vcombine.high %v3993, 0.0
    %v3995 = vcombine.low %v2131, %v2159
    %v3997 = vunpack.c.l.s4 1934713408
    %v3998 = vunpack.c.0.s8 %v3997
    %v3999 = vlaneseq
    %v4000 = vshrl.u32 %v3999, 7
    %v4001 = vsub.s32 %v3998, %v4000
    %v4002 = vrot.slane %v3995, %v4001
    %v4003 = vcombine.high %v4002, 0.0
    %v4004 = vcombine.low %v2187, %v2215
    %v4006 = vunpack.c.l.s4 1934713408
    %v4007 = vunpack.c.0.s8 %v4006
    %v4008 = vlaneseq
    %v4009 = vshrl.u32 %v4008, 7
    %v4010 = vsub.s32 %v4007, %v4009
    %v4011 = vrot.slane %v4004, %v4010
    %v4012 = vcombine.high %v4011, 0.0
    %v4013 = vcombine.low %v2243, %v2271
    %v4015 = vunpack.c.l.s4 1934713408
    %v4016 = vunpack.c.0.s8 %v4015
    %v4017 = vlaneseq
    %v4018 = vshrl.u32 %v4017, 7
    %v4019 = vsub.s32 %v4016, %v4018
    %v4020 = vrot.slane %v4013, %v4019
    %v4021 = vcombine.high %v4020, 0.0
    %v4022 = vcombine.low %v2082, %v2110
    %v4024 = vunpack.c.l.s4 1934713408
    %v4025 = vunpack.c.0.s8 %v4024
    %v4026 = vlaneseq
    %v4027 = vshrl.u32 %v4026, 7
    %v4028 = vsub.s32 %v4025, %v4027
    %v4029 = vrot.slane %v4022, %v4028
    %v4030 = vcombine.high %v4029, 0.0
    %v4031 = vcombine.low %v2138, %v2166
    %v4033 = vunpack.c.l.s4 1934713408
    %v4034 = vunpack.c.0.s8 %v4033
    %v4035 = vlaneseq
    %v4036 = vshrl.u32 %v4035, 7
    %v4037 = vsub.s32 %v4034, %v4036
    %v4038 = vrot.slane %v4031, %v4037
    %v4039 = vcombine.high %v4038, 0.0
    %v4040 = vcombine.low %v2194, %v2222
    %v4042 = vunpack.c.l.s4 1934713408
    %v4043 = vunpack.c.0.s8 %v4042
    %v4044 = vlaneseq
    %v4045 = vshrl.u32 %v4044, 7
    %v4046 = vsub.s32 %v4043, %v4045
    %v4047 = vrot.slane %v4040, %v4046
    %v4048 = vcombine.high %v4047, 0.0
    %v4049 = vcombine.low %v2250, %v2278
    %v4051 = vunpack.c.l.s4 1934713408
    %v4052 = vunpack.c.0.s8 %v4051
    %v4053 = vlaneseq
    %v4054 = vshrl.u32 %v4053, 7
    %v4055 = vsub.s32 %v4052, %v4054
    %v4056 = vrot.slane %v4049, %v4055
    %v4057 = vcombine.high %v4056, 0.0
    %v4058 = vcombine.low %v2089, %v2117
    %v4060 = vunpack.c.l.s4 1934713408
    %v4061 = vunpack.c.0.s8 %v4060
    %v4062 = vlaneseq
    %v4063 = vshrl.u32 %v4062, 7
    %v4064 = vsub.s32 %v4061, %v4063
    %v4065 = vrot.slane %v4058, %v4064
    %v4066 = vcombine.high %v4065, 0.0
    %v4067 = vcombine.low %v2145, %v2173
    %v4069 = vunpack.c.l.s4 1934713408
    %v4070 = vunpack.c.0.s8 %v4069
    %v4071 = vlaneseq
    %v4072 = vshrl.u32 %v4071, 7
    %v4073 = vsub.s32 %v4070, %v4072
    %v4074 = vrot.slane %v4067, %v4073
    %v4075 = vcombine.high %v4074, 0.0
    %v4076 = vcombine.low %v2201, %v2229
    %v4078 = vunpack.c.l.s4 1934713408
    %v4079 = vunpack.c.0.s8 %v4078
    %v4080 = vlaneseq
    %v4081 = vshrl.u32 %v4080, 7
    %v4082 = vsub.s32 %v4079, %v4081
    %v4083 = vrot.slane %v4076, %v4082
    %v4084 = vcombine.high %v4083, 0.0
    %v4085 = vcombine.low %v2257, %v2285
    %v4087 = vunpack.c.l.s4 1934713408
    %v4088 = vunpack.c.0.s8 %v4087
    %v4089 = vlaneseq
    %v4090 = vshrl.u32 %v4089, 7
    %v4091 = vsub.s32 %v4088, %v4090
    %v4092 = vrot.slane %v4085, %v4091
    %v4093 = vcombine.high %v4092, 0.0
    %v4094 = vcombine.low %v2292, %v2320
    %v4096 = vunpack.c.l.s4 1934713408
    %v4097 = vunpack.c.0.s8 %v4096
    %v4098 = vlaneseq
    %v4099 = vshrl.u32 %v4098, 7
    %v4100 = vsub.s32 %v4097, %v4099
    %v4101 = vrot.slane %v4094, %v4100
    %v4102 = vcombine.high %v4101, 0.0
    %v4103 = vcombine.low %v2348, %v2376
    %v4105 = vunpack.c.l.s4 1934713408
    %v4106 = vunpack.c.0.s8 %v4105
    %v4107 = vlaneseq
    %v4108 = vshrl.u32 %v4107, 7
    %v4109 = vsub.s32 %v4106, %v4108
    %v4110 = vrot.slane %v4103, %v4109
    %v4111 = vcombine.high %v4110, 0.0
    %v4112 = vcombine.low %v2404, %v2432
    %v4114 = vunpack.c.l.s4 1934713408
    %v4115 = vunpack.c.0.s8 %v4114
    %v4116 = vlaneseq
    %v4117 = vshrl.u32 %v4116, 7
    %v4118 = vsub.s32 %v4115, %v4117
    %v4119 = vrot.slane %v4112, %v4118
    %v4120 = vcombine.high %v4119, 0.0
    %v4121 = vcombine.low %v2460, %v2488
    %v4123 = vunpack.c.l.s4 1934713408
    %v4124 = vunpack.c.0.s8 %v4123
    %v4125 = vlaneseq
    %v4126 = vshrl.u32 %v4125, 7
    %v4127 = vsub.s32 %v4124, %v4126
    %v4128 = vrot.slane %v4121, %v4127
    %v4129 = vcombine.high %v4128, 0.0
    %v4130 = vcombine.low %v2299, %v2327
    %v4132 = vunpack.c.l.s4 1934713408
    %v4133 = vunpack.c.0.s8 %v4132
    %v4134 = vlaneseq
    %v4135 = vshrl.u32 %v4134, 7
    %v4136 = vsub.s32 %v4133, %v4135
    %v4137 = vrot.slane %v4130, %v4136
    %v4138 = vcombine.high %v4137, 0.0
    %v4139 = vcombine.low %v2355, %v2383
    %v4141 = vunpack.c.l.s4 1934713408
    %v4142 = vunpack.c.0.s8 %v4141
    %v4143 = vlaneseq
    %v4144 = vshrl.u32 %v4143, 7
    %v4145 = vsub.s32 %v4142, %v4144
    %v4146 = vrot.slane %v4139, %v4145
    %v4147 = vcombine.high %v4146, 0.0
    %v4148 = vcombine.low %v2411, %v2439
    %v4150 = vunpack.c.l.s4 1934713408
    %v4151 = vunpack.c.0.s8 %v4150
    %v4152 = vlaneseq
    %v4153 = vshrl.u32 %v4152, 7
    %v4154 = vsub.s32 %v4151, %v4153
    %v4155 = vrot.slane %v4148, %v4154
    %v4156 = vcombine.high %v4155, 0.0
    %v4157 = vcombine.low %v2467, %v2495
    %v4159 = vunpack.c.l.s4 1934713408
    %v4160 = vunpack.c.0.s8 %v4159
    %v4161 = vlaneseq
    %v4162 = vshrl.u32 %v4161, 7
    %v4163 = vsub.s32 %v4160, %v4162
    %v4164 = vrot.slane %v4157, %v4163
    %v4165 = vcombine.high %v4164, 0.0
    %v4166 = vcombine.low %v2306, %v2334
    %v4168 = vunpack.c.l.s4 1934713408
    %v4169 = vunpack.c.0.s8 %v4168
    %v4170 = vlaneseq
    %v4171 = vshrl.u32 %v4170, 7
    %v4172 = vsub.s32 %v4169, %v4171
    %v4173 = vrot.slane %v4166, %v4172
    %v4174 = vcombine.high %v4173, 0.0
    %v4175 = vcombine.low %v2362, %v2390
    %v4177 = vunpack.c.l.s4 1934713408
    %v4178 = vunpack.c.0.s8 %v4177
    %v4179 = vlaneseq
    %v4180 = vshrl.u32 %v4179, 7
    %v4181 = vsub.s32 %v4178, %v4180
    %v4182 = vrot.slane %v4175, %v4181
    %v4183 = vcombine.high %v4182, 0.0
    %v4184 = vcombine.low %v2418, %v2446
    %v4186 = vunpack.c.l.s4 1934713408
    %v4187 = vunpack.c.0.s8 %v4186
    %v4188 = vlaneseq
    %v4189 = vshrl.u32 %v4188, 7
    %v4190 = vsub.s32 %v4187, %v4189
    %v4191 = vrot.slane %v4184, %v4190
    %v4192 = vcombine.high %v4191, 0.0
    %v4193 = vcombine.low %v2474, %v2502
    %v4195 = vunpack.c.l.s4 1934713408
    %v4196 = vunpack.c.0.s8 %v4195
    %v4197 = vlaneseq
    %v4198 = vshrl.u32 %v4197, 7
    %v4199 = vsub.s32 %v4196, %v4198
    %v4200 = vrot.slane %v4193, %v4199
    %v4201 = vcombine.high %v4200, 0.0
    %v4202 = vcombine.low %v2313, %v2341
    %v4204 = vunpack.c.l.s4 1934713408
    %v4205 = vunpack.c.0.s8 %v4204
    %v4206 = vlaneseq
    %v4207 = vshrl.u32 %v4206, 7
    %v4208 = vsub.s32 %v4205, %v4207
    %v4209 = vrot.slane %v4202, %v4208
    %v4210 = vcombine.high %v4209, 0.0
    %v4211 = vcombine.low %v2369, %v2397
    %v4213 = vunpack.c.l.s4 1934713408
    %v4214 = vunpack.c.0.s8 %v4213
    %v4215 = vlaneseq
    %v4216 = vshrl.u32 %v4215, 7
    %v4217 = vsub.s32 %v4214, %v4216
    %v4218 = vrot.slane %v4211, %v4217
    %v4219 = vcombine.high %v4218, 0.0
    %v4220 = vcombine.low %v2425, %v2453
    %v4222 = vunpack.c.l.s4 1934713408
    %v4223 = vunpack.c.0.s8 %v4222
    %v4224 = vlaneseq
    %v4225 = vshrl.u32 %v4224, 7
    %v4226 = vsub.s32 %v4223, %v4225
    %v4227 = vrot.slane %v4220, %v4226
    %v4228 = vcombine.high %v4227, 0.0
    %v4229 = vcombine.low %v2481, %v2509
    %v4231 = vunpack.c.l.s4 1934713408
    %v4232 = vunpack.c.0.s8 %v4231
    %v4233 = vlaneseq
    %v4234 = vshrl.u32 %v4233, 7
    %v4235 = vsub.s32 %v4232, %v4234
    %v4236 = vrot.slane %v4229, %v4235
    %v4237 = vcombine.high %v4236, 0.0
    %v4238 = vcombine.low %v2516, %v2544
    %v4240 = vunpack.c.l.s4 1934713408
    %v4241 = vunpack.c.0.s8 %v4240
    %v4242 = vlaneseq
    %v4243 = vshrl.u32 %v4242, 7
    %v4244 = vsub.s32 %v4241, %v4243
    %v4245 = vrot.slane %v4238, %v4244
    %v4246 = vcombine.high %v4245, 0.0
    %v4247 = vcombine.low %v2572, %v2600
    %v4249 = vunpack.c.l.s4 1934713408
    %v4250 = vunpack.c.0.s8 %v4249
    %v4251 = vlaneseq
    %v4252 = vshrl.u32 %v4251, 7
    %v4253 = vsub.s32 %v4250, %v4252
    %v4254 = vrot.slane %v4247, %v4253
    %v4255 = vcombine.high %v4254, 0.0
    %v4256 = vcombine.low %v2628, %v2656
    %v4258 = vunpack.c.l.s4 1934713408
    %v4259 = vunpack.c.0.s8 %v4258
    %v4260 = vlaneseq
    %v4261 = vshrl.u32 %v4260, 7
    %v4262 = vsub.s32 %v4259, %v4261
    %v4263 = vrot.slane %v4256, %v4262
    %v4264 = vcombine.high %v4263, 0.0
    %v4265 = vcombine.low %v2684, %v2712
    %v4267 = vunpack.c.l.s4 1934713408
    %v4268 = vunpack.c.0.s8 %v4267
    %v4269 = vlaneseq
    %v4270 = vshrl.u32 %v4269, 7
    %v4271 = vsub.s32 %v4268, %v4270
    %v4272 = vrot.slane %v4265, %v4271
    %v4273 = vcombine.high %v4272, 0.0
    %v4274 = vcombine.low %v2523, %v2551
    %v4276 = vunpack.c.l.s4 1934713408
    %v4277 = vunpack.c.0.s8 %v4276
    %v4278 = vlaneseq
    %v4279 = vshrl.u32 %v4278, 7
    %v4280 = vsub.s32 %v4277, %v4279
    %v4281 = vrot.slane %v4274, %v4280
    %v4282 = vcombine.high %v4281, 0.0
    %v4283 = vcombine.low %v2579, %v2607
    %v4285 = vunpack.c.l.s4 1934713408
    %v4286 = vunpack.c.0.s8 %v4285
    %v4287 = vlaneseq
    %v4288 = vshrl.u32 %v4287, 7
    %v4289 = vsub.s32 %v4286, %v4288
    %v4290 = vrot.slane %v4283, %v4289
    %v4291 = vcombine.high %v4290, 0.0
    %v4292 = vcombine.low %v2635, %v2663
    %v4294 = vunpack.c.l.s4 1934713408
    %v4295 = vunpack.c.0.s8 %v4294
    %v4296 = vlaneseq
    %v4297 = vshrl.u32 %v4296, 7
    %v4298 = vsub.s32 %v4295, %v4297
    %v4299 = vrot.slane %v4292, %v4298
    %v4300 = vcombine.high %v4299, 0.0
    %v4301 = vcombine.low %v2691, %v2719
    %v4303 = vunpack.c.l.s4 1934713408
    %v4304 = vunpack.c.0.s8 %v4303
    %v4305 = vlaneseq
    %v4306 = vshrl.u32 %v4305, 7
    %v4307 = vsub.s32 %v4304, %v4306
    %v4308 = vrot.slane %v4301, %v4307
    %v4309 = vcombine.high %v4308, 0.0
    %v4310 = vcombine.low %v2530, %v2558
    %v4312 = vunpack.c.l.s4 1934713408
    %v4313 = vunpack.c.0.s8 %v4312
    %v4314 = vlaneseq
    %v4315 = vshrl.u32 %v4314, 7
    %v4316 = vsub.s32 %v4313, %v4315
    %v4317 = vrot.slane %v4310, %v4316
    %v4318 = vcombine.high %v4317, 0.0
    %v4319 = vcombine.low %v2586, %v2614
    %v4321 = vunpack.c.l.s4 1934713408
    %v4322 = vunpack.c.0.s8 %v4321
    %v4323 = vlaneseq
    %v4324 = vshrl.u32 %v4323, 7
    %v4325 = vsub.s32 %v4322, %v4324
    %v4326 = vrot.slane %v4319, %v4325
    %v4327 = vcombine.high %v4326, 0.0
    %v4328 = vcombine.low %v2642, %v2670
    %v4330 = vunpack.c.l.s4 1934713408
    %v4331 = vunpack.c.0.s8 %v4330
    %v4332 = vlaneseq
    %v4333 = vshrl.u32 %v4332, 7
    %v4334 = vsub.s32 %v4331, %v4333
    %v4335 = vrot.slane %v4328, %v4334
    %v4336 = vcombine.high %v4335, 0.0
    %v4337 = vcombine.low %v2698, %v2726
    %v4339 = vunpack.c.l.s4 1934713408
    %v4340 = vunpack.c.0.s8 %v4339
    %v4341 = vlaneseq
    %v4342 = vshrl.u32 %v4341, 7
    %v4343 = vsub.s32 %v4340, %v4342
    %v4344 = vrot.slane %v4337, %v4343
    %v4345 = vcombine.high %v4344, 0.0
    %v4346 = vcombine.low %v2537, %v2565
    %v4348 = vunpack.c.l.s4 1934713408
    %v4349 = vunpack.c.0.s8 %v4348
    %v4350 = vlaneseq
    %v4351 = vshrl.u32 %v4350, 7
    %v4352 = vsub.s32 %v4349, %v4351
    %v4353 = vrot.slane %v4346, %v4352
    %v4354 = vcombine.high %v4353, 0.0
    %v4355 = vcombine.low %v2593, %v2621
    %v4357 = vunpack.c.l.s4 1934713408
    %v4358 = vunpack.c.0.s8 %v4357
    %v4359 = vlaneseq
    %v4360 = vshrl.u32 %v4359, 7
    %v4361 = vsub.s32 %v4358, %v4360
    %v4362 = vrot.slane %v4355, %v4361
    %v4363 = vcombine.high %v4362, 0.0
    %v4364 = vcombine.low %v2649, %v2677
    %v4366 = vunpack.c.l.s4 1934713408
    %v4367 = vunpack.c.0.s8 %v4366
    %v4368 = vlaneseq
    %v4369 = vshrl.u32 %v4368, 7
    %v4370 = vsub.s32 %v4367, %v4369
    %v4371 = vrot.slane %v4364, %v4370
    %v4372 = vcombine.high %v4371, 0.0
    %v4373 = vcombine.low %v2705, %v2733
    %v4375 = vunpack.c.l.s4 1934713408
    %v4376 = vunpack.c.0.s8 %v4375
    %v4377 = vlaneseq
    %v4378 = vshrl.u32 %v4377, 7
    %v4379 = vsub.s32 %v4376, %v4378
    %v4380 = vrot.slane %v4373, %v4379
    %v4381 = vcombine.high %v4380, 0.0
    %v4382 = vcombine.low %v2740, %v2768
    %v4384 = vunpack.c.l.s4 1934713408
    %v4385 = vunpack.c.0.s8 %v4384
    %v4386 = vlaneseq
    %v4387 = vshrl.u32 %v4386, 7
    %v4388 = vsub.s32 %v4385, %v4387
    %v4389 = vrot.slane %v4382, %v4388
    %v4390 = vcombine.high %v4389, 0.0
    %v4391 = vcombine.low %v2796, %v2824
    %v4393 = vunpack.c.l.s4 1934713408
    %v4394 = vunpack.c.0.s8 %v4393
    %v4395 = vlaneseq
    %v4396 = vshrl.u32 %v4395, 7
    %v4397 = vsub.s32 %v4394, %v4396
    %v4398 = vrot.slane %v4391, %v4397
    %v4399 = vcombine.high %v4398, 0.0
    %v4400 = vcombine.low %v2852, %v2880
    %v4402 = vunpack.c.l.s4 1934713408
    %v4403 = vunpack.c.0.s8 %v4402
    %v4404 = vlaneseq
    %v4405 = vshrl.u32 %v4404, 7
    %v4406 = vsub.s32 %v4403, %v4405
    %v4407 = vrot.slane %v4400, %v4406
    %v4408 = vcombine.high %v4407, 0.0
    %v4409 = vcombine.low %v2908, %v2936
    %v4411 = vunpack.c.l.s4 1934713408
    %v4412 = vunpack.c.0.s8 %v4411
    %v4413 = vlaneseq
    %v4414 = vshrl.u32 %v4413, 7
    %v4415 = vsub.s32 %v4412, %v4414
    %v4416 = vrot.slane %v4409, %v4415
    %v4417 = vcombine.high %v4416, 0.0
    %v4418 = vcombine.low %v2747, %v2775
    %v4420 = vunpack.c.l.s4 1934713408
    %v4421 = vunpack.c.0.s8 %v4420
    %v4422 = vlaneseq
    %v4423 = vshrl.u32 %v4422, 7
    %v4424 = vsub.s32 %v4421, %v4423
    %v4425 = vrot.slane %v4418, %v4424
    %v4426 = vcombine.high %v4425, 0.0
    %v4427 = vcombine.low %v2803, %v2831
    %v4429 = vunpack.c.l.s4 1934713408
    %v4430 = vunpack.c.0.s8 %v4429
    %v4431 = vlaneseq
    %v4432 = vshrl.u32 %v4431, 7
    %v4433 = vsub.s32 %v4430, %v4432
    %v4434 = vrot.slane %v4427, %v4433
    %v4435 = vcombine.high %v4434, 0.0
    %v4436 = vcombine.low %v2859, %v2887
    %v4438 = vunpack.c.l.s4 1934713408
    %v4439 = vunpack.c.0.s8 %v4438
    %v4440 = vlaneseq
    %v4441 = vshrl.u32 %v4440, 7
    %v4442 = vsub.s32 %v4439, %v4441
    %v4443 = vrot.slane %v4436, %v4442
    %v4444 = vcombine.high %v4443, 0.0
    %v4445 = vcombine.low %v2915, %v2943
    %v4447 = vunpack.c.l.s4 1934713408
    %v4448 = vunpack.c.0.s8 %v4447
    %v4449 = vlaneseq
    %v4450 = vshrl.u32 %v4449, 7
    %v4451 = vsub.s32 %v4448, %v4450
    %v4452 = vrot.slane %v4445, %v4451
    %v4453 = vcombine.high %v4452, 0.0
    %v4454 = vcombine.low %v2754, %v2782
    %v4456 = vunpack.c.l.s4 1934713408
    %v4457 = vunpack.c.0.s8 %v4456
    %v4458 = vlaneseq
    %v4459 = vshrl.u32 %v4458, 7
    %v4460 = vsub.s32 %v4457, %v4459
    %v4461 = vrot.slane %v4454, %v4460
    %v4462 = vcombine.high %v4461, 0.0
    %v4463 = vcombine.low %v2810, %v2838
    %v4465 = vunpack.c.l.s4 1934713408
    %v4466 = vunpack.c.0.s8 %v4465
    %v4467 = vlaneseq
    %v4468 = vshrl.u32 %v4467, 7
    %v4469 = vsub.s32 %v4466, %v4468
    %v4470 = vrot.slane %v4463, %v4469
    %v4471 = vcombine.high %v4470, 0.0
    %v4472 = vcombine.low %v2866, %v2894
    %v4474 = vunpack.c.l.s4 1934713408
    %v4475 = vunpack.c.0.s8 %v4474
    %v4476 = vlaneseq
    %v4477 = vshrl.u32 %v4476, 7
    %v4478 = vsub.s32 %v4475, %v4477
    %v4479 = vrot.slane %v4472, %v4478
    %v4480 = vcombine.high %v4479, 0.0
    %v4481 = vcombine.low %v2922, %v2950
    %v4483 = vunpack.c.l.s4 1934713408
    %v4484 = vunpack.c.0.s8 %v4483
    %v4485 = vlaneseq
    %v4486 = vshrl.u32 %v4485, 7
    %v4487 = vsub.s32 %v4484, %v4486
    %v4488 = vrot.slane %v4481, %v4487
    %v4489 = vcombine.high %v4488, 0.0
    %v4490 = vcombine.low %v2761, %v2789
    %v4492 = vunpack.c.l.s4 1934713408
    %v4493 = vunpack.c.0.s8 %v4492
    %v4494 = vlaneseq
    %v4495 = vshrl.u32 %v4494, 7
    %v4496 = vsub.s32 %v4493, %v4495
    %v4497 = vrot.slane %v4490, %v4496
    %v4498 = vcombine.high %v4497, 0.0
    %v4499 = vcombine.low %v2817, %v2845
    %v4501 = vunpack.c.l.s4 1934713408
    %v4502 = vunpack.c.0.s8 %v4501
    %v4503 = vlaneseq
    %v4504 = vshrl.u32 %v4503, 7
    %v4505 = vsub.s32 %v4502, %v4504
    %v4506 = vrot.slane %v4499, %v4505
    %v4507 = vcombine.high %v4506, 0.0
    %v4508 = vcombine.low %v2873, %v2901
    %v4510 = vunpack.c.l.s4 1934713408
    %v4511 = vunpack.c.0.s8 %v4510
    %v4512 = vlaneseq
    %v4513 = vshrl.u32 %v4512, 7
    %v4514 = vsub.s32 %v4511, %v4513
    %v4515 = vrot.slane %v4508, %v4514
    %v4516 = vcombine.high %v4515, 0.0
    %v4517 = vcombine.low %v2929, %v2957
    %v4519 = vunpack.c.l.s4 1934713408
    %v4520 = vunpack.c.0.s8 %v4519
    %v4521 = vlaneseq
    %v4522 = vshrl.u32 %v4521, 7
    %v4523 = vsub.s32 %v4520, %v4522
    %v4524 = vrot.slane %v4517, %v4523
    %v4525 = vcombine.high %v4524, 0.0
    %v4526 = vcombine.low %v2964, %v2992
    %v4528 = vunpack.c.l.s4 1934713408
    %v4529 = vunpack.c.0.s8 %v4528
    %v4530 = vlaneseq
    %v4531 = vshrl.u32 %v4530, 7
    %v4532 = vsub.s32 %v4529, %v4531
    %v4533 = vrot.slane %v4526, %v4532
    %v4534 = vcombine.high %v4533, 0.0
    %v4535 = vcombine.low %v3020, %v3048
    %v4537 = vunpack.c.l.s4 1934713408
    %v4538 = vunpack.c.0.s8 %v4537
    %v4539 = vlaneseq
    %v4540 = vshrl.u32 %v4539, 7
    %v4541 = vsub.s32 %v4538, %v4540
    %v4542 = vrot.slane %v4535, %v4541
    %v4543 = vcombine.high %v4542, 0.0
    %v4544 = vcombine.low %v3076, %v3104
    %v4546 = vunpack.c.l.s4 1934713408
    %v4547 = vunpack.c.0.s8 %v4546
    %v4548 = vlaneseq
    %v4549 = vshrl.u32 %v4548, 7
    %v4550 = vsub.s32 %v4547, %v4549
    %v4551 = vrot.slane %v4544, %v4550
    %v4552 = vcombine.high %v4551, 0.0
    %v4553 = vcombine.low %v3132, %v3160
    %v4555 = vunpack.c.l.s4 1934713408
    %v4556 = vunpack.c.0.s8 %v4555
    %v4557 = vlaneseq
    %v4558 = vshrl.u32 %v4557, 7
    %v4559 = vsub.s32 %v4556, %v4558
    %v4560 = vrot.slane %v4553, %v4559
    %v4561 = vcombine.high %v4560, 0.0
    %v4562 = vcombine.low %v2971, %v2999
    %v4564 = vunpack.c.l.s4 1934713408
    %v4565 = vunpack.c.0.s8 %v4564
    %v4566 = vlaneseq
    %v4567 = vshrl.u32 %v4566, 7
    %v4568 = vsub.s32 %v4565, %v4567
    %v4569 = vrot.slane %v4562, %v4568
    %v4570 = vcombine.high %v4569, 0.0
    %v4571 = vcombine.low %v3027, %v3055
    %v4573 = vunpack.c.l.s4 1934713408
    %v4574 = vunpack.c.0.s8 %v4573
    %v4575 = vlaneseq
    %v4576 = vshrl.u32 %v4575, 7
    %v4577 = vsub.s32 %v4574, %v4576
    %v4578 = vrot.slane %v4571, %v4577
    %v4579 = vcombine.high %v4578, 0.0
    %v4580 = vcombine.low %v3083, %v3111
    %v4582 = vunpack.c.l.s4 1934713408
    %v4583 = vunpack.c.0.s8 %v4582
    %v4584 = vlaneseq
    %v4585 = vshrl.u32 %v4584, 7
    %v4586 = vsub.s32 %v4583, %v4585
    %v4587 = vrot.slane %v4580, %v4586
    %v4588 = vcombine.high %v4587, 0.0
    %v4589 = vcombine.low %v3139, %v3167
    %v4591 = vunpack.c.l.s4 1934713408
    %v4592 = vunpack.c.0.s8 %v4591
    %v4593 = vlaneseq
    %v4594 = vshrl.u32 %v4593, 7
    %v4595 = vsub.s32 %v4592, %v4594
    %v4596 = vrot.slane %v4589, %v4595
    %v4597 = vcombine.high %v4596, 0.0
    %v4598 = vcombine.low %v2978, %v3006
    %v4600 = vunpack.c.l.s4 1934713408
    %v4601 = vunpack.c.0.s8 %v4600
    %v4602 = vlaneseq
    %v4603 = vshrl.u32 %v4602, 7
    %v4604 = vsub.s32 %v4601, %v4603
    %v4605 = vrot.slane %v4598, %v4604
    %v4606 = vcombine.high %v4605, 0.0
    %v4607 = vcombine.low %v3034, %v3062
    %v4609 = vunpack.c.l.s4 1934713408
    %v4610 = vunpack.c.0.s8 %v4609
    %v4611 = vlaneseq
    %v4612 = vshrl.u32 %v4611, 7
    %v4613 = vsub.s32 %v4610, %v4612
    %v4614 = vrot.slane %v4607, %v4613
    %v4615 = vcombine.high %v4614, 0.0
    %v4616 = vcombine.low %v3090, %v3118
    %v4618 = vunpack.c.l.s4 1934713408
    %v4619 = vunpack.c.0.s8 %v4618
    %v4620 = vlaneseq
    %v4621 = vshrl.u32 %v4620, 7
    %v4622 = vsub.s32 %v4619, %v4621
    %v4623 = vrot.slane %v4616, %v4622
    %v4624 = vcombine.high %v4623, 0.0
    %v4625 = vcombine.low %v3146, %v3174
    %v4627 = vunpack.c.l.s4 1934713408
    %v4628 = vunpack.c.0.s8 %v4627
    %v4629 = vlaneseq
    %v4630 = vshrl.u32 %v4629, 7
    %v4631 = vsub.s32 %v4628, %v4630
    %v4632 = vrot.slane %v4625, %v4631
    %v4633 = vcombine.high %v4632, 0.0
    %v4634 = vcombine.low %v2985, %v3013
    %v4636 = vunpack.c.l.s4 1934713408
    %v4637 = vunpack.c.0.s8 %v4636
    %v4638 = vlaneseq
    %v4639 = vshrl.u32 %v4638, 7
    %v4640 = vsub.s32 %v4637, %v4639
    %v4641 = vrot.slane %v4634, %v4640
    %v4642 = vcombine.high %v4641, 0.0
    %v4643 = vcombine.low %v3041, %v3069
    %v4645 = vunpack.c.l.s4 1934713408
    %v4646 = vunpack.c.0.s8 %v4645
    %v4647 = vlaneseq
    %v4648 = vshrl.u32 %v4647, 7
    %v4649 = vsub.s32 %v4646, %v4648
    %v4650 = vrot.slane %v4643, %v4649
    %v4651 = vcombine.high %v4650, 0.0
    %v4652 = vcombine.low %v3097, %v3125
    %v4654 = vunpack.c.l.s4 1934713408
    %v4655 = vunpack.c.0.s8 %v4654
    %v4656 = vlaneseq
    %v4657 = vshrl.u32 %v4656, 7
    %v4658 = vsub.s32 %v4655, %v4657
    %v4659 = vrot.slane %v4652, %v4658
    %v4660 = vcombine.high %v4659, 0.0
    %v4661 = vcombine.low %v3153, %v3181
    %v4663 = vunpack.c.l.s4 1934713408
    %v4664 = vunpack.c.0.s8 %v4663
    %v4665 = vlaneseq
    %v4666 = vshrl.u32 %v4665, 7
    %v4667 = vsub.s32 %v4664, %v4666
    %v4668 = vrot.slane %v4661, %v4667
    %v4669 = vcombine.high %v4668, 0.0
    %v4670 = vcombine.low %v3188, %v3216
    %v4672 = vunpack.c.l.s4 1934713408
    %v4673 = vunpack.c.0.s8 %v4672
    %v4674 = vlaneseq
    %v4675 = vshrl.u32 %v4674, 7
    %v4676 = vsub.s32 %v4673, %v4675
    %v4677 = vrot.slane %v4670, %v4676
    %v4678 = vcombine.high %v4677, 0.0
    %v4679 = vcombine.low %v3244, %v3272
    %v4681 = vunpack.c.l.s4 1934713408
    %v4682 = vunpack.c.0.s8 %v4681
    %v4683 = vlaneseq
    %v4684 = vshrl.u32 %v4683, 7
    %v4685 = vsub.s32 %v4682, %v4684
    %v4686 = vrot.slane %v4679, %v4685
    %v4687 = vcombine.high %v4686, 0.0
    %v4688 = vcombine.low %v3300, %v3328
    %v4690 = vunpack.c.l.s4 1934713408
    %v4691 = vunpack.c.0.s8 %v4690
    %v4692 = vlaneseq
    %v4693 = vshrl.u32 %v4692, 7
    %v4694 = vsub.s32 %v4691, %v4693
    %v4695 = vrot.slane %v4688, %v4694
    %v4696 = vcombine.high %v4695, 0.0
    %v4697 = vcombine.low %v3356, %v3384
    %v4699 = vunpack.c.l.s4 1934713408
    %v4700 = vunpack.c.0.s8 %v4699
    %v4701 = vlaneseq
    %v4702 = vshrl.u32 %v4701, 7
    %v4703 = vsub.s32 %v4700, %v4702
    %v4704 = vrot.slane %v4697, %v4703
    %v4705 = vcombine.high %v4704, 0.0
    %v4706 = vcombine.low %v3195, %v3223
    %v4708 = vunpack.c.l.s4 1934713408
    %v4709 = vunpack.c.0.s8 %v4708
    %v4710 = vlaneseq
    %v4711 = vshrl.u32 %v4710, 7
    %v4712 = vsub.s32 %v4709, %v4711
    %v4713 = vrot.slane %v4706, %v4712
    %v4714 = vcombine.high %v4713, 0.0
    %v4715 = vcombine.low %v3251, %v3279
    %v4717 = vunpack.c.l.s4 1934713408
    %v4718 = vunpack.c.0.s8 %v4717
    %v4719 = vlaneseq
    %v4720 = vshrl.u32 %v4719, 7
    %v4721 = vsub.s32 %v4718, %v4720
    %v4722 = vrot.slane %v4715, %v4721
    %v4723 = vcombine.high %v4722, 0.0
    %v4724 = vcombine.low %v3307, %v3335
    %v4726 = vunpack.c.l.s4 1934713408
    %v4727 = vunpack.c.0.s8 %v4726
    %v4728 = vlaneseq
    %v4729 = vshrl.u32 %v4728, 7
    %v4730 = vsub.s32 %v4727, %v4729
    %v4731 = vrot.slane %v4724, %v4730
    %v4732 = vcombine.high %v4731, 0.0
    %v4733 = vcombine.low %v3363, %v3391
    %v4735 = vunpack.c.l.s4 1934713408
    %v4736 = vunpack.c.0.s8 %v4735
    %v4737 = vlaneseq
    %v4738 = vshrl.u32 %v4737, 7
    %v4739 = vsub.s32 %v4736, %v4738
    %v4740 = vrot.slane %v4733, %v4739
    %v4741 = vcombine.high %v4740, 0.0
    %v4742 = vcombine.low %v3202, %v3230
    %v4744 = vunpack.c.l.s4 1934713408
    %v4745 = vunpack.c.0.s8 %v4744
    %v4746 = vlaneseq
    %v4747 = vshrl.u32 %v4746, 7
    %v4748 = vsub.s32 %v4745, %v4747
    %v4749 = vrot.slane %v4742, %v4748
    %v4750 = vcombine.high %v4749, 0.0
    %v4751 = vcombine.low %v3258, %v3286
    %v4753 = vunpack.c.l.s4 1934713408
    %v4754 = vunpack.c.0.s8 %v4753
    %v4755 = vlaneseq
    %v4756 = vshrl.u32 %v4755, 7
    %v4757 = vsub.s32 %v4754, %v4756
    %v4758 = vrot.slane %v4751, %v4757
    %v4759 = vcombine.high %v4758, 0.0
    %v4760 = vcombine.low %v3314, %v3342
    %v4762 = vunpack.c.l.s4 1934713408
    %v4763 = vunpack.c.0.s8 %v4762
    %v4764 = vlaneseq
    %v4765 = vshrl.u32 %v4764, 7
    %v4766 = vsub.s32 %v4763, %v4765
    %v4767 = vrot.slane %v4760, %v4766
    %v4768 = vcombine.high %v4767, 0.0
    %v4769 = vcombine.low %v3370, %v3398
    %v4771 = vunpack.c.l.s4 1934713408
    %v4772 = vunpack.c.0.s8 %v4771
    %v4773 = vlaneseq
    %v4774 = vshrl.u32 %v4773, 7
    %v4775 = vsub.s32 %v4772, %v4774
    %v4776 = vrot.slane %v4769, %v4775
    %v4777 = vcombine.high %v4776, 0.0
    %v4778 = vcombine.low %v3209, %v3237
    %v4780 = vunpack.c.l.s4 1934713408
    %v4781 = vunpack.c.0.s8 %v4780
    %v4782 = vlaneseq
    %v4783 = vshrl.u32 %v4782, 7
    %v4784 = vsub.s32 %v4781, %v4783
    %v4785 = vrot.slane %v4778, %v4784
    %v4786 = vcombine.high %v4785, 0.0
    %v4787 = vcombine.low %v3265, %v3293
    %v4789 = vunpack.c.l.s4 1934713408
    %v4790 = vunpack.c.0.s8 %v4789
    %v4791 = vlaneseq
    %v4792 = vshrl.u32 %v4791, 7
    %v4793 = vsub.s32 %v4790, %v4792
    %v4794 = vrot.slane %v4787, %v4793
    %v4795 = vcombine.high %v4794, 0.0
    %v4796 = vcombine.low %v3321, %v3349
    %v4798 = vunpack.c.l.s4 1934713408
    %v4799 = vunpack.c.0.s8 %v4798
    %v4800 = vlaneseq
    %v4801 = vshrl.u32 %v4800, 7
    %v4802 = vsub.s32 %v4799, %v4801
    %v4803 = vrot.slane %v4796, %v4802
    %v4804 = vcombine.high %v4803, 0.0
    %v4805 = vcombine.low %v3377, %v3405
    %v4807 = vunpack.c.l.s4 1934713408
    %v4808 = vunpack.c.0.s8 %v4807
    %v4809 = vlaneseq
    %v4810 = vshrl.u32 %v4809, 7
    %v4811 = vsub.s32 %v4808, %v4810
    %v4812 = vrot.slane %v4805, %v4811
    %v4813 = vcombine.high %v4812, 0.0
    %v5070 = vcombine.low %v3669, %v3678
    %v5071 = vcombine.low %v3687, %v3696
    %v5073 = vunpack.c.l.s4 1983009808
    %v5074 = vunpack.c.0.s8 %v5073
    %v5075 = vlaneseq
    %v5076 = vshrl.u32 %v5075, 7
    %v5077 = vsub.s32 %v5074, %v5076
    %v5078 = vrot.slane %v5070, %v5077
    %v5080 = vunpack.c.l.s4 1983009808
    %v5081 = vunpack.c.0.s8 %v5080
    %v5082 = vlaneseq
    %v5083 = vshrl.u32 %v5082, 7
    %v5084 = vsub.s32 %v5081, %v5083
    %v5085 = vrot.slane %v5071, %v5084
    %v5086 = vcombine.low %v5078, %v5085
    %v5087 = vcombine.low %v3670, %v3679
    %v5088 = vcombine.low %v3688, %v3697
    %v5090 = vunpack.c.l.s4 1983009808
    %v5091 = vunpack.c.0.s8 %v5090
    %v5092 = vlaneseq
    %v5093 = vshrl.u32 %v5092, 7
    %v5094 = vsub.s32 %v5091, %v5093
    %v5095 = vrot.slane %v5087, %v5094
    %v5097 = vunpack.c.l.s4 1983009808
    %v5098 = vunpack.c.0.s8 %v5097
    %v5099 = vlaneseq
    %v5100 = vshrl.u32 %v5099, 7
    %v5101 = vsub.s32 %v5098, %v5100
    %v5102 = vrot.slane %v5088, %v5101
    %v5103 = vcombine.low %v5095, %v5102
    %v5104 = vcombine.low %v3705, %v3714
    %v5105 = vcombine.low %v3723, %v3732
    %v5107 = vunpack.c.l.s4 1983009808
    %v5108 = vunpack.c.0.s8 %v5107
    %v5109 = vlaneseq
    %v5110 = vshrl.u32 %v5109, 7
    %v5111 = vsub.s32 %v5108, %v5110
    %v5112 = vrot.slane %v5104, %v5111
    %v5114 = vunpack.c.l.s4 1983009808
    %v5115 = vunpack.c.0.s8 %v5114
    %v5116 = vlaneseq
    %v5117 = vshrl.u32 %v5116, 7
    %v5118 = vsub.s32 %v5115, %v5117
    %v5119 = vrot.slane %v5105, %v5118
    %v5120 = vcombine.low %v5112, %v5119
    %v5121 = vcombine.low %v3706, %v3715
    %v5122 = vcombine.low %v3724, %v3733
    %v5124 = vunpack.c.l.s4 1983009808
    %v5125 = vunpack.c.0.s8 %v5124
    %v5126 = vlaneseq
    %v5127 = vshrl.u32 %v5126, 7
    %v5128 = vsub.s32 %v5125, %v5127
    %v5129 = vrot.slane %v5121, %v5128
    %v5131 = vunpack.c.l.s4 1983009808
    %v5132 = vunpack.c.0.s8 %v5131
    %v5133 = vlaneseq
    %v5134 = vshrl.u32 %v5133, 7
    %v5135 = vsub.s32 %v5132, %v5134
    %v5136 = vrot.slane %v5122, %v5135
    %v5137 = vcombine.low %v5129, %v5136
    %v5138 = vcombine.low %v3741, %v3750
    %v5139 = vcombine.low %v3759, %v3768
    %v5141 = vunpack.c.l.s4 1983009808
    %v5142 = vunpack.c.0.s8 %v5141
    %v5143 = vlaneseq
    %v5144 = vshrl.u32 %v5143, 7
    %v5145 = vsub.s32 %v5142, %v5144
    %v5146 = vrot.slane %v5138, %v5145
    %v5148 = vunpack.c.l.s4 1983009808
    %v5149 = vunpack.c.0.s8 %v5148
    %v5150 = vlaneseq
    %v5151 = vshrl.u32 %v5150, 7
    %v5152 = vsub.s32 %v5149, %v5151
    %v5153 = vrot.slane %v5139, %v5152
    %v5154 = vcombine.low %v5146, %v5153
    %v5155 = vcombine.low %v3742, %v3751
    %v5156 = vcombine.low %v3760, %v3769
    %v5158 = vunpack.c.l.s4 1983009808
    %v5159 = vunpack.c.0.s8 %v5158
    %v5160 = vlaneseq
    %v5161 = vshrl.u32 %v5160, 7
    %v5162 = vsub.s32 %v5159, %v5161
    %v5163 = vrot.slane %v5155, %v5162
    %v5165 = vunpack.c.l.s4 1983009808
    %v5166 = vunpack.c.0.s8 %v5165
    %v5167 = vlaneseq
    %v5168 = vshrl.u32 %v5167, 7
    %v5169 = vsub.s32 %v5166, %v5168
    %v5170 = vrot.slane %v5156, %v5169
    %v5171 = vcombine.low %v5163, %v5170
    %v5172 = vcombine.low %v3777, %v3786
    %v5173 = vcombine.low %v3795, %v3804
    %v5175 = vunpack.c.l.s4 1983009808
    %v5176 = vunpack.c.0.s8 %v5175
    %v5177 = vlaneseq
    %v5178 = vshrl.u32 %v5177, 7
    %v5179 = vsub.s32 %v5176, %v5178
    %v5180 = vrot.slane %v5172, %v5179
    %v5182 = vunpack.c.l.s4 1983009808
    %v5183 = vunpack.c.0.s8 %v5182
    %v5184 = vlaneseq
    %v5185 = vshrl.u32 %v5184, 7
    %v5186 = vsub.s32 %v5183, %v5185
    %v5187 = vrot.slane %v5173, %v5186
    %v5188 = vcombine.low %v5180, %v5187
    %v5189 = vcombine.low %v3778, %v3787
    %v5190 = vcombine.low %v3796, %v3805
    %v5192 = vunpack.c.l.s4 1983009808
    %v5193 = vunpack.c.0.s8 %v5192
    %v5194 = vlaneseq
    %v5195 = vshrl.u32 %v5194, 7
    %v5196 = vsub.s32 %v5193, %v5195
    %v5197 = vrot.slane %v5189, %v5196
    %v5199 = vunpack.c.l.s4 1983009808
    %v5200 = vunpack.c.0.s8 %v5199
    %v5201 = vlaneseq
    %v5202 = vshrl.u32 %v5201, 7
    %v5203 = vsub.s32 %v5200, %v5202
    %v5204 = vrot.slane %v5190, %v5203
    %v5205 = vcombine.low %v5197, %v5204
    %v5206 = vcombine.low %v3813, %v3822
    %v5207 = vcombine.low %v3831, %v3840
    %v5209 = vunpack.c.l.s4 1983009808
    %v5210 = vunpack.c.0.s8 %v5209
    %v5211 = vlaneseq
    %v5212 = vshrl.u32 %v5211, 7
    %v5213 = vsub.s32 %v5210, %v5212
    %v5214 = vrot.slane %v5206, %v5213
    %v5216 = vunpack.c.l.s4 1983009808
    %v5217 = vunpack.c.0.s8 %v5216
    %v5218 = vlaneseq
    %v5219 = vshrl.u32 %v5218, 7
    %v5220 = vsub.s32 %v5217, %v5219
    %v5221 = vrot.slane %v5207, %v5220
    %v5222 = vcombine.low %v5214, %v5221
    %v5223 = vcombine.low %v3814, %v3823
    %v5224 = vcombine.low %v3832, %v3841
    %v5226 = vunpack.c.l.s4 1983009808
    %v5227 = vunpack.c.0.s8 %v5226
    %v5228 = vlaneseq
    %v5229 = vshrl.u32 %v5228, 7
    %v5230 = vsub.s32 %v5227, %v5229
    %v5231 = vrot.slane %v5223, %v5230
    %v5233 = vunpack.c.l.s4 1983009808
    %v5234 = vunpack.c.0.s8 %v5233
    %v5235 = vlaneseq
    %v5236 = vshrl.u32 %v5235, 7
    %v5237 = vsub.s32 %v5234, %v5236
    %v5238 = vrot.slane %v5224, %v5237
    %v5239 = vcombine.low %v5231, %v5238
    %v5240 = vcombine.low %v3849, %v3858
    %v5241 = vcombine.low %v3867, %v3876
    %v5243 = vunpack.c.l.s4 1983009808
    %v5244 = vunpack.c.0.s8 %v5243
    %v5245 = vlaneseq
    %v5246 = vshrl.u32 %v5245, 7
    %v5247 = vsub.s32 %v5244, %v5246
    %v5248 = vrot.slane %v5240, %v5247
    %v5250 = vunpack.c.l.s4 1983009808
    %v5251 = vunpack.c.0.s8 %v5250
    %v5252 = vlaneseq
    %v5253 = vshrl.u32 %v5252, 7
    %v5254 = vsub.s32 %v5251, %v5253
    %v5255 = vrot.slane %v5241, %v5254
    %v5256 = vcombine.low %v5248, %v5255
    %v5257 = vcombine.low %v3850, %v3859
    %v5258 = vcombine.low %v3868, %v3877
    %v5260 = vunpack.c.l.s4 1983009808
    %v5261 = vunpack.c.0.s8 %v5260
    %v5262 = vlaneseq
    %v5263 = vshrl.u32 %v5262, 7
    %v5264 = vsub.s32 %v5261, %v5263
    %v5265 = vrot.slane %v5257, %v5264
    %v5267 = vunpack.c.l.s4 1983009808
    %v5268 = vunpack.c.0.s8 %v5267
    %v5269 = vlaneseq
    %v5270 = vshrl.u32 %v5269, 7
    %v5271 = vsub.s32 %v5268, %v5270
    %v5272 = vrot.slane %v5258, %v5271
    %v5273 = vcombine.low %v5265, %v5272
    %v5274 = vcombine.low %v3885, %v3894
    %v5275 = vcombine.low %v3903, %v3912
    %v5277 = vunpack.c.l.s4 1983009808
    %v5278 = vunpack.c.0.s8 %v5277
    %v5279 = vlaneseq
    %v5280 = vshrl.u32 %v5279, 7
    %v5281 = vsub.s32 %v5278, %v5280
    %v5282 = vrot.slane %v5274, %v5281
    %v5284 = vunpack.c.l.s4 1983009808
    %v5285 = vunpack.c.0.s8 %v5284
    %v5286 = vlaneseq
    %v5287 = vshrl.u32 %v5286, 7
    %v5288 = vsub.s32 %v5285, %v5287
    %v5289 = vrot.slane %v5275, %v5288
    %v5290 = vcombine.low %v5282, %v5289
    %v5291 = vcombine.low %v3886, %v3895
    %v5292 = vcombine.low %v3904, %v3913
    %v5294 = vunpack.c.l.s4 1983009808
    %v5295 = vunpack.c.0.s8 %v5294
    %v5296 = vlaneseq
    %v5297 = vshrl.u32 %v5296, 7
    %v5298 = vsub.s32 %v5295, %v5297
    %v5299 = vrot.slane %v5291, %v5298
    %v5301 = vunpack.c.l.s4 1983009808
    %v5302 = vunpack.c.0.s8 %v5301
    %v5303 = vlaneseq
    %v5304 = vshrl.u32 %v5303, 7
    %v5305 = vsub.s32 %v5302, %v5304
    %v5306 = vrot.slane %v5292, %v5305
    %v5307 = vcombine.low %v5299, %v5306
    %v5308 = vcombine.low %v3921, %v3930
    %v5309 = vcombine.low %v3939, %v3948
    %v5311 = vunpack.c.l.s4 1983009808
    %v5312 = vunpack.c.0.s8 %v5311
    %v5313 = vlaneseq
    %v5314 = vshrl.u32 %v5313, 7
    %v5315 = vsub.s32 %v5312, %v5314
    %v5316 = vrot.slane %v5308, %v5315
    %v5318 = vunpack.c.l.s4 1983009808
    %v5319 = vunpack.c.0.s8 %v5318
    %v5320 = vlaneseq
    %v5321 = vshrl.u32 %v5320, 7
    %v5322 = vsub.s32 %v5319, %v5321
    %v5323 = vrot.slane %v5309, %v5322
    %v5324 = vcombine.low %v5316, %v5323
    %v5325 = vcombine.low %v3922, %v3931
    %v5326 = vcombine.low %v3940, %v3949
    %v5328 = vunpack.c.l.s4 1983009808
    %v5329 = vunpack.c.0.s8 %v5328
    %v5330 = vlaneseq
    %v5331 = vshrl.u32 %v5330, 7
    %v5332 = vsub.s32 %v5329, %v5331
    %v5333 = vrot.slane %v5325, %v5332
    %v5335 = vunpack.c.l.s4 1983009808
    %v5336 = vunpack.c.0.s8 %v5335
    %v5337 = vlaneseq
    %v5338 = vshrl.u32 %v5337, 7
    %v5339 = vsub.s32 %v5336, %v5338
    %v5340 = vrot.slane %v5326, %v5339
    %v5341 = vcombine.low %v5333, %v5340
    %v5342 = vcombine.low %v3957, %v3966
    %v5343 = vcombine.low %v3975, %v3984
    %v5345 = vunpack.c.l.s4 1983009808
    %v5346 = vunpack.c.0.s8 %v5345
    %v5347 = vlaneseq
    %v5348 = vshrl.u32 %v5347, 7
    %v5349 = vsub.s32 %v5346, %v5348
    %v5350 = vrot.slane %v5342, %v5349
    %v5352 = vunpack.c.l.s4 1983009808
    %v5353 = vunpack.c.0.s8 %v5352
    %v5354 = vlaneseq
    %v5355 = vshrl.u32 %v5354, 7
    %v5356 = vsub.s32 %v5353, %v5355
    %v5357 = vrot.slane %v5343, %v5356
    %v5358 = vcombine.low %v5350, %v5357
    %v5359 = vcombine.low %v3958, %v3967
    %v5360 = vcombine.low %v3976, %v3985
    %v5362 = vunpack.c.l.s4 1983009808
    %v5363 = vunpack.c.0.s8 %v5362
    %v5364 = vlaneseq
    %v5365 = vshrl.u32 %v5364, 7
    %v5366 = vsub.s32 %v5363, %v5365
    %v5367 = vrot.slane %v5359, %v5366
    %v5369 = vunpack.c.l.s4 1983009808
    %v5370 = vunpack.c.0.s8 %v5369
    %v5371 = vlaneseq
    %v5372 = vshrl.u32 %v5371, 7
    %v5373 = vsub.s32 %v5370, %v5372
    %v5374 = vrot.slane %v5360, %v5373
    %v5375 = vcombine.low %v5367, %v5374
    %v5376 = vcombine.low %v3993, %v4002
    %v5377 = vcombine.low %v4011, %v4020
    %v5379 = vunpack.c.l.s4 1983009808
    %v5380 = vunpack.c.0.s8 %v5379
    %v5381 = vlaneseq
    %v5382 = vshrl.u32 %v5381, 7
    %v5383 = vsub.s32 %v5380, %v5382
    %v5384 = vrot.slane %v5376, %v5383
    %v5386 = vunpack.c.l.s4 1983009808
    %v5387 = vunpack.c.0.s8 %v5386
    %v5388 = vlaneseq
    %v5389 = vshrl.u32 %v5388, 7
    %v5390 = vsub.s32 %v5387, %v5389
    %v5391 = vrot.slane %v5377, %v5390
    %v5392 = vcombine.low %v5384, %v5391
    %v5393 = vcombine.low %v3994, %v4003
    %v5394 = vcombine.low %v4012, %v4021
    %v5396 = vunpack.c.l.s4 1983009808
    %v5397 = vunpack.c.0.s8 %v5396
    %v5398 = vlaneseq
    %v5399 = vshrl.u32 %v5398, 7
    %v5400 = vsub.s32 %v5397, %v5399
    %v5401 = vrot.slane %v5393, %v5400
    %v5403 = vunpack.c.l.s4 1983009808
    %v5404 = vunpack.c.0.s8 %v5403
    %v5405 = vlaneseq
    %v5406 = vshrl.u32 %v5405, 7
    %v5407 = vsub.s32 %v5404, %v5406
    %v5408 = vrot.slane %v5394, %v5407
    %v5409 = vcombine.low %v5401, %v5408
    %v5410 = vcombine.low %v4029, %v4038
    %v5411 = vcombine.low %v4047, %v4056
    %v5413 = vunpack.c.l.s4 1983009808
    %v5414 = vunpack.c.0.s8 %v5413
    %v5415 = vlaneseq
    %v5416 = vshrl.u32 %v5415, 7
    %v5417 = vsub.s32 %v5414, %v5416
    %v5418 = vrot.slane %v5410, %v5417
    %v5420 = vunpack.c.l.s4 1983009808
    %v5421 = vunpack.c.0.s8 %v5420
    %v5422 = vlaneseq
    %v5423 = vshrl.u32 %v5422, 7
    %v5424 = vsub.s32 %v5421, %v5423
    %v5425 = vrot.slane %v5411, %v5424
    %v5426 = vcombine.low %v5418, %v5425
    %v5427 = vcombine.low %v4030, %v4039
    %v5428 = vcombine.low %v4048, %v4057
    %v5430 = vunpack.c.l.s4 1983009808
    %v5431 = vunpack.c.0.s8 %v5430
    %v5432 = vlaneseq
    %v5433 = vshrl.u32 %v5432, 7
    %v5434 = vsub.s32 %v5431, %v5433
    %v5435 = vrot.slane %v5427, %v5434
    %v5437 = vunpack.c.l.s4 1983009808
    %v5438 = vunpack.c.0.s8 %v5437
    %v5439 = vlaneseq
    %v5440 = vshrl.u32 %v5439, 7
    %v5441 = vsub.s32 %v5438, %v5440
    %v5442 = vrot.slane %v5428, %v5441
    %v5443 = vcombine.low %v5435, %v5442
    %v5444 = vcombine.low %v4065, %v4074
    %v5445 = vcombine.low %v4083, %v4092
    %v5447 = vunpack.c.l.s4 1983009808
    %v5448 = vunpack.c.0.s8 %v5447
    %v5449 = vlaneseq
    %v5450 = vshrl.u32 %v5449, 7
    %v5451 = vsub.s32 %v5448, %v5450
    %v5452 = vrot.slane %v5444, %v5451
    %v5454 = vunpack.c.l.s4 1983009808
    %v5455 = vunpack.c.0.s8 %v5454
    %v5456 = vlaneseq
    %v5457 = vshrl.u32 %v5456, 7
    %v5458 = vsub.s32 %v5455, %v5457
    %v5459 = vrot.slane %v5445, %v5458
    %v5460 = vcombine.low %v5452, %v5459
    %v5461 = vcombine.low %v4066, %v4075
    %v5462 = vcombine.low %v4084, %v4093
    %v5464 = vunpack.c.l.s4 1983009808
    %v5465 = vunpack.c.0.s8 %v5464
    %v5466 = vlaneseq
    %v5467 = vshrl.u32 %v5466, 7
    %v5468 = vsub.s32 %v5465, %v5467
    %v5469 = vrot.slane %v5461, %v5468
    %v5471 = vunpack.c.l.s4 1983009808
    %v5472 = vunpack.c.0.s8 %v5471
    %v5473 = vlaneseq
    %v5474 = vshrl.u32 %v5473, 7
    %v5475 = vsub.s32 %v5472, %v5474
    %v5476 = vrot.slane %v5462, %v5475
    %v5477 = vcombine.low %v5469, %v5476
    %v5478 = vcombine.low %v4101, %v4110
    %v5479 = vcombine.low %v4119, %v4128
    %v5481 = vunpack.c.l.s4 1983009808
    %v5482 = vunpack.c.0.s8 %v5481
    %v5483 = vlaneseq
    %v5484 = vshrl.u32 %v5483, 7
    %v5485 = vsub.s32 %v5482, %v5484
    %v5486 = vrot.slane %v5478, %v5485
    %v5488 = vunpack.c.l.s4 1983009808
    %v5489 = vunpack.c.0.s8 %v5488
    %v5490 = vlaneseq
    %v5491 = vshrl.u32 %v5490, 7
    %v5492 = vsub.s32 %v5489, %v5491
    %v5493 = vrot.slane %v5479, %v5492
    %v5494 = vcombine.low %v5486, %v5493
    %v5495 = vcombine.low %v4102, %v4111
    %v5496 = vcombine.low %v4120, %v4129
    %v5498 = vunpack.c.l.s4 1983009808
    %v5499 = vunpack.c.0.s8 %v5498
    %v5500 = vlaneseq
    %v5501 = vshrl.u32 %v5500, 7
    %v5502 = vsub.s32 %v5499, %v5501
    %v5503 = vrot.slane %v5495, %v5502
    %v5505 = vunpack.c.l.s4 1983009808
    %v5506 = vunpack.c.0.s8 %v5505
    %v5507 = vlaneseq
    %v5508 = vshrl.u32 %v5507, 7
    %v5509 = vsub.s32 %v5506, %v5508
    %v5510 = vrot.slane %v5496, %v5509
    %v5511 = vcombine.low %v5503, %v5510
    %v5512 = vcombine.low %v4137, %v4146
    %v5513 = vcombine.low %v4155, %v4164
    %v5515 = vunpack.c.l.s4 1983009808
    %v5516 = vunpack.c.0.s8 %v5515
    %v5517 = vlaneseq
    %v5518 = vshrl.u32 %v5517, 7
    %v5519 = vsub.s32 %v5516, %v5518
    %v5520 = vrot.slane %v5512, %v5519
    %v5522 = vunpack.c.l.s4 1983009808
    %v5523 = vunpack.c.0.s8 %v5522
    %v5524 = vlaneseq
    %v5525 = vshrl.u32 %v5524, 7
    %v5526 = vsub.s32 %v5523, %v5525
    %v5527 = vrot.slane %v5513, %v5526
    %v5528 = vcombine.low %v5520, %v5527
    %v5529 = vcombine.low %v4138, %v4147
    %v5530 = vcombine.low %v4156, %v4165
    %v5532 = vunpack.c.l.s4 1983009808
    %v5533 = vunpack.c.0.s8 %v5532
    %v5534 = vlaneseq
    %v5535 = vshrl.u32 %v5534, 7
    %v5536 = vsub.s32 %v5533, %v5535
    %v5537 = vrot.slane %v5529, %v5536
    %v5539 = vunpack.c.l.s4 1983009808
    %v5540 = vunpack.c.0.s8 %v5539
    %v5541 = vlaneseq
    %v5542 = vshrl.u32 %v5541, 7
    %v5543 = vsub.s32 %v5540, %v5542
    %v5544 = vrot.slane %v5530, %v5543
    %v5545 = vcombine.low %v5537, %v5544
    %v5546 = vcombine.low %v4173, %v4182
    %v5547 = vcombine.low %v4191, %v4200
    %v5549 = vunpack.c.l.s4 1983009808
    %v5550 = vunpack.c.0.s8 %v5549
    %v5551 = vlaneseq
    %v5552 = vshrl.u32 %v5551, 7
    %v5553 = vsub.s32 %v5550, %v5552
    %v5554 = vrot.slane %v5546, %v5553
    %v5556 = vunpack.c.l.s4 1983009808
    %v5557 = vunpack.c.0.s8 %v5556
    %v5558 = vlaneseq
    %v5559 = vshrl.u32 %v5558, 7
    %v5560 = vsub.s32 %v5557, %v5559
    %v5561 = vrot.slane %v5547, %v5560
    %v5562 = vcombine.low %v5554, %v5561
    %v5563 = vcombine.low %v4174, %v4183
    %v5564 = vcombine.low %v4192, %v4201
    %v5566 = vunpack.c.l.s4 1983009808
    %v5567 = vunpack.c.0.s8 %v5566
    %v5568 = vlaneseq
    %v5569 = vshrl.u32 %v5568, 7
    %v5570 = vsub.s32 %v5567, %v5569
    %v5571 = vrot.slane %v5563, %v5570
    %v5573 = vunpack.c.l.s4 1983009808
    %v5574 = vunpack.c.0.s8 %v5573
    %v5575 = vlaneseq
    %v5576 = vshrl.u32 %v5575, 7
    %v5577 = vsub.s32 %v5574, %v5576
    %v5578 = vrot.slane %v5564, %v5577
    %v5579 = vcombine.low %v5571, %v5578
    %v5580 = vcombine.low %v4209, %v4218
    %v5581 = vcombine.low %v4227, %v4236
    %v5583 = vunpack.c.l.s4 1983009808
    %v5584 = vunpack.c.0.s8 %v5583
    %v5585 = vlaneseq
    %v5586 = vshrl.u32 %v5585, 7
    %v5587 = vsub.s32 %v5584, %v5586
    %v5588 = vrot.slane %v5580, %v5587
    %v5590 = vunpack.c.l.s4 1983009808
    %v5591 = vunpack.c.0.s8 %v5590
    %v5592 = vlaneseq
    %v5593 = vshrl.u32 %v5592, 7
    %v5594 = vsub.s32 %v5591, %v5593
    %v5595 = vrot.slane %v5581, %v5594
    %v5596 = vcombine.low %v5588, %v5595
    %v5597 = vcombine.low %v4210, %v4219
    %v5598 = vcombine.low %v4228, %v4237
    %v5600 = vunpack.c.l.s4 1983009808
    %v5601 = vunpack.c.0.s8 %v5600
    %v5602 = vlaneseq
    %v5603 = vshrl.u32 %v5602, 7
    %v5604 = vsub.s32 %v5601, %v5603
    %v5605 = vrot.slane %v5597, %v5604
    %v5607 = vunpack.c.l.s4 1983009808
    %v5608 = vunpack.c.0.s8 %v5607
    %v5609 = vlaneseq
    %v5610 = vshrl.u32 %v5609, 7
    %v5611 = vsub.s32 %v5608, %v5610
    %v5612 = vrot.slane %v5598, %v5611
    %v5613 = vcombine.low %v5605, %v5612
    %v5614 = vcombine.low %v4245, %v4254
    %v5615 = vcombine.low %v4263, %v4272
    %v5617 = vunpack.c.l.s4 1983009808
    %v5618 = vunpack.c.0.s8 %v5617
    %v5619 = vlaneseq
    %v5620 = vshrl.u32 %v5619, 7
    %v5621 = vsub.s32 %v5618, %v5620
    %v5622 = vrot.slane %v5614, %v5621
    %v5624 = vunpack.c.l.s4 1983009808
    %v5625 = vunpack.c.0.s8 %v5624
    %v5626 = vlaneseq
    %v5627 = vshrl.u32 %v5626, 7
    %v5628 = vsub.s32 %v5625, %v5627
    %v5629 = vrot.slane %v5615, %v5628
    %v5630 = vcombine.low %v5622, %v5629
    %v5631 = vcombine.low %v4246, %v4255
    %v5632 = vcombine.low %v4264, %v4273
    %v5634 = vunpack.c.l.s4 1983009808
    %v5635 = vunpack.c.0.s8 %v5634
    %v5636 = vlaneseq
    %v5637 = vshrl.u32 %v5636, 7
    %v5638 = vsub.s32 %v5635, %v5637
    %v5639 = vrot.slane %v5631, %v5638
    %v5641 = vunpack.c.l.s4 1983009808
    %v5642 = vunpack.c.0.s8 %v5641
    %v5643 = vlaneseq
    %v5644 = vshrl.u32 %v5643, 7
    %v5645 = vsub.s32 %v5642, %v5644
    %v5646 = vrot.slane %v5632, %v5645
    %v5647 = vcombine.low %v5639, %v5646
    %v5648 = vcombine.low %v4281, %v4290
    %v5649 = vcombine.low %v4299, %v4308
    %v5651 = vunpack.c.l.s4 1983009808
    %v5652 = vunpack.c.0.s8 %v5651
    %v5653 = vlaneseq
    %v5654 = vshrl.u32 %v5653, 7
    %v5655 = vsub.s32 %v5652, %v5654
    %v5656 = vrot.slane %v5648, %v5655
    %v5658 = vunpack.c.l.s4 1983009808
    %v5659 = vunpack.c.0.s8 %v5658
    %v5660 = vlaneseq
    %v5661 = vshrl.u32 %v5660, 7
    %v5662 = vsub.s32 %v5659, %v5661
    %v5663 = vrot.slane %v5649, %v5662
    %v5664 = vcombine.low %v5656, %v5663
    %v5665 = vcombine.low %v4282, %v4291
    %v5666 = vcombine.low %v4300, %v4309
    %v5668 = vunpack.c.l.s4 1983009808
    %v5669 = vunpack.c.0.s8 %v5668
    %v5670 = vlaneseq
    %v5671 = vshrl.u32 %v5670, 7
    %v5672 = vsub.s32 %v5669, %v5671
    %v5673 = vrot.slane %v5665, %v5672
    %v5675 = vunpack.c.l.s4 1983009808
    %v5676 = vunpack.c.0.s8 %v5675
    %v5677 = vlaneseq
    %v5678 = vshrl.u32 %v5677, 7
    %v5679 = vsub.s32 %v5676, %v5678
    %v5680 = vrot.slane %v5666, %v5679
    %v5681 = vcombine.low %v5673, %v5680
    %v5682 = vcombine.low %v4317, %v4326
    %v5683 = vcombine.low %v4335, %v4344
    %v5685 = vunpack.c.l.s4 1983009808
    %v5686 = vunpack.c.0.s8 %v5685
    %v5687 = vlaneseq
    %v5688 = vshrl.u32 %v5687, 7
    %v5689 = vsub.s32 %v5686, %v5688
    %v5690 = vrot.slane %v5682, %v5689
    %v5692 = vunpack.c.l.s4 1983009808
    %v5693 = vunpack.c.0.s8 %v5692
    %v5694 = vlaneseq
    %v5695 = vshrl.u32 %v5694, 7
    %v5696 = vsub.s32 %v5693, %v5695
    %v5697 = vrot.slane %v5683, %v5696
    %v5698 = vcombine.low %v5690, %v5697
    %v5699 = vcombine.low %v4318, %v4327
    %v5700 = vcombine.low %v4336, %v4345
    %v5702 = vunpack.c.l.s4 1983009808
    %v5703 = vunpack.c.0.s8 %v5702
    %v5704 = vlaneseq
    %v5705 = vshrl.u32 %v5704, 7
    %v5706 = vsub.s32 %v5703, %v5705
    %v5707 = vrot.slane %v5699, %v5706
    %v5709 = vunpack.c.l.s4 1983009808
    %v5710 = vunpack.c.0.s8 %v5709
    %v5711 = vlaneseq
    %v5712 = vshrl.u32 %v5711, 7
    %v5713 = vsub.s32 %v5710, %v5712
    %v5714 = vrot.slane %v5700, %v5713
    %v5715 = vcombine.low %v5707, %v5714
    %v5716 = vcombine.low %v4353, %v4362
    %v5717 = vcombine.low %v4371, %v4380
    %v5719 = vunpack.c.l.s4 1983009808
    %v5720 = vunpack.c.0.s8 %v5719
    %v5721 = vlaneseq
    %v5722 = vshrl.u32 %v5721, 7
    %v5723 = vsub.s32 %v5720, %v5722
    %v5724 = vrot.slane %v5716, %v5723
    %v5726 = vunpack.c.l.s4 1983009808
    %v5727 = vunpack.c.0.s8 %v5726
    %v5728 = vlaneseq
    %v5729 = vshrl.u32 %v5728, 7
    %v5730 = vsub.s32 %v5727, %v5729
    %v5731 = vrot.slane %v5717, %v5730
    %v5732 = vcombine.low %v5724, %v5731
    %v5733 = vcombine.low %v4354, %v4363
    %v5734 = vcombine.low %v4372, %v4381
    %v5736 = vunpack.c.l.s4 1983009808
    %v5737 = vunpack.c.0.s8 %v5736
    %v5738 = vlaneseq
    %v5739 = vshrl.u32 %v5738, 7
    %v5740 = vsub.s32 %v5737, %v5739
    %v5741 = vrot.slane %v5733, %v5740
    %v5743 = vunpack.c.l.s4 1983009808
    %v5744 = vunpack.c.0.s8 %v5743
    %v5745 = vlaneseq
    %v5746 = vshrl.u32 %v5745, 7
    %v5747 = vsub.s32 %v5744, %v5746
    %v5748 = vrot.slane %v5734, %v5747
    %v5749 = vcombine.low %v5741, %v5748
    %v5750 = vcombine.low %v4389, %v4398
    %v5751 = vcombine.low %v4407, %v4416
    %v5753 = vunpack.c.l.s4 1983009808
    %v5754 = vunpack.c.0.s8 %v5753
    %v5755 = vlaneseq
    %v5756 = vshrl.u32 %v5755, 7
    %v5757 = vsub.s32 %v5754, %v5756
    %v5758 = vrot.slane %v5750, %v5757
    %v5760 = vunpack.c.l.s4 1983009808
    %v5761 = vunpack.c.0.s8 %v5760
    %v5762 = vlaneseq
    %v5763 = vshrl.u32 %v5762, 7
    %v5764 = vsub.s32 %v5761, %v5763
    %v5765 = vrot.slane %v5751, %v5764
    %v5766 = vcombine.low %v5758, %v5765
    %v5767 = vcombine.low %v4390, %v4399
    %v5768 = vcombine.low %v4408, %v4417
    %v5770 = vunpack.c.l.s4 1983009808
    %v5771 = vunpack.c.0.s8 %v5770
    %v5772 = vlaneseq
    %v5773 = vshrl.u32 %v5772, 7
    %v5774 = vsub.s32 %v5771, %v5773
    %v5775 = vrot.slane %v5767, %v5774
    %v5777 = vunpack.c.l.s4 1983009808
    %v5778 = vunpack.c.0.s8 %v5777
    %v5779 = vlaneseq
    %v5780 = vshrl.u32 %v5779, 7
    %v5781 = vsub.s32 %v5778, %v5780
    %v5782 = vrot.slane %v5768, %v5781
    %v5783 = vcombine.low %v5775, %v5782
    %v5784 = vcombine.low %v4425, %v4434
    %v5785 = vcombine.low %v4443, %v4452
    %v5787 = vunpack.c.l.s4 1983009808
    %v5788 = vunpack.c.0.s8 %v5787
    %v5789 = vlaneseq
    %v5790 = vshrl.u32 %v5789, 7
    %v5791 = vsub.s32 %v5788, %v5790
    %v5792 = vrot.slane %v5784, %v5791
    %v5794 = vunpack.c.l.s4 1983009808
    %v5795 = vunpack.c.0.s8 %v5794
    %v5796 = vlaneseq
    %v5797 = vshrl.u32 %v5796, 7
    %v5798 = vsub.s32 %v5795, %v5797
    %v5799 = vrot.slane %v5785, %v5798
    %v5800 = vcombine.low %v5792, %v5799
    %v5801 = vcombine.low %v4426, %v4435
    %v5802 = vcombine.low %v4444, %v4453
    %v5804 = vunpack.c.l.s4 1983009808
    %v5805 = vunpack.c.0.s8 %v5804
    %v5806 = vlaneseq
    %v5807 = vshrl.u32 %v5806, 7
    %v5808 = vsub.s32 %v5805, %v5807
    %v5809 = vrot.slane %v5801, %v5808
    %v5811 = vunpack.c.l.s4 1983009808
    %v5812 = vunpack.c.0.s8 %v5811
    %v5813 = vlaneseq
    %v5814 = vshrl.u32 %v5813, 7
    %v5815 = vsub.s32 %v5812, %v5814
    %v5816 = vrot.slane %v5802, %v5815
    %v5817 = vcombine.low %v5809, %v5816
    %v5818 = vcombine.low %v4461, %v4470
    %v5819 = vcombine.low %v4479, %v4488
    %v5821 = vunpack.c.l.s4 1983009808
    %v5822 = vunpack.c.0.s8 %v5821
    %v5823 = vlaneseq
    %v5824 = vshrl.u32 %v5823, 7
    %v5825 = vsub.s32 %v5822, %v5824
    %v5826 = vrot.slane %v5818, %v5825
    %v5828 = vunpack.c.l.s4 1983009808
    %v5829 = vunpack.c.0.s8 %v5828
    %v5830 = vlaneseq
    %v5831 = vshrl.u32 %v5830, 7
    %v5832 = vsub.s32 %v5829, %v5831
    %v5833 = vrot.slane %v5819, %v5832
    %v5834 = vcombine.low %v5826, %v5833
    %v5835 = vcombine.low %v4462, %v4471
    %v5836 = vcombine.low %v4480, %v4489
    %v5838 = vunpack.c.l.s4 1983009808
    %v5839 = vunpack.c.0.s8 %v5838
    %v5840 = vlaneseq
    %v5841 = vshrl.u32 %v5840, 7
    %v5842 = vsub.s32 %v5839, %v5841
    %v5843 = vrot.slane %v5835, %v5842
    %v5845 = vunpack.c.l.s4 1983009808
    %v5846 = vunpack.c.0.s8 %v5845
    %v5847 = vlaneseq
    %v5848 = vshrl.u32 %v5847, 7
    %v5849 = vsub.s32 %v5846, %v5848
    %v5850 = vrot.slane %v5836, %v5849
    %v5851 = vcombine.low %v5843, %v5850
    %v5852 = vcombine.low %v4497, %v4506
    %v5853 = vcombine.low %v4515, %v4524
    %v5855 = vunpack.c.l.s4 1983009808
    %v5856 = vunpack.c.0.s8 %v5855
    %v5857 = vlaneseq
    %v5858 = vshrl.u32 %v5857, 7
    %v5859 = vsub.s32 %v5856, %v5858
    %v5860 = vrot.slane %v5852, %v5859
    %v5862 = vunpack.c.l.s4 1983009808
    %v5863 = vunpack.c.0.s8 %v5862
    %v5864 = vlaneseq
    %v5865 = vshrl.u32 %v5864, 7
    %v5866 = vsub.s32 %v5863, %v5865
    %v5867 = vrot.slane %v5853, %v5866
    %v5868 = vcombine.low %v5860, %v5867
    %v5869 = vcombine.low %v4498, %v4507
    %v5870 = vcombine.low %v4516, %v4525
    %v5872 = vunpack.c.l.s4 1983009808
    %v5873 = vunpack.c.0.s8 %v5872
    %v5874 = vlaneseq
    %v5875 = vshrl.u32 %v5874, 7
    %v5876 = vsub.s32 %v5873, %v5875
    %v5877 = vrot.slane %v5869, %v5876
    %v5879 = vunpack.c.l.s4 1983009808
    %v5880 = vunpack.c.0.s8 %v5879
    %v5881 = vlaneseq
    %v5882 = vshrl.u32 %v5881, 7
    %v5883 = vsub.s32 %v5880, %v5882
    %v5884 = vrot.slane %v5870, %v5883
    %v5885 = vcombine.low %v5877, %v5884
    %v5886 = vcombine.low %v4533, %v4542
    %v5887 = vcombine.low %v4551, %v4560
    %v5889 = vunpack.c.l.s4 1983009808
    %v5890 = vunpack.c.0.s8 %v5889
    %v5891 = vlaneseq
    %v5892 = vshrl.u32 %v5891, 7
    %v5893 = vsub.s32 %v5890, %v5892
    %v5894 = vrot.slane %v5886, %v5893
    %v5896 = vunpack.c.l.s4 1983009808
    %v5897 = vunpack.c.0.s8 %v5896
    %v5898 = vlaneseq
    %v5899 = vshrl.u32 %v5898, 7
    %v5900 = vsub.s32 %v5897, %v5899
    %v5901 = vrot.slane %v5887, %v5900
    %v5902 = vcombine.low %v5894, %v5901
    %v5903 = vcombine.low %v4534, %v4543
    %v5904 = vcombine.low %v4552, %v4561
    %v5906 = vunpack.c.l.s4 1983009808
    %v5907 = vunpack.c.0.s8 %v5906
    %v5908 = vlaneseq
    %v5909 = vshrl.u32 %v5908, 7
    %v5910 = vsub.s32 %v5907, %v5909
    %v5911 = vrot.slane %v5903, %v5910
    %v5913 = vunpack.c.l.s4 1983009808
    %v5914 = vunpack.c.0.s8 %v5913
    %v5915 = vlaneseq
    %v5916 = vshrl.u32 %v5915, 7
    %v5917 = vsub.s32 %v5914, %v5916
    %v5918 = vrot.slane %v5904, %v5917
    %v5919 = vcombine.low %v5911, %v5918
    %v5920 = vcombine.low %v4569, %v4578
    %v5921 = vcombine.low %v4587, %v4596
    %v5923 = vunpack.c.l.s4 1983009808
    %v5924 = vunpack.c.0.s8 %v5923
    %v5925 = vlaneseq
    %v5926 = vshrl.u32 %v5925, 7
    %v5927 = vsub.s32 %v5924, %v5926
    %v5928 = vrot.slane %v5920, %v5927
    %v5930 = vunpack.c.l.s4 1983009808
    %v5931 = vunpack.c.0.s8 %v5930
    %v5932 = vlaneseq
    %v5933 = vshrl.u32 %v5932, 7
    %v5934 = vsub.s32 %v5931, %v5933
    %v5935 = vrot.slane %v5921, %v5934
    %v5936 = vcombine.low %v5928, %v5935
    %v5937 = vcombine.low %v4570, %v4579
    %v5938 = vcombine.low %v4588, %v4597
    %v5940 = vunpack.c.l.s4 1983009808
    %v5941 = vunpack.c.0.s8 %v5940
    %v5942 = vlaneseq
    %v5943 = vshrl.u32 %v5942, 7
    %v5944 = vsub.s32 %v5941, %v5943
    %v5945 = vrot.slane %v5937, %v5944
    %v5947 = vunpack.c.l.s4 1983009808
    %v5948 = vunpack.c.0.s8 %v5947
    %v5949 = vlaneseq
    %v5950 = vshrl.u32 %v5949, 7
    %v5951 = vsub.s32 %v5948, %v5950
    %v5952 = vrot.slane %v5938, %v5951
    %v5953 = vcombine.low %v5945, %v5952
    %v5954 = vcombine.low %v4605, %v4614
    %v5955 = vcombine.low %v4623, %v4632
    %v5957 = vunpack.c.l.s4 1983009808
    %v5958 = vunpack.c.0.s8 %v5957
    %v5959 = vlaneseq
    %v5960 = vshrl.u32 %v5959, 7
    %v5961 = vsub.s32 %v5958, %v5960
    %v5962 = vrot.slane %v5954, %v5961
    %v5964 = vunpack.c.l.s4 1983009808
    %v5965 = vunpack.c.0.s8 %v5964
    %v5966 = vlaneseq
    %v5967 = vshrl.u32 %v5966, 7
    %v5968 = vsub.s32 %v5965, %v5967
    %v5969 = vrot.slane %v5955, %v5968
    %v5970 = vcombine.low %v5962, %v5969
    %v5971 = vcombine.low %v4606, %v4615
    %v5972 = vcombine.low %v4624, %v4633
    %v5974 = vunpack.c.l.s4 1983009808
    %v5975 = vunpack.c.0.s8 %v5974
    %v5976 = vlaneseq
    %v5977 = vshrl.u32 %v5976, 7
    %v5978 = vsub.s32 %v5975, %v5977
    %v5979 = vrot.slane %v5971, %v5978
    %v5981 = vunpack.c.l.s4 1983009808
    %v5982 = vunpack.c.0.s8 %v5981
    %v5983 = vlaneseq
    %v5984 = vshrl.u32 %v5983, 7
    %v5985 = vsub.s32 %v5982, %v5984
    %v5986 = vrot.slane %v5972, %v5985
    %v5987 = vcombine.low %v5979, %v5986
    %v5988 = vcombine.low %v4641, %v4650
    %v5989 = vcombine.low %v4659, %v4668
    %v5991 = vunpack.c.l.s4 1983009808
    %v5992 = vunpack.c.0.s8 %v5991
    %v5993 = vlaneseq
    %v5994 = vshrl.u32 %v5993, 7
    %v5995 = vsub.s32 %v5992, %v5994
    %v5996 = vrot.slane %v5988, %v5995
    %v5998 = vunpack.c.l.s4 1983009808
    %v5999 = vunpack.c.0.s8 %v5998
    %v6000 = vlaneseq
    %v6001 = vshrl.u32 %v6000, 7
    %v6002 = vsub.s32 %v5999, %v6001
    %v6003 = vrot.slane %v5989, %v6002
    %v6004 = vcombine.low %v5996, %v6003
    %v6005 = vcombine.low %v4642, %v4651
    %v6006 = vcombine.low %v4660, %v4669
    %v6008 = vunpack.c.l.s4 1983009808
    %v6009 = vunpack.c.0.s8 %v6008
    %v6010 = vlaneseq
    %v6011 = vshrl.u32 %v6010, 7
    %v6012 = vsub.s32 %v6009, %v6011
    %v6013 = vrot.slane %v6005, %v6012
    %v6015 = vunpack.c.l.s4 1983009808
    %v6016 = vunpack.c.0.s8 %v6015
    %v6017 = vlaneseq
    %v6018 = vshrl.u32 %v6017, 7
    %v6019 = vsub.s32 %v6016, %v6018
    %v6020 = vrot.slane %v6006, %v6019
    %v6021 = vcombine.low %v6013, %v6020
    %v6022 = vcombine.low %v4677, %v4686
    %v6023 = vcombine.low %v4695, %v4704
    %v6025 = vunpack.c.l.s4 1983009808
    %v6026 = vunpack.c.0.s8 %v6025
    %v6027 = vlaneseq
    %v6028 = vshrl.u32 %v6027, 7
    %v6029 = vsub.s32 %v6026, %v6028
    %v6030 = vrot.slane %v6022, %v6029
    %v6032 = vunpack.c.l.s4 1983009808
    %v6033 = vunpack.c.0.s8 %v6032
    %v6034 = vlaneseq
    %v6035 = vshrl.u32 %v6034, 7
    %v6036 = vsub.s32 %v6033, %v6035
    %v6037 = vrot.slane %v6023, %v6036
    %v6038 = vcombine.low %v6030, %v6037
    %v6039 = vcombine.low %v4678, %v4687
    %v6040 = vcombine.low %v4696, %v4705
    %v6042 = vunpack.c.l.s4 1983009808
    %v6043 = vunpack.c.0.s8 %v6042
    %v6044 = vlaneseq
    %v6045 = vshrl.u32 %v6044, 7
    %v6046 = vsub.s32 %v6043, %v6045
    %v6047 = vrot.slane %v6039, %v6046
    %v6049 = vunpack.c.l.s4 1983009808
    %v6050 = vunpack.c.0.s8 %v6049
    %v6051 = vlaneseq
    %v6052 = vshrl.u32 %v6051, 7
    %v6053 = vsub.s32 %v6050, %v6052
    %v6054 = vrot.slane %v6040, %v6053
    %v6055 = vcombine.low %v6047, %v6054
    %v6056 = vcombine.low %v4713, %v4722
    %v6057 = vcombine.low %v4731, %v4740
    %v6059 = vunpack.c.l.s4 1983009808
    %v6060 = vunpack.c.0.s8 %v6059
    %v6061 = vlaneseq
    %v6062 = vshrl.u32 %v6061, 7
    %v6063 = vsub.s32 %v6060, %v6062
    %v6064 = vrot.slane %v6056, %v6063
    %v6066 = vunpack.c.l.s4 1983009808
    %v6067 = vunpack.c.0.s8 %v6066
    %v6068 = vlaneseq
    %v6069 = vshrl.u32 %v6068, 7
    %v6070 = vsub.s32 %v6067, %v6069
    %v6071 = vrot.slane %v6057, %v6070
    %v6072 = vcombine.low %v6064, %v6071
    %v6073 = vcombine.low %v4714, %v4723
    %v6074 = vcombine.low %v4732, %v4741
    %v6076 = vunpack.c.l.s4 1983009808
    %v6077 = vunpack.c.0.s8 %v6076
    %v6078 = vlaneseq
    %v6079 = vshrl.u32 %v6078, 7
    %v6080 = vsub.s32 %v6077, %v6079
    %v6081 = vrot.slane %v6073, %v6080
    %v6083 = vunpack.c.l.s4 1983009808
    %v6084 = vunpack.c.0.s8 %v6083
    %v6085 = vlaneseq
    %v6086 = vshrl.u32 %v6085, 7
    %v6087 = vsub.s32 %v6084, %v6086
    %v6088 = vrot.slane %v6074, %v6087
    %v6089 = vcombine.low %v6081, %v6088
    %v6090 = vcombine.low %v4749, %v4758
    %v6091 = vcombine.low %v4767, %v4776
    %v6093 = vunpack.c.l.s4 1983009808
    %v6094 = vunpack.c.0.s8 %v6093
    %v6095 = vlaneseq
    %v6096 = vshrl.u32 %v6095, 7
    %v6097 = vsub.s32 %v6094, %v6096
    %v6098 = vrot.slane %v6090, %v6097
    %v6100 = vunpack.c.l.s4 1983009808
    %v6101 = vunpack.c.0.s8 %v6100
    %v6102 = vlaneseq
    %v6103 = vshrl.u32 %v6102, 7
    %v6104 = vsub.s32 %v6101, %v6103
    %v6105 = vrot.slane %v6091, %v6104
    %v6106 = vcombine.low %v6098, %v6105
    %v6107 = vcombine.low %v4750, %v4759
    %v6108 = vcombine.low %v4768, %v4777
    %v6110 = vunpack.c.l.s4 1983009808
    %v6111 = vunpack.c.0.s8 %v6110
    %v6112 = vlaneseq
    %v6113 = vshrl.u32 %v6112, 7
    %v6114 = vsub.s32 %v6111, %v6113
    %v6115 = vrot.slane %v6107, %v6114
    %v6117 = vunpack.c.l.s4 1983009808
    %v6118 = vunpack.c.0.s8 %v6117
    %v6119 = vlaneseq
    %v6120 = vshrl.u32 %v6119, 7
    %v6121 = vsub.s32 %v6118, %v6120
    %v6122 = vrot.slane %v6108, %v6121
    %v6123 = vcombine.low %v6115, %v6122
    %v6124 = vcombine.low %v4785, %v4794
    %v6125 = vcombine.low %v4803, %v4812
    %v6127 = vunpack.c.l.s4 1983009808
    %v6128 = vunpack.c.0.s8 %v6127
    %v6129 = vlaneseq
    %v6130 = vshrl.u32 %v6129, 7
    %v6131 = vsub.s32 %v6128, %v6130
    %v6132 = vrot.slane %v6124, %v6131
    %v6134 = vunpack.c.l.s4 1983009808
    %v6135 = vunpack.c.0.s8 %v6134
    %v6136 = vlaneseq
    %v6137 = vshrl.u32 %v6136, 7
    %v6138 = vsub.s32 %v6135, %v6137
    %v6139 = vrot.slane %v6125, %v6138
    %v6140 = vcombine.low %v6132, %v6139
    %v6141 = vcombine.low %v4786, %v4795
    %v6142 = vcombine.low %v4804, %v4813
    %v6144 = vunpack.c.l.s4 1983009808
    %v6145 = vunpack.c.0.s8 %v6144
    %v6146 = vlaneseq
    %v6147 = vshrl.u32 %v6146, 7
    %v6148 = vsub.s32 %v6145, %v6147
    %v6149 = vrot.slane %v6141, %v6148
    %v6151 = vunpack.c.l.s4 1983009808
    %v6152 = vunpack.c.0.s8 %v6151
    %v6153 = vlaneseq
    %v6154 = vshrl.u32 %v6153, 7
    %v6155 = vsub.s32 %v6152, %v6154
    %v6156 = vrot.slane %v6142, %v6155
    %v6157 = vcombine.low %v6149, %v6156
    %vm6222 = vcmask 15360
    %v6223 = vsel %vm6222, %v5086, -inf
    %6224 = vmax.xlane.f32.xlu0 %v6223
    %v6225 = vpop.xlane.xlu0 %6224
    %v6226 = vsel %vm6222, %v5103, -inf
    %6227 = vmax.xlane.f32.xlu0 %v6226
    %v6228 = vpop.xlane.xlu0 %6227
    %v6229 = vsel %vm6222, %v5120, -inf
    %6230 = vmax.xlane.f32.xlu0 %v6229
    %v6231 = vpop.xlane.xlu0 %6230
    %v6232 = vsel %vm6222, %v5137, -inf
    %6233 = vmax.xlane.f32.xlu0 %v6232
    %v6234 = vpop.xlane.xlu0 %6233
    %v6235 = vsel %vm6222, %v5154, -inf
    %6236 = vmax.xlane.f32.xlu0 %v6235
    %v6237 = vpop.xlane.xlu0 %6236
    %v6238 = vsel %vm6222, %v5171, -inf
    %6239 = vmax.xlane.f32.xlu0 %v6238
    %v6240 = vpop.xlane.xlu0 %6239
    %v6241 = vsel %vm6222, %v5188, -inf
    %6242 = vmax.xlane.f32.xlu0 %v6241
    %v6243 = vpop.xlane.xlu0 %6242
    %v6244 = vsel %vm6222, %v5205, -inf
    %6245 = vmax.xlane.f32.xlu0 %v6244
    %v6246 = vpop.xlane.xlu0 %6245
    %v6247 = vsel %vm6222, %v5222, -inf
    %6248 = vmax.xlane.f32.xlu0 %v6247
    %v6249 = vpop.xlane.xlu0 %6248
    %v6250 = vsel %vm6222, %v5239, -inf
    %6251 = vmax.xlane.f32.xlu0 %v6250
    %v6252 = vpop.xlane.xlu0 %6251
    %v6253 = vsel %vm6222, %v5256, -inf
    %6254 = vmax.xlane.f32.xlu0 %v6253
    %v6255 = vpop.xlane.xlu0 %6254
    %v6256 = vsel %vm6222, %v5273, -inf
    %6257 = vmax.xlane.f32.xlu0 %v6256
    %v6258 = vpop.xlane.xlu0 %6257
    %v6259 = vsel %vm6222, %v5290, -inf
    %6260 = vmax.xlane.f32.xlu0 %v6259
    %v6261 = vpop.xlane.xlu0 %6260
    %v6262 = vsel %vm6222, %v5307, -inf
    %6263 = vmax.xlane.f32.xlu0 %v6262
    %v6264 = vpop.xlane.xlu0 %6263
    %v6265 = vsel %vm6222, %v5324, -inf
    %6266 = vmax.xlane.f32.xlu0 %v6265
    %v6267 = vpop.xlane.xlu0 %6266
    %v6268 = vsel %vm6222, %v5341, -inf
    %6269 = vmax.xlane.f32.xlu0 %v6268
    %v6270 = vpop.xlane.xlu0 %6269
    %v6271 = vsel %vm6222, %v5358, -inf
    %6272 = vmax.xlane.f32.xlu0 %v6271
    %v6273 = vpop.xlane.xlu0 %6272
    %v6274 = vsel %vm6222, %v5375, -inf
    %6275 = vmax.xlane.f32.xlu0 %v6274
    %v6276 = vpop.xlane.xlu0 %6275
    %v6277 = vsel %vm6222, %v5392, -inf
    %6278 = vmax.xlane.f32.xlu0 %v6277
    %v6279 = vpop.xlane.xlu0 %6278
    %v6280 = vsel %vm6222, %v5409, -inf
    %6281 = vmax.xlane.f32.xlu0 %v6280
    %v6282 = vpop.xlane.xlu0 %6281
    %v6283 = vsel %vm6222, %v5426, -inf
    %6284 = vmax.xlane.f32.xlu0 %v6283
    %v6285 = vpop.xlane.xlu0 %6284
    %v6286 = vsel %vm6222, %v5443, -inf
    %6287 = vmax.xlane.f32.xlu0 %v6286
    %v6288 = vpop.xlane.xlu0 %6287
    %v6289 = vsel %vm6222, %v5460, -inf
    %6290 = vmax.xlane.f32.xlu0 %v6289
    %v6291 = vpop.xlane.xlu0 %6290
    %v6292 = vsel %vm6222, %v5477, -inf
    %6293 = vmax.xlane.f32.xlu0 %v6292
    %v6294 = vpop.xlane.xlu0 %6293
    %v6295 = vsel %vm6222, %v5494, -inf
    %6296 = vmax.xlane.f32.xlu0 %v6295
    %v6297 = vpop.xlane.xlu0 %6296
    %v6298 = vsel %vm6222, %v5511, -inf
    %6299 = vmax.xlane.f32.xlu0 %v6298
    %v6300 = vpop.xlane.xlu0 %6299
    %v6301 = vsel %vm6222, %v5528, -inf
    %6302 = vmax.xlane.f32.xlu0 %v6301
    %v6303 = vpop.xlane.xlu0 %6302
    %v6304 = vsel %vm6222, %v5545, -inf
    %6305 = vmax.xlane.f32.xlu0 %v6304
    %v6306 = vpop.xlane.xlu0 %6305
    %v6307 = vsel %vm6222, %v5562, -inf
    %6308 = vmax.xlane.f32.xlu0 %v6307
    %v6309 = vpop.xlane.xlu0 %6308
    %v6310 = vsel %vm6222, %v5579, -inf
    %6311 = vmax.xlane.f32.xlu0 %v6310
    %v6312 = vpop.xlane.xlu0 %6311
    %v6313 = vsel %vm6222, %v5596, -inf
    %6314 = vmax.xlane.f32.xlu0 %v6313
    %v6315 = vpop.xlane.xlu0 %6314
    %v6316 = vsel %vm6222, %v5613, -inf
    %6317 = vmax.xlane.f32.xlu0 %v6316
    %v6318 = vpop.xlane.xlu0 %6317
    %v6319 = vsel %vm6222, %v5630, -inf
    %6320 = vmax.xlane.f32.xlu0 %v6319
    %v6321 = vpop.xlane.xlu0 %6320
    %v6322 = vsel %vm6222, %v5647, -inf
    %6323 = vmax.xlane.f32.xlu0 %v6322
    %v6324 = vpop.xlane.xlu0 %6323
    %v6325 = vsel %vm6222, %v5664, -inf
    %6326 = vmax.xlane.f32.xlu0 %v6325
    %v6327 = vpop.xlane.xlu0 %6326
    %v6328 = vsel %vm6222, %v5681, -inf
    %6329 = vmax.xlane.f32.xlu0 %v6328
    %v6330 = vpop.xlane.xlu0 %6329
    %v6331 = vsel %vm6222, %v5698, -inf
    %6332 = vmax.xlane.f32.xlu0 %v6331
    %v6333 = vpop.xlane.xlu0 %6332
    %v6334 = vsel %vm6222, %v5715, -inf
    %6335 = vmax.xlane.f32.xlu0 %v6334
    %v6336 = vpop.xlane.xlu0 %6335
    %v6337 = vsel %vm6222, %v5732, -inf
    %6338 = vmax.xlane.f32.xlu0 %v6337
    %v6339 = vpop.xlane.xlu0 %6338
    %v6340 = vsel %vm6222, %v5749, -inf
    %6341 = vmax.xlane.f32.xlu0 %v6340
    %v6342 = vpop.xlane.xlu0 %6341
    %v6343 = vsel %vm6222, %v5766, -inf
    %6344 = vmax.xlane.f32.xlu0 %v6343
    %v6345 = vpop.xlane.xlu0 %6344
    %v6346 = vsel %vm6222, %v5783, -inf
    %6347 = vmax.xlane.f32.xlu0 %v6346
    %v6348 = vpop.xlane.xlu0 %6347
    %v6349 = vsel %vm6222, %v5800, -inf
    %6350 = vmax.xlane.f32.xlu0 %v6349
    %v6351 = vpop.xlane.xlu0 %6350
    %v6352 = vsel %vm6222, %v5817, -inf
    %6353 = vmax.xlane.f32.xlu0 %v6352
    %v6354 = vpop.xlane.xlu0 %6353
    %v6355 = vsel %vm6222, %v5834, -inf
    %6356 = vmax.xlane.f32.xlu0 %v6355
    %v6357 = vpop.xlane.xlu0 %6356
    %v6358 = vsel %vm6222, %v5851, -inf
    %6359 = vmax.xlane.f32.xlu0 %v6358
    %v6360 = vpop.xlane.xlu0 %6359
    %v6361 = vsel %vm6222, %v5868, -inf
    %6362 = vmax.xlane.f32.xlu0 %v6361
    %v6363 = vpop.xlane.xlu0 %6362
    %v6364 = vsel %vm6222, %v5885, -inf
    %6365 = vmax.xlane.f32.xlu0 %v6364
    %v6366 = vpop.xlane.xlu0 %6365
    %v6367 = vsel %vm6222, %v5902, -inf
    %6368 = vmax.xlane.f32.xlu0 %v6367
    %v6369 = vpop.xlane.xlu0 %6368
    %v6370 = vsel %vm6222, %v5919, -inf
    %6371 = vmax.xlane.f32.xlu0 %v6370
    %v6372 = vpop.xlane.xlu0 %6371
    %v6373 = vsel %vm6222, %v5936, -inf
    %6374 = vmax.xlane.f32.xlu0 %v6373
    %v6375 = vpop.xlane.xlu0 %6374
    %v6376 = vsel %vm6222, %v5953, -inf
    %6377 = vmax.xlane.f32.xlu0 %v6376
    %v6378 = vpop.xlane.xlu0 %6377
    %v6379 = vsel %vm6222, %v5970, -inf
    %6380 = vmax.xlane.f32.xlu0 %v6379
    %v6381 = vpop.xlane.xlu0 %6380
    %v6382 = vsel %vm6222, %v5987, -inf
    %6383 = vmax.xlane.f32.xlu0 %v6382
    %v6384 = vpop.xlane.xlu0 %6383
    %v6385 = vsel %vm6222, %v6004, -inf
    %6386 = vmax.xlane.f32.xlu0 %v6385
    %v6387 = vpop.xlane.xlu0 %6386
    %v6388 = vsel %vm6222, %v6021, -inf
    %6389 = vmax.xlane.f32.xlu0 %v6388
    %v6390 = vpop.xlane.xlu0 %6389
    %v6391 = vsel %vm6222, %v6038, -inf
    %6392 = vmax.xlane.f32.xlu0 %v6391
    %v6393 = vpop.xlane.xlu0 %6392
    %v6394 = vsel %vm6222, %v6055, -inf
    %6395 = vmax.xlane.f32.xlu0 %v6394
    %v6396 = vpop.xlane.xlu0 %6395
    %v6397 = vsel %vm6222, %v6072, -inf
    %6398 = vmax.xlane.f32.xlu0 %v6397
    %v6399 = vpop.xlane.xlu0 %6398
    %v6400 = vsel %vm6222, %v6089, -inf
    %6401 = vmax.xlane.f32.xlu0 %v6400
    %v6402 = vpop.xlane.xlu0 %6401
    %v6403 = vsel %vm6222, %v6106, -inf
    %6404 = vmax.xlane.f32.xlu0 %v6403
    %v6405 = vpop.xlane.xlu0 %6404
    %v6406 = vsel %vm6222, %v6123, -inf
    %6407 = vmax.xlane.f32.xlu0 %v6406
    %v6408 = vpop.xlane.xlu0 %6407
    %v6409 = vsel %vm6222, %v6140, -inf
    %6410 = vmax.xlane.f32.xlu0 %v6409
    %v6411 = vpop.xlane.xlu0 %6410
    %v6412 = vsel %vm6222, %v6157, -inf
    %6413 = vmax.xlane.f32.xlu0 %v6412
    %v6414 = vpop.xlane.xlu0 %6413
    %v6479 = vlaneseq
    %v6480 = vand.u32 %v6479, 127
    %v6481 = vlaneseq
    %v6482 = vshrl.u32 %v6481, 7
    %v6483 = vsub.s32 %v6480, %v6482
    %v6484 = vrot.slane %v6225, %v6483
    %v6485 = vlaneseq
    %v6486 = vshrl.u32 %v6485, 7
    %v6487 = vsub.s32 %v6480, %v6486
    %v6488 = vrot.slane %v6228, %v6487
    %v6489 = vlaneseq
    %v6490 = vshrl.u32 %v6489, 7
    %v6491 = vsub.s32 %v6480, %v6490
    %v6492 = vrot.slane %v6231, %v6491
    %v6493 = vlaneseq
    %v6494 = vshrl.u32 %v6493, 7
    %v6495 = vsub.s32 %v6480, %v6494
    %v6496 = vrot.slane %v6234, %v6495
    %v6497 = vlaneseq
    %v6498 = vshrl.u32 %v6497, 7
    %v6499 = vsub.s32 %v6480, %v6498
    %v6500 = vrot.slane %v6237, %v6499
    %v6501 = vlaneseq
    %v6502 = vshrl.u32 %v6501, 7
    %v6503 = vsub.s32 %v6480, %v6502
    %v6504 = vrot.slane %v6240, %v6503
    %v6505 = vlaneseq
    %v6506 = vshrl.u32 %v6505, 7
    %v6507 = vsub.s32 %v6480, %v6506
    %v6508 = vrot.slane %v6243, %v6507
    %v6509 = vlaneseq
    %v6510 = vshrl.u32 %v6509, 7
    %v6511 = vsub.s32 %v6480, %v6510
    %v6512 = vrot.slane %v6246, %v6511
    %v6513 = vlaneseq
    %v6514 = vshrl.u32 %v6513, 7
    %v6515 = vsub.s32 %v6480, %v6514
    %v6516 = vrot.slane %v6249, %v6515
    %v6517 = vlaneseq
    %v6518 = vshrl.u32 %v6517, 7
    %v6519 = vsub.s32 %v6480, %v6518
    %v6520 = vrot.slane %v6252, %v6519
    %v6521 = vlaneseq
    %v6522 = vshrl.u32 %v6521, 7
    %v6523 = vsub.s32 %v6480, %v6522
    %v6524 = vrot.slane %v6255, %v6523
    %v6525 = vlaneseq
    %v6526 = vshrl.u32 %v6525, 7
    %v6527 = vsub.s32 %v6480, %v6526
    %v6528 = vrot.slane %v6258, %v6527
    %v6529 = vlaneseq
    %v6530 = vshrl.u32 %v6529, 7
    %v6531 = vsub.s32 %v6480, %v6530
    %v6532 = vrot.slane %v6261, %v6531
    %v6533 = vlaneseq
    %v6534 = vshrl.u32 %v6533, 7
    %v6535 = vsub.s32 %v6480, %v6534
    %v6536 = vrot.slane %v6264, %v6535
    %v6537 = vlaneseq
    %v6538 = vshrl.u32 %v6537, 7
    %v6539 = vsub.s32 %v6480, %v6538
    %v6540 = vrot.slane %v6267, %v6539
    %v6541 = vlaneseq
    %v6542 = vshrl.u32 %v6541, 7
    %v6543 = vsub.s32 %v6480, %v6542
    %v6544 = vrot.slane %v6270, %v6543
    %v6545 = vlaneseq
    %v6546 = vshrl.u32 %v6545, 7
    %v6547 = vsub.s32 %v6480, %v6546
    %v6548 = vrot.slane %v6273, %v6547
    %v6549 = vlaneseq
    %v6550 = vshrl.u32 %v6549, 7
    %v6551 = vsub.s32 %v6480, %v6550
    %v6552 = vrot.slane %v6276, %v6551
    %v6553 = vlaneseq
    %v6554 = vshrl.u32 %v6553, 7
    %v6555 = vsub.s32 %v6480, %v6554
    %v6556 = vrot.slane %v6279, %v6555
    %v6557 = vlaneseq
    %v6558 = vshrl.u32 %v6557, 7
    %v6559 = vsub.s32 %v6480, %v6558
    %v6560 = vrot.slane %v6282, %v6559
    %v6561 = vlaneseq
    %v6562 = vshrl.u32 %v6561, 7
    %v6563 = vsub.s32 %v6480, %v6562
    %v6564 = vrot.slane %v6285, %v6563
    %v6565 = vlaneseq
    %v6566 = vshrl.u32 %v6565, 7
    %v6567 = vsub.s32 %v6480, %v6566
    %v6568 = vrot.slane %v6288, %v6567
    %v6569 = vlaneseq
    %v6570 = vshrl.u32 %v6569, 7
    %v6571 = vsub.s32 %v6480, %v6570
    %v6572 = vrot.slane %v6291, %v6571
    %v6573 = vlaneseq
    %v6574 = vshrl.u32 %v6573, 7
    %v6575 = vsub.s32 %v6480, %v6574
    %v6576 = vrot.slane %v6294, %v6575
    %v6577 = vlaneseq
    %v6578 = vshrl.u32 %v6577, 7
    %v6579 = vsub.s32 %v6480, %v6578
    %v6580 = vrot.slane %v6297, %v6579
    %v6581 = vlaneseq
    %v6582 = vshrl.u32 %v6581, 7
    %v6583 = vsub.s32 %v6480, %v6582
    %v6584 = vrot.slane %v6300, %v6583
    %v6585 = vlaneseq
    %v6586 = vshrl.u32 %v6585, 7
    %v6587 = vsub.s32 %v6480, %v6586
    %v6588 = vrot.slane %v6303, %v6587
    %v6589 = vlaneseq
    %v6590 = vshrl.u32 %v6589, 7
    %v6591 = vsub.s32 %v6480, %v6590
    %v6592 = vrot.slane %v6306, %v6591
    %v6593 = vlaneseq
    %v6594 = vshrl.u32 %v6593, 7
    %v6595 = vsub.s32 %v6480, %v6594
    %v6596 = vrot.slane %v6309, %v6595
    %v6597 = vlaneseq
    %v6598 = vshrl.u32 %v6597, 7
    %v6599 = vsub.s32 %v6480, %v6598
    %v6600 = vrot.slane %v6312, %v6599
    %v6601 = vlaneseq
    %v6602 = vshrl.u32 %v6601, 7
    %v6603 = vsub.s32 %v6480, %v6602
    %v6604 = vrot.slane %v6315, %v6603
    %v6605 = vlaneseq
    %v6606 = vshrl.u32 %v6605, 7
    %v6607 = vsub.s32 %v6480, %v6606
    %v6608 = vrot.slane %v6318, %v6607
    %v6609 = vlaneseq
    %v6610 = vshrl.u32 %v6609, 7
    %v6611 = vsub.s32 %v6480, %v6610
    %v6612 = vrot.slane %v6321, %v6611
    %v6613 = vlaneseq
    %v6614 = vshrl.u32 %v6613, 7
    %v6615 = vsub.s32 %v6480, %v6614
    %v6616 = vrot.slane %v6324, %v6615
    %v6617 = vlaneseq
    %v6618 = vshrl.u32 %v6617, 7
    %v6619 = vsub.s32 %v6480, %v6618
    %v6620 = vrot.slane %v6327, %v6619
    %v6621 = vlaneseq
    %v6622 = vshrl.u32 %v6621, 7
    %v6623 = vsub.s32 %v6480, %v6622
    %v6624 = vrot.slane %v6330, %v6623
    %v6625 = vlaneseq
    %v6626 = vshrl.u32 %v6625, 7
    %v6627 = vsub.s32 %v6480, %v6626
    %v6628 = vrot.slane %v6333, %v6627
    %v6629 = vlaneseq
    %v6630 = vshrl.u32 %v6629, 7
    %v6631 = vsub.s32 %v6480, %v6630
    %v6632 = vrot.slane %v6336, %v6631
    %v6633 = vlaneseq
    %v6634 = vshrl.u32 %v6633, 7
    %v6635 = vsub.s32 %v6480, %v6634
    %v6636 = vrot.slane %v6339, %v6635
    %v6637 = vlaneseq
    %v6638 = vshrl.u32 %v6637, 7
    %v6639 = vsub.s32 %v6480, %v6638
    %v6640 = vrot.slane %v6342, %v6639
    %v6641 = vlaneseq
    %v6642 = vshrl.u32 %v6641, 7
    %v6643 = vsub.s32 %v6480, %v6642
    %v6644 = vrot.slane %v6345, %v6643
    %v6645 = vlaneseq
    %v6646 = vshrl.u32 %v6645, 7
    %v6647 = vsub.s32 %v6480, %v6646
    %v6648 = vrot.slane %v6348, %v6647
    %v6649 = vlaneseq
    %v6650 = vshrl.u32 %v6649, 7
    %v6651 = vsub.s32 %v6480, %v6650
    %v6652 = vrot.slane %v6351, %v6651
    %v6653 = vlaneseq
    %v6654 = vshrl.u32 %v6653, 7
    %v6655 = vsub.s32 %v6480, %v6654
    %v6656 = vrot.slane %v6354, %v6655
    %v6657 = vlaneseq
    %v6658 = vshrl.u32 %v6657, 7
    %v6659 = vsub.s32 %v6480, %v6658
    %v6660 = vrot.slane %v6357, %v6659
    %v6661 = vlaneseq
    %v6662 = vshrl.u32 %v6661, 7
    %v6663 = vsub.s32 %v6480, %v6662
    %v6664 = vrot.slane %v6360, %v6663
    %v6665 = vlaneseq
    %v6666 = vshrl.u32 %v6665, 7
    %v6667 = vsub.s32 %v6480, %v6666
    %v6668 = vrot.slane %v6363, %v6667
    %v6669 = vlaneseq
    %v6670 = vshrl.u32 %v6669, 7
    %v6671 = vsub.s32 %v6480, %v6670
    %v6672 = vrot.slane %v6366, %v6671
    %v6673 = vlaneseq
    %v6674 = vshrl.u32 %v6673, 7
    %v6675 = vsub.s32 %v6480, %v6674
    %v6676 = vrot.slane %v6369, %v6675
    %v6677 = vlaneseq
    %v6678 = vshrl.u32 %v6677, 7
    %v6679 = vsub.s32 %v6480, %v6678
    %v6680 = vrot.slane %v6372, %v6679
    %v6681 = vlaneseq
    %v6682 = vshrl.u32 %v6681, 7
    %v6683 = vsub.s32 %v6480, %v6682
    %v6684 = vrot.slane %v6375, %v6683
    %v6685 = vlaneseq
    %v6686 = vshrl.u32 %v6685, 7
    %v6687 = vsub.s32 %v6480, %v6686
    %v6688 = vrot.slane %v6378, %v6687
    %v6689 = vlaneseq
    %v6690 = vshrl.u32 %v6689, 7
    %v6691 = vsub.s32 %v6480, %v6690
    %v6692 = vrot.slane %v6381, %v6691
    %v6693 = vlaneseq
    %v6694 = vshrl.u32 %v6693, 7
    %v6695 = vsub.s32 %v6480, %v6694
    %v6696 = vrot.slane %v6384, %v6695
    %v6697 = vlaneseq
    %v6698 = vshrl.u32 %v6697, 7
    %v6699 = vsub.s32 %v6480, %v6698
    %v6700 = vrot.slane %v6387, %v6699
    %v6701 = vlaneseq
    %v6702 = vshrl.u32 %v6701, 7
    %v6703 = vsub.s32 %v6480, %v6702
    %v6704 = vrot.slane %v6390, %v6703
    %v6705 = vlaneseq
    %v6706 = vshrl.u32 %v6705, 7
    %v6707 = vsub.s32 %v6480, %v6706
    %v6708 = vrot.slane %v6393, %v6707
    %v6709 = vlaneseq
    %v6710 = vshrl.u32 %v6709, 7
    %v6711 = vsub.s32 %v6480, %v6710
    %v6712 = vrot.slane %v6396, %v6711
    %v6713 = vlaneseq
    %v6714 = vshrl.u32 %v6713, 7
    %v6715 = vsub.s32 %v6480, %v6714
    %v6716 = vrot.slane %v6399, %v6715
    %v6717 = vlaneseq
    %v6718 = vshrl.u32 %v6717, 7
    %v6719 = vsub.s32 %v6480, %v6718
    %v6720 = vrot.slane %v6402, %v6719
    %v6721 = vlaneseq
    %v6722 = vshrl.u32 %v6721, 7
    %v6723 = vsub.s32 %v6480, %v6722
    %v6724 = vrot.slane %v6405, %v6723
    %v6725 = vlaneseq
    %v6726 = vshrl.u32 %v6725, 7
    %v6727 = vsub.s32 %v6480, %v6726
    %v6728 = vrot.slane %v6408, %v6727
    %v6729 = vlaneseq
    %v6730 = vshrl.u32 %v6729, 7
    %v6731 = vsub.s32 %v6480, %v6730
    %v6732 = vrot.slane %v6411, %v6731
    %v6733 = vlaneseq
    %v6734 = vshrl.u32 %v6733, 7
    %v6735 = vsub.s32 %v6480, %v6734
    %v6736 = vrot.slane %v6414, %v6735
    %v6737 = vsel %vm1613, %v6488, %v6484
    %v6738 = vsel %vm1607, %v6492, %v6737
    %v6739 = vsel %vm1615, %v6496, %v6738
    %v6740 = vsel %vm1608, %v6500, %v6739
    %v6741 = vsel %vm1617, %v6504, %v6740
    %v6742 = vsel %vm1610, %v6508, %v6741
    %v6743 = vsel %vm1619, %v6512, %v6742
    %v6744 = vsel %vm1613, %v6520, %v6516
    %v6745 = vsel %vm1607, %v6524, %v6744
    %v6746 = vsel %vm1615, %v6528, %v6745
    %v6747 = vsel %vm1608, %v6532, %v6746
    %v6748 = vsel %vm1617, %v6536, %v6747
    %v6749 = vsel %vm1610, %v6540, %v6748
    %v6750 = vsel %vm1619, %v6544, %v6749
    %v6751 = vsel %vm1613, %v6552, %v6548
    %v6752 = vsel %vm1607, %v6556, %v6751
    %v6753 = vsel %vm1615, %v6560, %v6752
    %v6754 = vsel %vm1608, %v6564, %v6753
    %v6755 = vsel %vm1617, %v6568, %v6754
    %v6756 = vsel %vm1610, %v6572, %v6755
    %v6757 = vsel %vm1619, %v6576, %v6756
    %v6758 = vsel %vm1613, %v6584, %v6580
    %v6759 = vsel %vm1607, %v6588, %v6758
    %v6760 = vsel %vm1615, %v6592, %v6759
    %v6761 = vsel %vm1608, %v6596, %v6760
    %v6762 = vsel %vm1617, %v6600, %v6761
    %v6763 = vsel %vm1610, %v6604, %v6762
    %v6764 = vsel %vm1619, %v6608, %v6763
    %v6765 = vsel %vm1613, %v6616, %v6612
    %v6766 = vsel %vm1607, %v6620, %v6765
    %v6767 = vsel %vm1615, %v6624, %v6766
    %v6768 = vsel %vm1608, %v6628, %v6767
    %v6769 = vsel %vm1617, %v6632, %v6768
    %v6770 = vsel %vm1610, %v6636, %v6769
    %v6771 = vsel %vm1619, %v6640, %v6770
    %v6772 = vsel %vm1613, %v6648, %v6644
    %v6773 = vsel %vm1607, %v6652, %v6772
    %v6774 = vsel %vm1615, %v6656, %v6773
    %v6775 = vsel %vm1608, %v6660, %v6774
    %v6776 = vsel %vm1617, %v6664, %v6775
    %v6777 = vsel %vm1610, %v6668, %v6776
    %v6778 = vsel %vm1619, %v6672, %v6777
    %v6779 = vsel %vm1613, %v6680, %v6676
    %v6780 = vsel %vm1607, %v6684, %v6779
    %v6781 = vsel %vm1615, %v6688, %v6780
    %v6782 = vsel %vm1608, %v6692, %v6781
    %v6783 = vsel %vm1617, %v6696, %v6782
    %v6784 = vsel %vm1610, %v6700, %v6783
    %v6785 = vsel %vm1619, %v6704, %v6784
    %v6786 = vsel %vm1613, %v6712, %v6708
    %v6787 = vsel %vm1607, %v6716, %v6786
    %v6788 = vsel %vm1615, %v6720, %v6787
    %v6789 = vsel %vm1608, %v6724, %v6788
    %v6790 = vsel %vm1617, %v6728, %v6789
    %v6791 = vsel %vm1610, %v6732, %v6790
    %v6792 = vsel %vm1619, %v6736, %v6791
    %v6801 = vcombine.low %v6743, %v6757
    %v6802 = vcombine.high %v6743, %v6757
    %v6804 = vunpack.c.l.s4 1983009808
    %v6805 = vunpack.c.0.s8 %v6804
    %v6806 = vlaneseq
    %v6807 = vshrl.u32 %v6806, 7
    %v6808 = vsub.s32 %v6805, %v6807
    %v6809 = vrot.slane %v6801, %v6808
    %v6811 = vunpack.c.l.s4 1983009808
    %v6812 = vunpack.c.0.s8 %v6811
    %v6813 = vlaneseq
    %v6814 = vshrl.u32 %v6813, 7
    %v6815 = vsub.s32 %v6812, %v6814
    %v6816 = vrot.slane %v6802, %v6815
    %v6817 = vcombine.low %v6750, %v6764
    %v6818 = vcombine.high %v6750, %v6764
    %v6820 = vunpack.c.l.s4 1983009808
    %v6821 = vunpack.c.0.s8 %v6820
    %v6822 = vlaneseq
    %v6823 = vshrl.u32 %v6822, 7
    %v6824 = vsub.s32 %v6821, %v6823
    %v6825 = vrot.slane %v6817, %v6824
    %v6827 = vunpack.c.l.s4 1983009808
    %v6828 = vunpack.c.0.s8 %v6827
    %v6829 = vlaneseq
    %v6830 = vshrl.u32 %v6829, 7
    %v6831 = vsub.s32 %v6828, %v6830
    %v6832 = vrot.slane %v6818, %v6831
    %v6833 = vcombine.low %v6771, %v6785
    %v6834 = vcombine.high %v6771, %v6785
    %v6836 = vunpack.c.l.s4 1983009808
    %v6837 = vunpack.c.0.s8 %v6836
    %v6838 = vlaneseq
    %v6839 = vshrl.u32 %v6838, 7
    %v6840 = vsub.s32 %v6837, %v6839
    %v6841 = vrot.slane %v6833, %v6840
    %v6843 = vunpack.c.l.s4 1983009808
    %v6844 = vunpack.c.0.s8 %v6843
    %v6845 = vlaneseq
    %v6846 = vshrl.u32 %v6845, 7
    %v6847 = vsub.s32 %v6844, %v6846
    %v6848 = vrot.slane %v6834, %v6847
    %v6849 = vcombine.low %v6778, %v6792
    %v6850 = vcombine.high %v6778, %v6792
    %v6852 = vunpack.c.l.s4 1983009808
    %v6853 = vunpack.c.0.s8 %v6852
    %v6854 = vlaneseq
    %v6855 = vshrl.u32 %v6854, 7
    %v6856 = vsub.s32 %v6853, %v6855
    %v6857 = vrot.slane %v6849, %v6856
    %v6859 = vunpack.c.l.s4 1983009808
    %v6860 = vunpack.c.0.s8 %v6859
    %v6861 = vlaneseq
    %v6862 = vshrl.u32 %v6861, 7
    %v6863 = vsub.s32 %v6860, %v6862
    %v6864 = vrot.slane %v6850, %v6863
    %v6865 = vcombine.low %v6809, %v6825
    %v6866 = vcombine.high %v6809, %v6825
    %v6868 = vunpack.c.l.s4 1934713408
    %v6869 = vunpack.c.0.s8 %v6868
    %v6870 = vlaneseq
    %v6871 = vshrl.u32 %v6870, 7
    %v6872 = vsub.s32 %v6869, %v6871
    %v6873 = vrot.slane %v6865, %v6872
    %v6875 = vunpack.c.l.s4 1934713408
    %v6876 = vunpack.c.0.s8 %v6875
    %v6877 = vlaneseq
    %v6878 = vshrl.u32 %v6877, 7
    %v6879 = vsub.s32 %v6876, %v6878
    %v6880 = vrot.slane %v6866, %v6879
    %v6881 = vcombine.low %v6816, %v6832
    %v6882 = vcombine.high %v6816, %v6832
    %v6884 = vunpack.c.l.s4 1934713408
    %v6885 = vunpack.c.0.s8 %v6884
    %v6886 = vlaneseq
    %v6887 = vshrl.u32 %v6886, 7
    %v6888 = vsub.s32 %v6885, %v6887
    %v6889 = vrot.slane %v6881, %v6888
    %v6891 = vunpack.c.l.s4 1934713408
    %v6892 = vunpack.c.0.s8 %v6891
    %v6893 = vlaneseq
    %v6894 = vshrl.u32 %v6893, 7
    %v6895 = vsub.s32 %v6892, %v6894
    %v6896 = vrot.slane %v6882, %v6895
    %v6897 = vcombine.low %v6841, %v6857
    %v6898 = vcombine.high %v6841, %v6857
    %v6900 = vunpack.c.l.s4 1934713408
    %v6901 = vunpack.c.0.s8 %v6900
    %v6902 = vlaneseq
    %v6903 = vshrl.u32 %v6902, 7
    %v6904 = vsub.s32 %v6901, %v6903
    %v6905 = vrot.slane %v6897, %v6904
    %v6907 = vunpack.c.l.s4 1934713408
    %v6908 = vunpack.c.0.s8 %v6907
    %v6909 = vlaneseq
    %v6910 = vshrl.u32 %v6909, 7
    %v6911 = vsub.s32 %v6908, %v6910
    %v6912 = vrot.slane %v6898, %v6911
    %v6913 = vcombine.low %v6848, %v6864
    %v6914 = vcombine.high %v6848, %v6864
    %v6916 = vunpack.c.l.s4 1934713408
    %v6917 = vunpack.c.0.s8 %v6916
    %v6918 = vlaneseq
    %v6919 = vshrl.u32 %v6918, 7
    %v6920 = vsub.s32 %v6917, %v6919
    %v6921 = vrot.slane %v6913, %v6920
    %v6923 = vunpack.c.l.s4 1934713408
    %v6924 = vunpack.c.0.s8 %v6923
    %v6925 = vlaneseq
    %v6926 = vshrl.u32 %v6925, 7
    %v6927 = vsub.s32 %v6924, %v6926
    %v6928 = vrot.slane %v6914, %v6927
    %v6929 = vcombine.low %v6873, %v6905
    %v6930 = vcombine.high %v6873, %v6905
    %v6931 = vcombine.low %v6880, %v6912
    %v6932 = vcombine.high %v6880, %v6912
    %v6933 = vcombine.low %v6889, %v6921
    %v6934 = vcombine.high %v6889, %v6921
    %v6935 = vcombine.low %v6896, %v6928
    %v6936 = vcombine.high %v6896, %v6928
    %6938 = vrot.lane.b32.xlu0 %v6930, 8
    %v6939 = vpop.permute.xlu0 %6938
    %6942 = vrot.lane.b32.xlu0 %v6931, 16
    %v6943 = vpop.permute.xlu0 %6942
    %6946 = vrot.lane.b32.xlu0 %v6932, 24
    %v6947 = vpop.permute.xlu0 %6946
    %6950 = vrot.lane.b32.xlu0 %v6933, 32
    %v6951 = vpop.permute.xlu0 %6950
    %6954 = vrot.lane.b32.xlu0 %v6934, 40
    %v6955 = vpop.permute.xlu0 %6954
    %6958 = vrot.lane.b32.xlu0 %v6935, 48
    %v6959 = vpop.permute.xlu0 %6958
    %6962 = vrot.lane.b32.xlu0 %v6936, 56
    %v6963 = vpop.permute.xlu0 %6962
    %vm6965 = vcmask 64512
    %v6966 = vsel %vm6965, %v6929, %v6939
    %vm6967 = vcmask 130048
    %v6968 = vsel %vm6967, %v6966, %v6943
    %vm6969 = vcmask 195584
    %v6970 = vsel %vm6969, %v6968, %v6947
    %vm6971 = vcmask 261120
    %v6972 = vsel %vm6971, %v6970, %v6951
    %vm6973 = vcmask 326656
    %v6974 = vsel %vm6973, %v6972, %v6955
    %vm6975 = vcmask 392192
    %v6976 = vsel %vm6975, %v6974, %v6959
    %vm6977 = vcmask 457728
    %v6978 = vsel %vm6977, %v6976, %v6963
    %vm6979 = vcmask 523264
    %6980 = vst.msk [vmem:[#allocation5] sm:$0xff] %vm6979, %v6978
    // Predicated region
    $region10: #{tpu_custom_call.1} parent=1 // pred_check
      _
    $region11: #{tpu_custom_call.1} parent=1 // pred_check_branch
      %6982 = sbr.rel (0) target = $region13
    $region12: #{tpu_custom_call.1} parent=1 // pred_region
      %s6984 = ssub.s32 128, 128
      %6985 = vsyncadd [#allocation4], %s6984
      %s6987 = sshll.u32 [#allocation5], 4
      %s6988 = int_to_ptr.vmem [resolvable:$true] %s6987
      %6990 = dma.vmem_to_hbm [thread:$0]  %s6988, 128, %s1, [#allocation4]
    $region13: #{tpu_custom_call.1} parent=1 // pred_fallthru
      _
    // Predicated region
    $region14: #{tpu_custom_call.1} parent=1 // pred_check
      _
    $region15: #{tpu_custom_call.1} parent=1 // pred_check_branch
      %6992 = sbr.rel (0) target = $region17
    $region16: #{tpu_custom_call.1} parent=1 // pred_region
      %6993 = dma.done [#allocation4], 128
    $region17: #{tpu_custom_call.1} parent=1 // pred_fallthru
      _
    %6994 = vsyncpa [#allocation3], 1
    %6995 = vsyncpa [#allocation4], 1

</llo_original>
